<compile_context>
chip_gen: v7x
topology: tpu7x:2x2x1
jax: 0.10.0
libtpu: 0.0.40
codegen_flags: <defaults>
</compile_context>

<pallas_src>
import functools

import jax
import jax.numpy as jnp
from jax import lax
from jax.experimental import pallas as pl
from jax.experimental.pallas import tpu as pltpu


def _siamfc_kernel(zx_ref, w_ref, b_ref, o_ref, *,
                   KH, KW, WROW, BB, ZL, XL, L, JN, NXF, NO, Hzf, Wzf):
    """One grid step = BB batch items, fully fused backbone(z)+backbone(x)+xcorr head.

    zx_ref: (1, Cin, SEG)  lane-flat input: [z_0 .. z_{BB-1} | x_0 .. x_{BB-1} | zero pad],
                           every segment flattened with row stride WROW on the lane axis.
    w_ref : (KH*KW, Cout, Cin)  one (Cout, Cin) conv tap per spatial offset
    b_ref : (Cout, 1)
    o_ref : (1, BB, NO)    flat response maps (row stride WROW)
    """
    zx = zx_ref[0]                                    # (Cin, SEG)
    cout = w_ref.shape[1]

    # ---- shared backbone: one accumulation covers both streams and all BB items ----
    # tap (u, v) == lane shift u*WROW+v for every segment -> 9 sliced dots, no im2col.
    acc = jnp.zeros((cout, L), jnp.float32)
    for u in range(KH):
        for v in range(KW):
            s = u * WROW + v
            acc = acc + jnp.dot(w_ref[u * KW + v], zx[:, s:s + L],
                                preferred_element_type=jnp.float32)
    feat = jnp.maximum(acc + b_ref[...], 0.0)         # bias + ReLU once, (Cout, L)

    # ---- head: per-item cross-correlation ----
    xbase = BB * ZL
    rows = []
    for b in range(BB):                               # BB is 1 or 2 -> unrolled
        zf = feat[:, b * ZL: b * ZL + JN]             # (Cout, JN)  template features (flat)
        xf = feat[:, xbase + b * XL: xbase + b * XL + NXF]   # (Cout, NXF) search features
        # contract channels with one MXU dot: corr[j, q] = sum_co zf[co, j] * xf[co, q]
        corr = jnp.dot(zf.T, xf, preferred_element_type=jnp.float32)     # (JN, NXF)
        # skew-diagonal sum over the Hzf*Wzf template taps: resp[o] = sum_j corr[j, o + j]
        resp = jnp.zeros((1, NO), jnp.float32)
        for u in range(Hzf):
            for v in range(Wzf):
                j = u * WROW + v
                resp = resp + corr[j:j + 1, j:j + NO]
        rows.append(resp)
    o_ref[0] = jnp.concatenate(rows, axis=0)          # (BB, NO), lane-dense store


def _pick_steps(batch):
    """Grid steps: split the batch across TensorCores on multi-TC chips (v7x);
    collapse to a single fused step on single-TC chips (v5e / v6e)."""
    try:
        kind = jax.devices()[0].device_kind.lower()
    except Exception:
        kind = ""
    tc_per_chip = 2 if ("v7" in kind or "7x" in kind) else 1
    return tc_per_chip if (tc_per_chip > 1 and batch % tc_per_chip == 0) else 1


@functools.partial(jax.jit, static_argnames=("steps",))
def net_forward(z_nchw, x_nchw, conv_w_oihw, conv_b, *, steps=1):
    B, Cin, Hz, Wz = z_nchw.shape
    _, _, Hx, Wx = x_nchw.shape
    Cout, _, KH, KW = conv_w_oihw.shape
    assert Wz <= Wx and B % steps == 0

    Hzf, Wzf = Hz - KH + 1, Wz - KW + 1          # template feature map
    Hxf, Wxf = Hx - KH + 1, Wx - KW + 1          # search feature map
    Ho, Wo = Hxf - Hzf + 1, Wxf - Wzf + 1        # response map

    BB = B // steps                              # batch items per grid step
    WROW = Wx                                    # common row stride on the lane axis
    ZL = Hz * WROW                               # z segment length (rows padded Wz -> WROW)
    XL = Hx * WROW                               # x segment length
    JN = (Hzf - 1) * WROW + Wzf                  # template taps live in flat [0, JN)
    NO = Ho * WROW                               # flat response length (row stride WROW)
    NXF = (JN - 1) + NO                          # search-feature window needed per item
    MAXSHIFT = (KH - 1) * WROW + (KW - 1)        # largest conv lane shift
    L = BB * ZL + (BB - 1) * XL + NXF            # feature length actually needed
    SEG = ((L + MAXSHIFT + 127) // 128) * 128    # lane-aligned per-step segment

    # ---- wrapper-side layout plumbing (tiny, cheap XLA ops) ----
    z_pad = jnp.pad(z_nchw, ((0, 0), (0, 0), (0, 0), (0, WROW - Wz)))
    z_seg = z_pad.reshape(steps, BB, Cin, ZL).transpose(0, 2, 1, 3).reshape(steps, Cin, BB * ZL)
    x_seg = x_nchw.reshape(steps, BB, Cin, XL).transpose(0, 2, 1, 3).reshape(steps, Cin, BB * XL)
    pad = jnp.zeros((steps, Cin, SEG - BB * (ZL + XL)), z_nchw.dtype)
    zx = jnp.concatenate([z_seg, x_seg, pad], axis=-1)          # (steps, Cin, SEG)

    w_taps = jnp.transpose(conv_w_oihw, (2, 3, 0, 1)).reshape(KH * KW, Cout, Cin)
    b_col = conv_b.reshape(Cout, 1)

    kernel = functools.partial(
        _siamfc_kernel, KH=KH, KW=KW, WROW=WROW, BB=BB, ZL=ZL, XL=XL,
        L=L, JN=JN, NXF=NXF, NO=NO, Hzf=Hzf, Wzf=Wzf)

    resp = pl.pallas_call(
        kernel,
        out_shape=jax.ShapeDtypeStruct((steps, BB, NO), jnp.float32),
        grid=(steps,),
        in_specs=[
            pl.BlockSpec((1, Cin, SEG), lambda i: (i, 0, 0)),
            pl.BlockSpec((KH * KW, Cout, Cin), lambda i: (0, 0, 0)),
            pl.BlockSpec((Cout, 1), lambda i: (0, 0)),
        ],
        out_specs=pl.BlockSpec((1, BB, NO), lambda i: (i, 0, 0)),
        compiler_params=pltpu.CompilerParams(dimension_semantics=("parallel",)),
    )(zx, w_taps, b_col)

    # un-flatten the response: drop the row-stride padding columns
    return resp.reshape(B, Ho, WROW)[:, :, :Wo][:, None, :, :]


def _reference(z, x, w, b):
    """Pure-JAX reference of Net.forward for correctness checking."""
    dn = ("NCHW", "OIHW", "NCHW")

    def backbone(t):
        y = lax.conv_general_dilated(t, w, (1, 1), "VALID", dimension_numbers=dn,
                                     precision=lax.Precision.HIGHEST)
        return jax.nn.relu(y + b.reshape(1, -1, 1, 1))

    zf, xf = backbone(z), backbone(x)
    outs = []
    for i in range(z.shape[0]):
        outs.append(lax.conv_general_dilated(
            xf[i:i + 1], zf[i][None], (1, 1), "VALID", dimension_numbers=dn,
            precision=lax.Precision.HIGHEST))
    return jnp.concatenate(outs, axis=0)


if __name__ == "__main__":
    key = jax.random.PRNGKey(0)
    k_z, k_x, k_w, k_b = jax.random.split(key, 4)

    B, Cin, Cout, K = 2, 4, 8, 3
    Hz = Wz = 8      # exemplar (template) spatial size
    Hx = Wx = 16     # search-region spatial size

    z = jax.random.normal(k_z, (B, Cin, Hz, Wz), dtype=jnp.float32)     # NCHW
    x = jax.random.normal(k_x, (B, Cin, Hx, Wx), dtype=jnp.float32)     # NCHW
    conv_w = 0.05 * jax.random.normal(k_w, (Cout, Cin, K, K), dtype=jnp.float32)  # OIHW
    conv_b = 0.01 * jax.random.normal(k_b, (Cout,), dtype=jnp.float32)

    steps = _pick_steps(B)   # 2 on v7x (one item per TensorCore), 1 on v5e/v6e (fully fused)
    out = jax.block_until_ready(net_forward(z, x, conv_w, conv_b, steps=steps))

    # backbone: (2,4,8,8)->(2,8,6,6), (2,4,16,16)->(2,8,14,14); head -> (2,1,9,9)
    Ho = Wo = (Hx - K + 1) - (Hz - K + 1) + 1
    assert out.shape == (B, 1, Ho, Wo), out.shape

    ref = jax.block_until_ready(_reference(z, x, conv_w, conv_b))
    max_err = float(jnp.max(jnp.abs(out - ref)))
    assert max_err < 5e-3, f"max abs error vs reference: {max_err}"
    print("KERNEL_OK")
</pallas_src>

<mosaic_0001>
module attributes {stable_mosaic.version = 11 : i64} {
  func.func @_siamfc_kernel(%arg0: i32, %arg1: memref<1x4x896xf32, #tpu.memory_space<vmem>>, %arg2: memref<9x8x4xf32, #tpu.memory_space<vmem>>, %arg3: memref<8x1xf32, #tpu.memory_space<vmem>>, %arg4: memref<1x2x144xf32, #tpu.memory_space<vmem>>) attributes {dimension_semantics = [#tpu.dimension_semantics<parallel>], iteration_bounds = array<i64: 1>, scalar_prefetch = 0 : i64, scratch_operands = 0 : i64, tpu.core_type = #tpu.core_type<tc>, window_params = [{transform_indices = @transform_0, window_bounds = array<i64: 1, 4, 896>}, {pipeline_mode = #tpu.pipeline_mode<synchronous>, transform_indices = @transform_1, window_bounds = array<i64: 9, 8, 4>}, {pipeline_mode = #tpu.pipeline_mode<synchronous>, transform_indices = @transform_2, window_bounds = array<i64: 8, 1>}, {transform_indices = @transform_3, window_bounds = array<i64: 1, 2, 144>}]} {
    %c0 = arith.constant 0 : index
    %c0_0 = arith.constant 0 : index
    %c0_1 = arith.constant 0 : index
    %0 = vector.load %arg1[%c0, %c0_0, %c0_1] : memref<1x4x896xf32, #tpu.memory_space<vmem>>, vector<1x4x896xf32>
    %1 = vector.shape_cast %0 : vector<1x4x896xf32> to vector<4x896xf32>
    %cst = arith.constant 0.000000e+00 : f32
    %2 = vector.broadcast %cst : f32 to vector<8x741xf32>
    %c0_2 = arith.constant 0 : index
    %c0_3 = arith.constant 0 : index
    %c0_4 = arith.constant 0 : index
    %3 = vector.load %arg2[%c0_2, %c0_3, %c0_4] : memref<9x8x4xf32, #tpu.memory_space<vmem>>, vector<1x8x4xf32>
    %4 = vector.shape_cast %3 : vector<1x8x4xf32> to vector<8x4xf32>
    %5 = vector.extract_strided_slice %1 {offsets = [0, 0], sizes = [4, 741], strides = [1, 1]} : vector<4x896xf32> to vector<4x741xf32>
    %cst_5 = arith.constant dense<0.000000e+00> : vector<8x741xf32>
    %6 = tpu.matmul %4, %5, %cst_5 {dimension_numbers = #tpu.dot_dimension_numbers<[1], [0], [0], [1], [0, 0, 1, 1], [], []>} : vector<8x4xf32>, vector<4x741xf32>, vector<8x741xf32> -> vector<8x741xf32>
    %7 = arith.addf %2, %6 : vector<8x741xf32>
    %c1 = arith.constant 1 : index
    %c0_6 = arith.constant 0 : index
    %c0_7 = arith.constant 0 : index
    %8 = vector.load %arg2[%c1, %c0_6, %c0_7] : memref<9x8x4xf32, #tpu.memory_space<vmem>>, vector<1x8x4xf32>
    %9 = vector.shape_cast %8 : vector<1x8x4xf32> to vector<8x4xf32>
    %10 = vector.extract_strided_slice %1 {offsets = [0, 1], sizes = [4, 741], strides = [1, 1]} : vector<4x896xf32> to vector<4x741xf32>
    %cst_8 = arith.constant dense<0.000000e+00> : vector<8x741xf32>
    %11 = tpu.matmul %9, %10, %cst_8 {dimension_numbers = #tpu.dot_dimension_numbers<[1], [0], [0], [1], [0, 0, 1, 1], [], []>} : vector<8x4xf32>, vector<4x741xf32>, vector<8x741xf32> -> vector<8x741xf32>
    %12 = arith.addf %7, %11 : vector<8x741xf32>
    %c2 = arith.constant 2 : index
    %c0_9 = arith.constant 0 : index
    %c0_10 = arith.constant 0 : index
    %13 = vector.load %arg2[%c2, %c0_9, %c0_10] : memref<9x8x4xf32, #tpu.memory_space<vmem>>, vector<1x8x4xf32>
    %14 = vector.shape_cast %13 : vector<1x8x4xf32> to vector<8x4xf32>
    %15 = vector.extract_strided_slice %1 {offsets = [0, 2], sizes = [4, 741], strides = [1, 1]} : vector<4x896xf32> to vector<4x741xf32>
    %cst_11 = arith.constant dense<0.000000e+00> : vector<8x741xf32>
    %16 = tpu.matmul %14, %15, %cst_11 {dimension_numbers = #tpu.dot_dimension_numbers<[1], [0], [0], [1], [0, 0, 1, 1], [], []>} : vector<8x4xf32>, vector<4x741xf32>, vector<8x741xf32> -> vector<8x741xf32>
    %17 = arith.addf %12, %16 : vector<8x741xf32>
    %c3 = arith.constant 3 : index
    %c0_12 = arith.constant 0 : index
    %c0_13 = arith.constant 0 : index
    %18 = vector.load %arg2[%c3, %c0_12, %c0_13] : memref<9x8x4xf32, #tpu.memory_space<vmem>>, vector<1x8x4xf32>
    %19 = vector.shape_cast %18 : vector<1x8x4xf32> to vector<8x4xf32>
    %20 = vector.extract_strided_slice %1 {offsets = [0, 16], sizes = [4, 741], strides = [1, 1]} : vector<4x896xf32> to vector<4x741xf32>
    %cst_14 = arith.constant dense<0.000000e+00> : vector<8x741xf32>
    %21 = tpu.matmul %19, %20, %cst_14 {dimension_numbers = #tpu.dot_dimension_numbers<[1], [0], [0], [1], [0, 0, 1, 1], [], []>} : vector<8x4xf32>, vector<4x741xf32>, vector<8x741xf32> -> vector<8x741xf32>
    %22 = arith.addf %17, %21 : vector<8x741xf32>
    %c4 = arith.constant 4 : index
    %c0_15 = arith.constant 0 : index
    %c0_16 = arith.constant 0 : index
    %23 = vector.load %arg2[%c4, %c0_15, %c0_16] : memref<9x8x4xf32, #tpu.memory_space<vmem>>, vector<1x8x4xf32>
    %24 = vector.shape_cast %23 : vector<1x8x4xf32> to vector<8x4xf32>
    %25 = vector.extract_strided_slice %1 {offsets = [0, 17], sizes = [4, 741], strides = [1, 1]} : vector<4x896xf32> to vector<4x741xf32>
    %cst_17 = arith.constant dense<0.000000e+00> : vector<8x741xf32>
    %26 = tpu.matmul %24, %25, %cst_17 {dimension_numbers = #tpu.dot_dimension_numbers<[1], [0], [0], [1], [0, 0, 1, 1], [], []>} : vector<8x4xf32>, vector<4x741xf32>, vector<8x741xf32> -> vector<8x741xf32>
    %27 = arith.addf %22, %26 : vector<8x741xf32>
    %c5 = arith.constant 5 : index
    %c0_18 = arith.constant 0 : index
    %c0_19 = arith.constant 0 : index
    %28 = vector.load %arg2[%c5, %c0_18, %c0_19] : memref<9x8x4xf32, #tpu.memory_space<vmem>>, vector<1x8x4xf32>
    %29 = vector.shape_cast %28 : vector<1x8x4xf32> to vector<8x4xf32>
    %30 = vector.extract_strided_slice %1 {offsets = [0, 18], sizes = [4, 741], strides = [1, 1]} : vector<4x896xf32> to vector<4x741xf32>
    %cst_20 = arith.constant dense<0.000000e+00> : vector<8x741xf32>
    %31 = tpu.matmul %29, %30, %cst_20 {dimension_numbers = #tpu.dot_dimension_numbers<[1], [0], [0], [1], [0, 0, 1, 1], [], []>} : vector<8x4xf32>, vector<4x741xf32>, vector<8x741xf32> -> vector<8x741xf32>
    %32 = arith.addf %27, %31 : vector<8x741xf32>
    %c6 = arith.constant 6 : index
    %c0_21 = arith.constant 0 : index
    %c0_22 = arith.constant 0 : index
    %33 = vector.load %arg2[%c6, %c0_21, %c0_22] : memref<9x8x4xf32, #tpu.memory_space<vmem>>, vector<1x8x4xf32>
    %34 = vector.shape_cast %33 : vector<1x8x4xf32> to vector<8x4xf32>
    %35 = vector.extract_strided_slice %1 {offsets = [0, 32], sizes = [4, 741], strides = [1, 1]} : vector<4x896xf32> to vector<4x741xf32>
    %cst_23 = arith.constant dense<0.000000e+00> : vector<8x741xf32>
    %36 = tpu.matmul %34, %35, %cst_23 {dimension_numbers = #tpu.dot_dimension_numbers<[1], [0], [0], [1], [0, 0, 1, 1], [], []>} : vector<8x4xf32>, vector<4x741xf32>, vector<8x741xf32> -> vector<8x741xf32>
    %37 = arith.addf %32, %36 : vector<8x741xf32>
    %c7 = arith.constant 7 : index
    %c0_24 = arith.constant 0 : index
    %c0_25 = arith.constant 0 : index
    %38 = vector.load %arg2[%c7, %c0_24, %c0_25] : memref<9x8x4xf32, #tpu.memory_space<vmem>>, vector<1x8x4xf32>
    %39 = vector.shape_cast %38 : vector<1x8x4xf32> to vector<8x4xf32>
    %40 = vector.extract_strided_slice %1 {offsets = [0, 33], sizes = [4, 741], strides = [1, 1]} : vector<4x896xf32> to vector<4x741xf32>
    %cst_26 = arith.constant dense<0.000000e+00> : vector<8x741xf32>
    %41 = tpu.matmul %39, %40, %cst_26 {dimension_numbers = #tpu.dot_dimension_numbers<[1], [0], [0], [1], [0, 0, 1, 1], [], []>} : vector<8x4xf32>, vector<4x741xf32>, vector<8x741xf32> -> vector<8x741xf32>
    %42 = arith.addf %37, %41 : vector<8x741xf32>
    %c8 = arith.constant 8 : index
    %c0_27 = arith.constant 0 : index
    %c0_28 = arith.constant 0 : index
    %43 = vector.load %arg2[%c8, %c0_27, %c0_28] : memref<9x8x4xf32, #tpu.memory_space<vmem>>, vector<1x8x4xf32>
    %44 = vector.shape_cast %43 : vector<1x8x4xf32> to vector<8x4xf32>
    %45 = vector.extract_strided_slice %1 {offsets = [0, 34], sizes = [4, 741], strides = [1, 1]} : vector<4x896xf32> to vector<4x741xf32>
    %cst_29 = arith.constant dense<0.000000e+00> : vector<8x741xf32>
    %46 = tpu.matmul %44, %45, %cst_29 {dimension_numbers = #tpu.dot_dimension_numbers<[1], [0], [0], [1], [0, 0, 1, 1], [], []>} : vector<8x4xf32>, vector<4x741xf32>, vector<8x741xf32> -> vector<8x741xf32>
    %47 = arith.addf %42, %46 : vector<8x741xf32>
    %c0_30 = arith.constant 0 : index
    %c0_31 = arith.constant 0 : index
    %48 = vector.load %arg3[%c0_30, %c0_31] : memref<8x1xf32, #tpu.memory_space<vmem>>, vector<8x1xf32>
    %49 = vector.broadcast %48 : vector<8x1xf32> to vector<8x741xf32>
    %50 = arith.addf %47, %49 : vector<8x741xf32>
    %cst_32 = arith.constant 0.000000e+00 : f32
    %51 = vector.broadcast %cst_32 : f32 to vector<8x741xf32>
    %52 = arith.maximumf %50, %51 : vector<8x741xf32>
    %53 = vector.extract_strided_slice %52 {offsets = [0, 0], sizes = [8, 86], strides = [1, 1]} : vector<8x741xf32> to vector<8x86xf32>
    %54 = vector.extract_strided_slice %52 {offsets = [0, 256], sizes = [8, 229], strides = [1, 1]} : vector<8x741xf32> to vector<8x229xf32>
    %55 = tpu.transpose %53, [1, 0] : vector<8x86xf32> -> vector<86x8xf32>
    %cst_33 = arith.constant dense<0.000000e+00> : vector<86x229xf32>
    %56 = tpu.matmul %55, %54, %cst_33 {dimension_numbers = #tpu.dot_dimension_numbers<[1], [0], [0], [1], [0, 0, 1, 1], [], []>} : vector<86x8xf32>, vector<8x229xf32>, vector<86x229xf32> -> vector<86x229xf32>
    %cst_34 = arith.constant 0.000000e+00 : f32
    %57 = vector.broadcast %cst_34 : f32 to vector<1x144xf32>
    %58 = vector.extract_strided_slice %56 {offsets = [0, 0], sizes = [1, 144], strides = [1, 1]} : vector<86x229xf32> to vector<1x144xf32>
    %59 = arith.addf %57, %58 : vector<1x144xf32>
    %60 = vector.extract_strided_slice %56 {offsets = [1, 1], sizes = [1, 144], strides = [1, 1]} : vector<86x229xf32> to vector<1x144xf32>
    %61 = arith.addf %59, %60 : vector<1x144xf32>
    %62 = vector.extract_strided_slice %56 {offsets = [2, 2], sizes = [1, 144], strides = [1, 1]} : vector<86x229xf32> to vector<1x144xf32>
    %63 = arith.addf %61, %62 : vector<1x144xf32>
    %64 = vector.extract_strided_slice %56 {offsets = [3, 3], sizes = [1, 144], strides = [1, 1]} : vector<86x229xf32> to vector<1x144xf32>
    %65 = arith.addf %63, %64 : vector<1x144xf32>
    %66 = vector.extract_strided_slice %56 {offsets = [4, 4], sizes = [1, 144], strides = [1, 1]} : vector<86x229xf32> to vector<1x144xf32>
    %67 = arith.addf %65, %66 : vector<1x144xf32>
    %68 = vector.extract_strided_slice %56 {offsets = [5, 5], sizes = [1, 144], strides = [1, 1]} : vector<86x229xf32> to vector<1x144xf32>
    %69 = arith.addf %67, %68 : vector<1x144xf32>
    %70 = vector.extract_strided_slice %56 {offsets = [16, 16], sizes = [1, 144], strides = [1, 1]} : vector<86x229xf32> to vector<1x144xf32>
    %71 = arith.addf %69, %70 : vector<1x144xf32>
    %72 = vector.extract_strided_slice %56 {offsets = [17, 17], sizes = [1, 144], strides = [1, 1]} : vector<86x229xf32> to vector<1x144xf32>
    %73 = arith.addf %71, %72 : vector<1x144xf32>
    %74 = vector.extract_strided_slice %56 {offsets = [18, 18], sizes = [1, 144], strides = [1, 1]} : vector<86x229xf32> to vector<1x144xf32>
    %75 = arith.addf %73, %74 : vector<1x144xf32>
    %76 = vector.extract_strided_slice %56 {offsets = [19, 19], sizes = [1, 144], strides = [1, 1]} : vector<86x229xf32> to vector<1x144xf32>
    %77 = arith.addf %75, %76 : vector<1x144xf32>
    %78 = vector.extract_strided_slice %56 {offsets = [20, 20], sizes = [1, 144], strides = [1, 1]} : vector<86x229xf32> to vector<1x144xf32>
    %79 = arith.addf %77, %78 : vector<1x144xf32>
    %80 = vector.extract_strided_slice %56 {offsets = [21, 21], sizes = [1, 144], strides = [1, 1]} : vector<86x229xf32> to vector<1x144xf32>
    %81 = arith.addf %79, %80 : vector<1x144xf32>
    %82 = vector.extract_strided_slice %56 {offsets = [32, 32], sizes = [1, 144], strides = [1, 1]} : vector<86x229xf32> to vector<1x144xf32>
    %83 = arith.addf %81, %82 : vector<1x144xf32>
    %84 = vector.extract_strided_slice %56 {offsets = [33, 33], sizes = [1, 144], strides = [1, 1]} : vector<86x229xf32> to vector<1x144xf32>
    %85 = arith.addf %83, %84 : vector<1x144xf32>
    %86 = vector.extract_strided_slice %56 {offsets = [34, 34], sizes = [1, 144], strides = [1, 1]} : vector<86x229xf32> to vector<1x144xf32>
    %87 = arith.addf %85, %86 : vector<1x144xf32>
    %88 = vector.extract_strided_slice %56 {offsets = [35, 35], sizes = [1, 144], strides = [1, 1]} : vector<86x229xf32> to vector<1x144xf32>
    %89 = arith.addf %87, %88 : vector<1x144xf32>
    %90 = vector.extract_strided_slice %56 {offsets = [36, 36], sizes = [1, 144], strides = [1, 1]} : vector<86x229xf32> to vector<1x144xf32>
    %91 = arith.addf %89, %90 : vector<1x144xf32>
    %92 = vector.extract_strided_slice %56 {offsets = [37, 37], sizes = [1, 144], strides = [1, 1]} : vector<86x229xf32> to vector<1x144xf32>
    %93 = arith.addf %91, %92 : vector<1x144xf32>
    %94 = vector.extract_strided_slice %56 {offsets = [48, 48], sizes = [1, 144], strides = [1, 1]} : vector<86x229xf32> to vector<1x144xf32>
    %95 = arith.addf %93, %94 : vector<1x144xf32>
    %96 = vector.extract_strided_slice %56 {offsets = [49, 49], sizes = [1, 144], strides = [1, 1]} : vector<86x229xf32> to vector<1x144xf32>
    %97 = arith.addf %95, %96 : vector<1x144xf32>
    %98 = vector.extract_strided_slice %56 {offsets = [50, 50], sizes = [1, 144], strides = [1, 1]} : vector<86x229xf32> to vector<1x144xf32>
    %99 = arith.addf %97, %98 : vector<1x144xf32>
    %100 = vector.extract_strided_slice %56 {offsets = [51, 51], sizes = [1, 144], strides = [1, 1]} : vector<86x229xf32> to vector<1x144xf32>
    %101 = arith.addf %99, %100 : vector<1x144xf32>
    %102 = vector.extract_strided_slice %56 {offsets = [52, 52], sizes = [1, 144], strides = [1, 1]} : vector<86x229xf32> to vector<1x144xf32>
    %103 = arith.addf %101, %102 : vector<1x144xf32>
    %104 = vector.extract_strided_slice %56 {offsets = [53, 53], sizes = [1, 144], strides = [1, 1]} : vector<86x229xf32> to vector<1x144xf32>
    %105 = arith.addf %103, %104 : vector<1x144xf32>
    %106 = vector.extract_strided_slice %56 {offsets = [64, 64], sizes = [1, 144], strides = [1, 1]} : vector<86x229xf32> to vector<1x144xf32>
    %107 = arith.addf %105, %106 : vector<1x144xf32>
    %108 = vector.extract_strided_slice %56 {offsets = [65, 65], sizes = [1, 144], strides = [1, 1]} : vector<86x229xf32> to vector<1x144xf32>
    %109 = arith.addf %107, %108 : vector<1x144xf32>
    %110 = vector.extract_strided_slice %56 {offsets = [66, 66], sizes = [1, 144], strides = [1, 1]} : vector<86x229xf32> to vector<1x144xf32>
    %111 = arith.addf %109, %110 : vector<1x144xf32>
    %112 = vector.extract_strided_slice %56 {offsets = [67, 67], sizes = [1, 144], strides = [1, 1]} : vector<86x229xf32> to vector<1x144xf32>
    %113 = arith.addf %111, %112 : vector<1x144xf32>
    %114 = vector.extract_strided_slice %56 {offsets = [68, 68], sizes = [1, 144], strides = [1, 1]} : vector<86x229xf32> to vector<1x144xf32>
    %115 = arith.addf %113, %114 : vector<1x144xf32>
    %116 = vector.extract_strided_slice %56 {offsets = [69, 69], sizes = [1, 144], strides = [1, 1]} : vector<86x229xf32> to vector<1x144xf32>
    %117 = arith.addf %115, %116 : vector<1x144xf32>
    %118 = vector.extract_strided_slice %56 {offsets = [80, 80], sizes = [1, 144], strides = [1, 1]} : vector<86x229xf32> to vector<1x144xf32>
    %119 = arith.addf %117, %118 : vector<1x144xf32>
    %120 = vector.extract_strided_slice %56 {offsets = [81, 81], sizes = [1, 144], strides = [1, 1]} : vector<86x229xf32> to vector<1x144xf32>
    %121 = arith.addf %119, %120 : vector<1x144xf32>
    %122 = vector.extract_strided_slice %56 {offsets = [82, 82], sizes = [1, 144], strides = [1, 1]} : vector<86x229xf32> to vector<1x144xf32>
    %123 = arith.addf %121, %122 : vector<1x144xf32>
    %124 = vector.extract_strided_slice %56 {offsets = [83, 83], sizes = [1, 144], strides = [1, 1]} : vector<86x229xf32> to vector<1x144xf32>
    %125 = arith.addf %123, %124 : vector<1x144xf32>
    %126 = vector.extract_strided_slice %56 {offsets = [84, 84], sizes = [1, 144], strides = [1, 1]} : vector<86x229xf32> to vector<1x144xf32>
    %127 = arith.addf %125, %126 : vector<1x144xf32>
    %128 = vector.extract_strided_slice %56 {offsets = [85, 85], sizes = [1, 144], strides = [1, 1]} : vector<86x229xf32> to vector<1x144xf32>
    %129 = arith.addf %127, %128 : vector<1x144xf32>
    %130 = vector.extract_strided_slice %52 {offsets = [0, 128], sizes = [8, 86], strides = [1, 1]} : vector<8x741xf32> to vector<8x86xf32>
    %131 = vector.extract_strided_slice %52 {offsets = [0, 512], sizes = [8, 229], strides = [1, 1]} : vector<8x741xf32> to vector<8x229xf32>
    %132 = tpu.transpose %130, [1, 0] : vector<8x86xf32> -> vector<86x8xf32>
    %cst_35 = arith.constant dense<0.000000e+00> : vector<86x229xf32>
    %133 = tpu.matmul %132, %131, %cst_35 {dimension_numbers = #tpu.dot_dimension_numbers<[1], [0], [0], [1], [0, 0, 1, 1], [], []>} : vector<86x8xf32>, vector<8x229xf32>, vector<86x229xf32> -> vector<86x229xf32>
    %cst_36 = arith.constant 0.000000e+00 : f32
    %134 = vector.broadcast %cst_36 : f32 to vector<1x144xf32>
    %135 = vector.extract_strided_slice %133 {offsets = [0, 0], sizes = [1, 144], strides = [1, 1]} : vector<86x229xf32> to vector<1x144xf32>
    %136 = arith.addf %134, %135 : vector<1x144xf32>
    %137 = vector.extract_strided_slice %133 {offsets = [1, 1], sizes = [1, 144], strides = [1, 1]} : vector<86x229xf32> to vector<1x144xf32>
    %138 = arith.addf %136, %137 : vector<1x144xf32>
    %139 = vector.extract_strided_slice %133 {offsets = [2, 2], sizes = [1, 144], strides = [1, 1]} : vector<86x229xf32> to vector<1x144xf32>
    %140 = arith.addf %138, %139 : vector<1x144xf32>
    %141 = vector.extract_strided_slice %133 {offsets = [3, 3], sizes = [1, 144], strides = [1, 1]} : vector<86x229xf32> to vector<1x144xf32>
    %142 = arith.addf %140, %141 : vector<1x144xf32>
    %143 = vector.extract_strided_slice %133 {offsets = [4, 4], sizes = [1, 144], strides = [1, 1]} : vector<86x229xf32> to vector<1x144xf32>
    %144 = arith.addf %142, %143 : vector<1x144xf32>
    %145 = vector.extract_strided_slice %133 {offsets = [5, 5], sizes = [1, 144], strides = [1, 1]} : vector<86x229xf32> to vector<1x144xf32>
    %146 = arith.addf %144, %145 : vector<1x144xf32>
    %147 = vector.extract_strided_slice %133 {offsets = [16, 16], sizes = [1, 144], strides = [1, 1]} : vector<86x229xf32> to vector<1x144xf32>
    %148 = arith.addf %146, %147 : vector<1x144xf32>
    %149 = vector.extract_strided_slice %133 {offsets = [17, 17], sizes = [1, 144], strides = [1, 1]} : vector<86x229xf32> to vector<1x144xf32>
    %150 = arith.addf %148, %149 : vector<1x144xf32>
    %151 = vector.extract_strided_slice %133 {offsets = [18, 18], sizes = [1, 144], strides = [1, 1]} : vector<86x229xf32> to vector<1x144xf32>
    %152 = arith.addf %150, %151 : vector<1x144xf32>
    %153 = vector.extract_strided_slice %133 {offsets = [19, 19], sizes = [1, 144], strides = [1, 1]} : vector<86x229xf32> to vector<1x144xf32>
    %154 = arith.addf %152, %153 : vector<1x144xf32>
    %155 = vector.extract_strided_slice %133 {offsets = [20, 20], sizes = [1, 144], strides = [1, 1]} : vector<86x229xf32> to vector<1x144xf32>
    %156 = arith.addf %154, %155 : vector<1x144xf32>
    %157 = vector.extract_strided_slice %133 {offsets = [21, 21], sizes = [1, 144], strides = [1, 1]} : vector<86x229xf32> to vector<1x144xf32>
    %158 = arith.addf %156, %157 : vector<1x144xf32>
    %159 = vector.extract_strided_slice %133 {offsets = [32, 32], sizes = [1, 144], strides = [1, 1]} : vector<86x229xf32> to vector<1x144xf32>
    %160 = arith.addf %158, %159 : vector<1x144xf32>
    %161 = vector.extract_strided_slice %133 {offsets = [33, 33], sizes = [1, 144], strides = [1, 1]} : vector<86x229xf32> to vector<1x144xf32>
    %162 = arith.addf %160, %161 : vector<1x144xf32>
    %163 = vector.extract_strided_slice %133 {offsets = [34, 34], sizes = [1, 144], strides = [1, 1]} : vector<86x229xf32> to vector<1x144xf32>
    %164 = arith.addf %162, %163 : vector<1x144xf32>
    %165 = vector.extract_strided_slice %133 {offsets = [35, 35], sizes = [1, 144], strides = [1, 1]} : vector<86x229xf32> to vector<1x144xf32>
    %166 = arith.addf %164, %165 : vector<1x144xf32>
    %167 = vector.extract_strided_slice %133 {offsets = [36, 36], sizes = [1, 144], strides = [1, 1]} : vector<86x229xf32> to vector<1x144xf32>
    %168 = arith.addf %166, %167 : vector<1x144xf32>
    %169 = vector.extract_strided_slice %133 {offsets = [37, 37], sizes = [1, 144], strides = [1, 1]} : vector<86x229xf32> to vector<1x144xf32>
    %170 = arith.addf %168, %169 : vector<1x144xf32>
    %171 = vector.extract_strided_slice %133 {offsets = [48, 48], sizes = [1, 144], strides = [1, 1]} : vector<86x229xf32> to vector<1x144xf32>
    %172 = arith.addf %170, %171 : vector<1x144xf32>
    %173 = vector.extract_strided_slice %133 {offsets = [49, 49], sizes = [1, 144], strides = [1, 1]} : vector<86x229xf32> to vector<1x144xf32>
    %174 = arith.addf %172, %173 : vector<1x144xf32>
    %175 = vector.extract_strided_slice %133 {offsets = [50, 50], sizes = [1, 144], strides = [1, 1]} : vector<86x229xf32> to vector<1x144xf32>
    %176 = arith.addf %174, %175 : vector<1x144xf32>
    %177 = vector.extract_strided_slice %133 {offsets = [51, 51], sizes = [1, 144], strides = [1, 1]} : vector<86x229xf32> to vector<1x144xf32>
    %178 = arith.addf %176, %177 : vector<1x144xf32>
    %179 = vector.extract_strided_slice %133 {offsets = [52, 52], sizes = [1, 144], strides = [1, 1]} : vector<86x229xf32> to vector<1x144xf32>
    %180 = arith.addf %178, %179 : vector<1x144xf32>
    %181 = vector.extract_strided_slice %133 {offsets = [53, 53], sizes = [1, 144], strides = [1, 1]} : vector<86x229xf32> to vector<1x144xf32>
    %182 = arith.addf %180, %181 : vector<1x144xf32>
    %183 = vector.extract_strided_slice %133 {offsets = [64, 64], sizes = [1, 144], strides = [1, 1]} : vector<86x229xf32> to vector<1x144xf32>
    %184 = arith.addf %182, %183 : vector<1x144xf32>
    %185 = vector.extract_strided_slice %133 {offsets = [65, 65], sizes = [1, 144], strides = [1, 1]} : vector<86x229xf32> to vector<1x144xf32>
    %186 = arith.addf %184, %185 : vector<1x144xf32>
    %187 = vector.extract_strided_slice %133 {offsets = [66, 66], sizes = [1, 144], strides = [1, 1]} : vector<86x229xf32> to vector<1x144xf32>
    %188 = arith.addf %186, %187 : vector<1x144xf32>
    %189 = vector.extract_strided_slice %133 {offsets = [67, 67], sizes = [1, 144], strides = [1, 1]} : vector<86x229xf32> to vector<1x144xf32>
    %190 = arith.addf %188, %189 : vector<1x144xf32>
    %191 = vector.extract_strided_slice %133 {offsets = [68, 68], sizes = [1, 144], strides = [1, 1]} : vector<86x229xf32> to vector<1x144xf32>
    %192 = arith.addf %190, %191 : vector<1x144xf32>
    %193 = vector.extract_strided_slice %133 {offsets = [69, 69], sizes = [1, 144], strides = [1, 1]} : vector<86x229xf32> to vector<1x144xf32>
    %194 = arith.addf %192, %193 : vector<1x144xf32>
    %195 = vector.extract_strided_slice %133 {offsets = [80, 80], sizes = [1, 144], strides = [1, 1]} : vector<86x229xf32> to vector<1x144xf32>
    %196 = arith.addf %194, %195 : vector<1x144xf32>
    %197 = vector.extract_strided_slice %133 {offsets = [81, 81], sizes = [1, 144], strides = [1, 1]} : vector<86x229xf32> to vector<1x144xf32>
    %198 = arith.addf %196, %197 : vector<1x144xf32>
    %199 = vector.extract_strided_slice %133 {offsets = [82, 82], sizes = [1, 144], strides = [1, 1]} : vector<86x229xf32> to vector<1x144xf32>
    %200 = arith.addf %198, %199 : vector<1x144xf32>
    %201 = vector.extract_strided_slice %133 {offsets = [83, 83], sizes = [1, 144], strides = [1, 1]} : vector<86x229xf32> to vector<1x144xf32>
    %202 = arith.addf %200, %201 : vector<1x144xf32>
    %203 = vector.extract_strided_slice %133 {offsets = [84, 84], sizes = [1, 144], strides = [1, 1]} : vector<86x229xf32> to vector<1x144xf32>
    %204 = arith.addf %202, %203 : vector<1x144xf32>
    %205 = vector.extract_strided_slice %133 {offsets = [85, 85], sizes = [1, 144], strides = [1, 1]} : vector<86x229xf32> to vector<1x144xf32>
    %206 = arith.addf %204, %205 : vector<1x144xf32>
    %207 = tpu.concatenate %129, %206 in 0 : vector<1x144xf32>, vector<1x144xf32> -> vector<2x144xf32>
    %c0_37 = arith.constant 0 : index
    %c0_38 = arith.constant 0 : index
    %c0_39 = arith.constant 0 : index
    %208 = vector.load %arg4[%c0_37, %c0_38, %c0_39] : memref<1x2x144xf32, #tpu.memory_space<vmem>>, vector<1x2x144xf32>
    %209 = vector.shape_cast %208 : vector<1x2x144xf32> to vector<2x144xf32>
    %210 = vector.shape_cast %207 : vector<2x144xf32> to vector<1x2x144xf32>
    tpu.vector_store %arg4[%c0_37, %c0_38, %c0_39], %210 {strides = array<i32>} : memref<1x2x144xf32, #tpu.memory_space<vmem>>, vector<1x2x144xf32>,
    return
  }
  func.func @transform_0(%arg0: i32) -> (i32, i32, i32) {
    %c0_i32 = arith.constant 0 : i32
    %c0_i32_0 = arith.constant 0 : i32
    %c0_i32_1 = arith.constant 0 : i32
    return %arg0, %c0_i32, %c0_i32_0 : i32, i32, i32
  }
  func.func @transform_1(%arg0: i32) -> (i32, i32, i32) {
    %c0_i32 = arith.constant 0 : i32
    %c0_i32_0 = arith.constant 0 : i32
    %c0_i32_1 = arith.constant 0 : i32
    %c0_i32_2 = arith.constant 0 : i32
    return %c0_i32, %c0_i32_0, %c0_i32_1 : i32, i32, i32
  }
  func.func @transform_2(%arg0: i32) -> (i32, i32) {
    %c0_i32 = arith.constant 0 : i32
    %c0_i32_0 = arith.constant 0 : i32
    %c0_i32_1 = arith.constant 0 : i32
    return %c0_i32, %c0_i32_0 : i32, i32
  }
  func.func @transform_3(%arg0: i32) -> (i32, i32, i32) {
    %c0_i32 = arith.constant 0 : i32
    %c0_i32_0 = arith.constant 0 : i32
    %c0_i32_1 = arith.constant 0 : i32
    return %arg0, %c0_i32, %c0_i32_0 : i32, i32, i32
  }
}

</mosaic_0001>

<llo_original>
// kernel: net_forward.1
$region0: #{net_forward.1}
  #allocation0 [shape = 'u32[]', space=smem, size = 0x4, offset = 0x4, fixed_abs, tag = 'smem constant byte address 0x4 - core index']
  #allocation1 [shape = 'u32[144,128]{1,0:T(1,128)}', space=vmem, size = 0x12000, scoped, tag = 'internal scratch']
  %s0 = inlined_call_operand.vmem [shape: f32[1,4,896], index: 0, kind: input, shape index: {}]
  %s1 = inlined_call_operand.vmem [shape: f32[9,8,4], index: 1, kind: input, shape index: {}]
  %s2 = inlined_call_operand.vmem [shape: f32[8,1], index: 2, kind: input, shape index: {}]
  %s3 = inlined_call_operand.vmem [shape: f32[1,2,144], index: 3, kind: output, shape index: {}]
  %s4 = sld [smem:[#allocation0]]
  $region22: #{net_forward.1} parent=0
    _
  %s6 = ssub.s32 1, %s4
  %s7 = scalar_select 0, %s6, %s4
  // Predicated region
  $region2: #{net_forward.1} parent=0 // pred_check
    _
  $region3: #{net_forward.1} parent=0 // pred_check_branch
    %9 = sbr.rel (0) target = $region5
  $region4: #{net_forward.1} parent=0 // pred_region
    _
  $region5: #{net_forward.1} parent=0 // pred_fallthru
    _
  // Predicated region
  $region6: #{net_forward.1} parent=0 // pred_check
    _
  $region7: #{net_forward.1} parent=0 // pred_check_branch
    %11 = sbr.rel (0) target = $region9
  $region8: #{net_forward.1} parent=0 // pred_region
    _
  $region9: #{net_forward.1} parent=0 // pred_fallthru
    _
  // Predicated region
  $region10: #{net_forward.1} parent=0 // pred_check
    _
  $region11: #{net_forward.1} parent=0 // pred_check_branch
    %13 = sbr.rel (0) target = $region13
  $region12: #{net_forward.1} parent=0 // pred_region
    _
  $region13: #{net_forward.1} parent=0 // pred_fallthru
    _
  %v14 = vld [vmem:[%s0] sm:$0xff]
  %v15 = vld [vmem:[%s0 + $0x8] sm:$0xff]
  %v16 = vld [vmem:[%s0 + $0x10] sm:$0xff]
  %v17 = vld [vmem:[%s0 + $0x18] sm:$0xf]
  %v18 = vld [vmem:[%s1] sm:$0xff]
  %s19 = scalar_lea.vmem %s1, 8
  %v20 = vld [vmem:[%s19] sm:$0xff]
  %v24 = vcombine.high %v14, %v14
  %v25 = vcombine.high %v15, %v15
  %v26 = vcombine.high %v16, %v16
  %27 = vrot.lane.b32.xlu0 %v14, 127
  %v28 = vpop.permute.xlu0 %27
  %29 = vrot.lane.b32.xlu0 %v24, 127
  %v30 = vpop.permute.xlu0 %29
  %31 = vrot.lane.b32.xlu0 %v15, 127
  %v32 = vpop.permute.xlu0 %31
  %33 = vrot.lane.b32.xlu0 %v25, 127
  %v34 = vpop.permute.xlu0 %33
  %35 = vrot.lane.b32.xlu0 %v16, 127
  %v36 = vpop.permute.xlu0 %35
  %37 = vrot.lane.b32.xlu0 %v26, 127
  %v38 = vpop.permute.xlu0 %37
  %vm39 = vcmask 1039360
  %v40 = vsel %vm39, %v28, %v30
  %v41 = vsel %vm39, %v30, %v32
  %v42 = vsel %vm39, %v32, %v34
  %v43 = vsel %vm39, %v34, %v36
  %v44 = vsel %vm39, %v36, %v38
  %vm45 = vcmask 31744
  %v47 = vsel %vm45, %v20, 0
  %vm49 = vcmask 1043456
  %v50 = vsel %vm49, %v40, 0
  %v52 = vsel %vm49, %v41, 0
  %v54 = vsel %vm49, %v42, 0
  %v56 = vsel %vm49, %v43, 0
  %v58 = vsel %vm49, %v44, 0
  %v60 = vsel %vm49, %v38, 0
  %62 = vmatprep.subr.mxu0 %v52
  %63 = vmatpush1.msra.mxu0 %v50
  %64 = vmatprep.subr.mxu0 0.0
  %65 = vmatpush1.msra.mxu0 0.0
  %66 = vmatprep.subr.mxu0 0.0
  %67 = vmatpush1.msra.mxu0 0.0
  %68 = vmatprep.subr.mxu0 0.0
  %69 = vmatpush1.msra.mxu0 0.0
  %70 = vmatprep.subr.mxu0 0.0
  %71 = vmatpush1.msra.mxu0 0.0
  %72 = vmatprep.subr.mxu0 0.0
  %73 = vmatpush1.msra.mxu0 0.0
  %74 = vmatprep.subr.mxu0 0.0
  %75 = vmatpush1.msra.mxu0 0.0
  %76 = vmatprep.subr.mxu0 0.0
  %77 = vmatpush1.msra.mxu0 0.0
  %78 = vmatprep.subr.mxu0 0.0
  %79 = vmatpush1.msra.mxu0 0.0
  %80 = vmatprep.subr.mxu0 0.0
  %81 = vmatpush1.msra.mxu0 0.0
  %82 = vmatprep.subr.mxu0 0.0
  %83 = vmatpush1.msra.mxu0 0.0
  %84 = vmatprep.subr.mxu0 0.0
  %85 = vmatpush1.msra.mxu0 0.0
  %86 = vmatprep.subr.mxu0 0.0
  %87 = vmatpush1.msra.mxu0 0.0
  %88 = vmatprep.subr.mxu0 0.0
  %89 = vmatpush1.msra.mxu0 0.0
  %90 = vmatprep.subr.mxu0 0.0
  %91 = vmatpush1.msra.mxu0 0.0
  %92 = vmatprep.subr.mxu0 0.0
  %93 = vmatpush1.msra.mxu0 0.0
  %94 = vmatprep.subr.mxu0 0.0
  %95 = vmatpush1.msra.mxu0 0.0
  %96 = vmatprep.subr.mxu0 0.0
  %97 = vmatpush1.msra.mxu0 0.0
  %98 = vmatprep.subr.mxu0 0.0
  %99 = vmatpush1.msra.mxu0 0.0
  %100 = vmatprep.subr.mxu0 0.0
  %101 = vmatpush1.msra.mxu0 0.0
  %102 = vmatprep.subr.mxu0 0.0
  %103 = vmatpush1.msra.mxu0 0.0
  %104 = vmatprep.subr.mxu0 0.0
  %105 = vmatpush1.msra.mxu0 0.0
  %106 = vmatprep.subr.mxu0 0.0
  %107 = vmatpush1.msra.mxu0 0.0
  %108 = vmatprep.subr.mxu0 0.0
  %109 = vmatpush1.msra.mxu0 0.0
  %110 = vmatprep.subr.mxu0 0.0
  %111 = vmatpush1.msra.mxu0 0.0
  %112 = vmatprep.subr.mxu0 0.0
  %113 = vmatpush1.msra.mxu0 0.0
  %114 = vmatprep.subr.mxu0 0.0
  %115 = vmatpush1.msra.mxu0 0.0
  %116 = vmatprep.subr.mxu0 0.0
  %117 = vmatpush1.msra.mxu0 0.0
  %118 = vmatprep.subr.mxu0 0.0
  %119 = vmatpush1.msra.mxu0 0.0
  %120 = vmatprep.subr.mxu0 0.0
  %121 = vmatpush1.msra.mxu0 0.0
  %122 = vmatprep.subr.mxu0 0.0
  %123 = vmatpush1.msra.mxu0 0.0
  %124 = vmatprep.subr.mxu0 0.0
  %125 = vmatpush1.msra.mxu0 0.0
  %126 = vmatprep.mubr.f32.mxu0 0.0
  %127 = vmatmul.mubr.f32.gmra.mrb[0].mxu0 %v47
  %v128 = vpop.f32.mrb[0].mxu0
  %v129 = vadd.f32 0.0, %v128
  %v130 = vpop.f32.mrb[0].mxu0
  %v131 = vadd.f32 0.0, %v130
  %132 = vdwg.mxu0
  %133 = vmatprep.subr.mxu0 %v56
  %134 = vmatpush1.msra.mxu0 %v54
  %135 = vmatprep.subr.mxu0 0.0
  %136 = vmatpush1.msra.mxu0 0.0
  %137 = vmatprep.subr.mxu0 0.0
  %138 = vmatpush1.msra.mxu0 0.0
  %139 = vmatprep.subr.mxu0 0.0
  %140 = vmatpush1.msra.mxu0 0.0
  %141 = vmatprep.subr.mxu0 0.0
  %142 = vmatpush1.msra.mxu0 0.0
  %143 = vmatprep.subr.mxu0 0.0
  %144 = vmatpush1.msra.mxu0 0.0
  %145 = vmatprep.subr.mxu0 0.0
  %146 = vmatpush1.msra.mxu0 0.0
  %147 = vmatprep.subr.mxu0 0.0
  %148 = vmatpush1.msra.mxu0 0.0
  %149 = vmatprep.subr.mxu0 0.0
  %150 = vmatpush1.msra.mxu0 0.0
  %151 = vmatprep.subr.mxu0 0.0
  %152 = vmatpush1.msra.mxu0 0.0
  %153 = vmatprep.subr.mxu0 0.0
  %154 = vmatpush1.msra.mxu0 0.0
  %155 = vmatprep.subr.mxu0 0.0
  %156 = vmatpush1.msra.mxu0 0.0
  %157 = vmatprep.subr.mxu0 0.0
  %158 = vmatpush1.msra.mxu0 0.0
  %159 = vmatprep.subr.mxu0 0.0
  %160 = vmatpush1.msra.mxu0 0.0
  %161 = vmatprep.subr.mxu0 0.0
  %162 = vmatpush1.msra.mxu0 0.0
  %163 = vmatprep.subr.mxu0 0.0
  %164 = vmatpush1.msra.mxu0 0.0
  %165 = vmatprep.subr.mxu0 0.0
  %166 = vmatpush1.msra.mxu0 0.0
  %167 = vmatprep.subr.mxu0 0.0
  %168 = vmatpush1.msra.mxu0 0.0
  %169 = vmatprep.subr.mxu0 0.0
  %170 = vmatpush1.msra.mxu0 0.0
  %171 = vmatprep.subr.mxu0 0.0
  %172 = vmatpush1.msra.mxu0 0.0
  %173 = vmatprep.subr.mxu0 0.0
  %174 = vmatpush1.msra.mxu0 0.0
  %175 = vmatprep.subr.mxu0 0.0
  %176 = vmatpush1.msra.mxu0 0.0
  %177 = vmatprep.subr.mxu0 0.0
  %178 = vmatpush1.msra.mxu0 0.0
  %179 = vmatprep.subr.mxu0 0.0
  %180 = vmatpush1.msra.mxu0 0.0
  %181 = vmatprep.subr.mxu0 0.0
  %182 = vmatpush1.msra.mxu0 0.0
  %183 = vmatprep.subr.mxu0 0.0
  %184 = vmatpush1.msra.mxu0 0.0
  %185 = vmatprep.subr.mxu0 0.0
  %186 = vmatpush1.msra.mxu0 0.0
  %187 = vmatprep.subr.mxu0 0.0
  %188 = vmatpush1.msra.mxu0 0.0
  %189 = vmatprep.subr.mxu0 0.0
  %190 = vmatpush1.msra.mxu0 0.0
  %191 = vmatprep.subr.mxu0 0.0
  %192 = vmatpush1.msra.mxu0 0.0
  %193 = vmatprep.subr.mxu0 0.0
  %194 = vmatpush1.msra.mxu0 0.0
  %195 = vmatprep.subr.mxu0 0.0
  %196 = vmatpush1.msra.mxu0 0.0
  %197 = vmatprep.mubr.f32.mxu0 0.0
  %198 = vmatmul.mubr.f32.gmra.mrb[0].mxu0 %v47
  %v199 = vpop.f32.mrb[0].mxu0
  %v200 = vadd.f32 0.0, %v199
  %v201 = vpop.f32.mrb[0].mxu0
  %v202 = vadd.f32 0.0, %v201
  %203 = vdwg.mxu0
  %204 = vmatprep.subr.mxu0 %v60
  %205 = vmatpush1.msra.mxu0 %v58
  %206 = vmatprep.subr.mxu0 0.0
  %207 = vmatpush1.msra.mxu0 0.0
  %208 = vmatprep.subr.mxu0 0.0
  %209 = vmatpush1.msra.mxu0 0.0
  %210 = vmatprep.subr.mxu0 0.0
  %211 = vmatpush1.msra.mxu0 0.0
  %212 = vmatprep.subr.mxu0 0.0
  %213 = vmatpush1.msra.mxu0 0.0
  %214 = vmatprep.subr.mxu0 0.0
  %215 = vmatpush1.msra.mxu0 0.0
  %216 = vmatprep.subr.mxu0 0.0
  %217 = vmatpush1.msra.mxu0 0.0
  %218 = vmatprep.subr.mxu0 0.0
  %219 = vmatpush1.msra.mxu0 0.0
  %220 = vmatprep.subr.mxu0 0.0
  %221 = vmatpush1.msra.mxu0 0.0
  %222 = vmatprep.subr.mxu0 0.0
  %223 = vmatpush1.msra.mxu0 0.0
  %224 = vmatprep.subr.mxu0 0.0
  %225 = vmatpush1.msra.mxu0 0.0
  %226 = vmatprep.subr.mxu0 0.0
  %227 = vmatpush1.msra.mxu0 0.0
  %228 = vmatprep.subr.mxu0 0.0
  %229 = vmatpush1.msra.mxu0 0.0
  %230 = vmatprep.subr.mxu0 0.0
  %231 = vmatpush1.msra.mxu0 0.0
  %232 = vmatprep.subr.mxu0 0.0
  %233 = vmatpush1.msra.mxu0 0.0
  %234 = vmatprep.subr.mxu0 0.0
  %235 = vmatpush1.msra.mxu0 0.0
  %236 = vmatprep.subr.mxu0 0.0
  %237 = vmatpush1.msra.mxu0 0.0
  %238 = vmatprep.subr.mxu0 0.0
  %239 = vmatpush1.msra.mxu0 0.0
  %240 = vmatprep.subr.mxu0 0.0
  %241 = vmatpush1.msra.mxu0 0.0
  %242 = vmatprep.subr.mxu0 0.0
  %243 = vmatpush1.msra.mxu0 0.0
  %244 = vmatprep.subr.mxu0 0.0
  %245 = vmatpush1.msra.mxu0 0.0
  %246 = vmatprep.subr.mxu0 0.0
  %247 = vmatpush1.msra.mxu0 0.0
  %248 = vmatprep.subr.mxu0 0.0
  %249 = vmatpush1.msra.mxu0 0.0
  %250 = vmatprep.subr.mxu0 0.0
  %251 = vmatpush1.msra.mxu0 0.0
  %252 = vmatprep.subr.mxu0 0.0
  %253 = vmatpush1.msra.mxu0 0.0
  %254 = vmatprep.subr.mxu0 0.0
  %255 = vmatpush1.msra.mxu0 0.0
  %256 = vmatprep.subr.mxu0 0.0
  %257 = vmatpush1.msra.mxu0 0.0
  %258 = vmatprep.subr.mxu0 0.0
  %259 = vmatpush1.msra.mxu0 0.0
  %260 = vmatprep.subr.mxu0 0.0
  %261 = vmatpush1.msra.mxu0 0.0
  %262 = vmatprep.subr.mxu0 0.0
  %263 = vmatpush1.msra.mxu0 0.0
  %264 = vmatprep.subr.mxu0 0.0
  %265 = vmatpush1.msra.mxu0 0.0
  %266 = vmatprep.subr.mxu0 0.0
  %267 = vmatpush1.msra.mxu0 0.0
  %268 = vmatprep.mubr.f32.mxu0 0.0
  %269 = vmatmul.mubr.f32.gmra.mrb[0].mxu0 %v47
  %v270 = vpop.f32.mrb[0].mxu0
  %v271 = vadd.f32 0.0, %v270
  %v272 = vpop.f32.mrb[0].mxu0
  %v273 = vadd.f32 0.0, %v272
  %274 = vdwg.mxu0
  %v276 = vsel %vm45, %v18, 0
  %v278 = vsel %vm49, %v14, 0
  %v280 = vsel %vm49, %v24, 0
  %v282 = vsel %vm49, %v15, 0
  %v284 = vsel %vm49, %v25, 0
  %v286 = vsel %vm49, %v16, 0
  %v288 = vsel %vm49, %v26, 0
  %290 = vmatprep.subr.mxu0 %v280
  %291 = vmatpush1.msra.mxu0 %v278
  %292 = vmatprep.subr.mxu0 0.0
  %293 = vmatpush1.msra.mxu0 0.0
  %294 = vmatprep.subr.mxu0 0.0
  %295 = vmatpush1.msra.mxu0 0.0
  %296 = vmatprep.subr.mxu0 0.0
  %297 = vmatpush1.msra.mxu0 0.0
  %298 = vmatprep.subr.mxu0 0.0
  %299 = vmatpush1.msra.mxu0 0.0
  %300 = vmatprep.subr.mxu0 0.0
  %301 = vmatpush1.msra.mxu0 0.0
  %302 = vmatprep.subr.mxu0 0.0
  %303 = vmatpush1.msra.mxu0 0.0
  %304 = vmatprep.subr.mxu0 0.0
  %305 = vmatpush1.msra.mxu0 0.0
  %306 = vmatprep.subr.mxu0 0.0
  %307 = vmatpush1.msra.mxu0 0.0
  %308 = vmatprep.subr.mxu0 0.0
  %309 = vmatpush1.msra.mxu0 0.0
  %310 = vmatprep.subr.mxu0 0.0
  %311 = vmatpush1.msra.mxu0 0.0
  %312 = vmatprep.subr.mxu0 0.0
  %313 = vmatpush1.msra.mxu0 0.0
  %314 = vmatprep.subr.mxu0 0.0
  %315 = vmatpush1.msra.mxu0 0.0
  %316 = vmatprep.subr.mxu0 0.0
  %317 = vmatpush1.msra.mxu0 0.0
  %318 = vmatprep.subr.mxu0 0.0
  %319 = vmatpush1.msra.mxu0 0.0
  %320 = vmatprep.subr.mxu0 0.0
  %321 = vmatpush1.msra.mxu0 0.0
  %322 = vmatprep.subr.mxu0 0.0
  %323 = vmatpush1.msra.mxu0 0.0
  %324 = vmatprep.subr.mxu0 0.0
  %325 = vmatpush1.msra.mxu0 0.0
  %326 = vmatprep.subr.mxu0 0.0
  %327 = vmatpush1.msra.mxu0 0.0
  %328 = vmatprep.subr.mxu0 0.0
  %329 = vmatpush1.msra.mxu0 0.0
  %330 = vmatprep.subr.mxu0 0.0
  %331 = vmatpush1.msra.mxu0 0.0
  %332 = vmatprep.subr.mxu0 0.0
  %333 = vmatpush1.msra.mxu0 0.0
  %334 = vmatprep.subr.mxu0 0.0
  %335 = vmatpush1.msra.mxu0 0.0
  %336 = vmatprep.subr.mxu0 0.0
  %337 = vmatpush1.msra.mxu0 0.0
  %338 = vmatprep.subr.mxu0 0.0
  %339 = vmatpush1.msra.mxu0 0.0
  %340 = vmatprep.subr.mxu0 0.0
  %341 = vmatpush1.msra.mxu0 0.0
  %342 = vmatprep.subr.mxu0 0.0
  %343 = vmatpush1.msra.mxu0 0.0
  %344 = vmatprep.subr.mxu0 0.0
  %345 = vmatpush1.msra.mxu0 0.0
  %346 = vmatprep.subr.mxu0 0.0
  %347 = vmatpush1.msra.mxu0 0.0
  %348 = vmatprep.subr.mxu0 0.0
  %349 = vmatpush1.msra.mxu0 0.0
  %350 = vmatprep.subr.mxu0 0.0
  %351 = vmatpush1.msra.mxu0 0.0
  %352 = vmatprep.subr.mxu0 0.0
  %353 = vmatpush1.msra.mxu0 0.0
  %354 = vmatprep.mubr.f32.mxu0 0.0
  %355 = vmatmul.mubr.f32.gmra.mrb[0].mxu0 %v276
  %v356 = vpop.f32.mrb[0].mxu0
  %v357 = vadd.f32 %v129, %v356
  %v358 = vpop.f32.mrb[0].mxu0
  %v359 = vadd.f32 %v131, %v358
  %360 = vdwg.mxu0
  %361 = vmatprep.subr.mxu0 %v284
  %362 = vmatpush1.msra.mxu0 %v282
  %363 = vmatprep.subr.mxu0 0.0
  %364 = vmatpush1.msra.mxu0 0.0
  %365 = vmatprep.subr.mxu0 0.0
  %366 = vmatpush1.msra.mxu0 0.0
  %367 = vmatprep.subr.mxu0 0.0
  %368 = vmatpush1.msra.mxu0 0.0
  %369 = vmatprep.subr.mxu0 0.0
  %370 = vmatpush1.msra.mxu0 0.0
  %371 = vmatprep.subr.mxu0 0.0
  %372 = vmatpush1.msra.mxu0 0.0
  %373 = vmatprep.subr.mxu0 0.0
  %374 = vmatpush1.msra.mxu0 0.0
  %375 = vmatprep.subr.mxu0 0.0
  %376 = vmatpush1.msra.mxu0 0.0
  %377 = vmatprep.subr.mxu0 0.0
  %378 = vmatpush1.msra.mxu0 0.0
  %379 = vmatprep.subr.mxu0 0.0
  %380 = vmatpush1.msra.mxu0 0.0
  %381 = vmatprep.subr.mxu0 0.0
  %382 = vmatpush1.msra.mxu0 0.0
  %383 = vmatprep.subr.mxu0 0.0
  %384 = vmatpush1.msra.mxu0 0.0
  %385 = vmatprep.subr.mxu0 0.0
  %386 = vmatpush1.msra.mxu0 0.0
  %387 = vmatprep.subr.mxu0 0.0
  %388 = vmatpush1.msra.mxu0 0.0
  %389 = vmatprep.subr.mxu0 0.0
  %390 = vmatpush1.msra.mxu0 0.0
  %391 = vmatprep.subr.mxu0 0.0
  %392 = vmatpush1.msra.mxu0 0.0
  %393 = vmatprep.subr.mxu0 0.0
  %394 = vmatpush1.msra.mxu0 0.0
  %395 = vmatprep.subr.mxu0 0.0
  %396 = vmatpush1.msra.mxu0 0.0
  %397 = vmatprep.subr.mxu0 0.0
  %398 = vmatpush1.msra.mxu0 0.0
  %399 = vmatprep.subr.mxu0 0.0
  %400 = vmatpush1.msra.mxu0 0.0
  %401 = vmatprep.subr.mxu0 0.0
  %402 = vmatpush1.msra.mxu0 0.0
  %403 = vmatprep.subr.mxu0 0.0
  %404 = vmatpush1.msra.mxu0 0.0
  %405 = vmatprep.subr.mxu0 0.0
  %406 = vmatpush1.msra.mxu0 0.0
  %407 = vmatprep.subr.mxu0 0.0
  %408 = vmatpush1.msra.mxu0 0.0
  %409 = vmatprep.subr.mxu0 0.0
  %410 = vmatpush1.msra.mxu0 0.0
  %411 = vmatprep.subr.mxu0 0.0
  %412 = vmatpush1.msra.mxu0 0.0
  %413 = vmatprep.subr.mxu0 0.0
  %414 = vmatpush1.msra.mxu0 0.0
  %415 = vmatprep.subr.mxu0 0.0
  %416 = vmatpush1.msra.mxu0 0.0
  %417 = vmatprep.subr.mxu0 0.0
  %418 = vmatpush1.msra.mxu0 0.0
  %419 = vmatprep.subr.mxu0 0.0
  %420 = vmatpush1.msra.mxu0 0.0
  %421 = vmatprep.subr.mxu0 0.0
  %422 = vmatpush1.msra.mxu0 0.0
  %423 = vmatprep.subr.mxu0 0.0
  %424 = vmatpush1.msra.mxu0 0.0
  %425 = vmatprep.mubr.f32.mxu0 0.0
  %426 = vmatmul.mubr.f32.gmra.mrb[0].mxu0 %v276
  %v427 = vpop.f32.mrb[0].mxu0
  %v428 = vadd.f32 %v200, %v427
  %v429 = vpop.f32.mrb[0].mxu0
  %v430 = vadd.f32 %v202, %v429
  %431 = vdwg.mxu0
  %432 = vmatprep.subr.mxu0 %v288
  %433 = vmatpush1.msra.mxu0 %v286
  %434 = vmatprep.subr.mxu0 0.0
  %435 = vmatpush1.msra.mxu0 0.0
  %436 = vmatprep.subr.mxu0 0.0
  %437 = vmatpush1.msra.mxu0 0.0
  %438 = vmatprep.subr.mxu0 0.0
  %439 = vmatpush1.msra.mxu0 0.0
  %440 = vmatprep.subr.mxu0 0.0
  %441 = vmatpush1.msra.mxu0 0.0
  %442 = vmatprep.subr.mxu0 0.0
  %443 = vmatpush1.msra.mxu0 0.0
  %444 = vmatprep.subr.mxu0 0.0
  %445 = vmatpush1.msra.mxu0 0.0
  %446 = vmatprep.subr.mxu0 0.0
  %447 = vmatpush1.msra.mxu0 0.0
  %448 = vmatprep.subr.mxu0 0.0
  %449 = vmatpush1.msra.mxu0 0.0
  %450 = vmatprep.subr.mxu0 0.0
  %451 = vmatpush1.msra.mxu0 0.0
  %452 = vmatprep.subr.mxu0 0.0
  %453 = vmatpush1.msra.mxu0 0.0
  %454 = vmatprep.subr.mxu0 0.0
  %455 = vmatpush1.msra.mxu0 0.0
  %456 = vmatprep.subr.mxu0 0.0
  %457 = vmatpush1.msra.mxu0 0.0
  %458 = vmatprep.subr.mxu0 0.0
  %459 = vmatpush1.msra.mxu0 0.0
  %460 = vmatprep.subr.mxu0 0.0
  %461 = vmatpush1.msra.mxu0 0.0
  %462 = vmatprep.subr.mxu0 0.0
  %463 = vmatpush1.msra.mxu0 0.0
  %464 = vmatprep.subr.mxu0 0.0
  %465 = vmatpush1.msra.mxu0 0.0
  %466 = vmatprep.subr.mxu0 0.0
  %467 = vmatpush1.msra.mxu0 0.0
  %468 = vmatprep.subr.mxu0 0.0
  %469 = vmatpush1.msra.mxu0 0.0
  %470 = vmatprep.subr.mxu0 0.0
  %471 = vmatpush1.msra.mxu0 0.0
  %472 = vmatprep.subr.mxu0 0.0
  %473 = vmatpush1.msra.mxu0 0.0
  %474 = vmatprep.subr.mxu0 0.0
  %475 = vmatpush1.msra.mxu0 0.0
  %476 = vmatprep.subr.mxu0 0.0
  %477 = vmatpush1.msra.mxu0 0.0
  %478 = vmatprep.subr.mxu0 0.0
  %479 = vmatpush1.msra.mxu0 0.0
  %480 = vmatprep.subr.mxu0 0.0
  %481 = vmatpush1.msra.mxu0 0.0
  %482 = vmatprep.subr.mxu0 0.0
  %483 = vmatpush1.msra.mxu0 0.0
  %484 = vmatprep.subr.mxu0 0.0
  %485 = vmatpush1.msra.mxu0 0.0
  %486 = vmatprep.subr.mxu0 0.0
  %487 = vmatpush1.msra.mxu0 0.0
  %488 = vmatprep.subr.mxu0 0.0
  %489 = vmatpush1.msra.mxu0 0.0
  %490 = vmatprep.subr.mxu0 0.0
  %491 = vmatpush1.msra.mxu0 0.0
  %492 = vmatprep.subr.mxu0 0.0
  %493 = vmatpush1.msra.mxu0 0.0
  %494 = vmatprep.subr.mxu0 0.0
  %495 = vmatpush1.msra.mxu0 0.0
  %496 = vmatprep.mubr.f32.mxu0 0.0
  %497 = vmatmul.mubr.f32.gmra.mrb[0].mxu0 %v276
  %v498 = vpop.f32.mrb[0].mxu0
  %v499 = vadd.f32 %v271, %v498
  %v500 = vpop.f32.mrb[0].mxu0
  %v501 = vadd.f32 %v273, %v500
  %502 = vdwg.mxu0
  %s503 = scalar_lea.vmem %s1, 16
  %v504 = vld [vmem:[%s503] sm:$0xff]
  %505 = vrot.lane.b32.xlu0 %v14, 126
  %v506 = vpop.permute.xlu0 %505
  %507 = vrot.lane.b32.xlu0 %v24, 126
  %v508 = vpop.permute.xlu0 %507
  %509 = vrot.lane.b32.xlu0 %v15, 126
  %v510 = vpop.permute.xlu0 %509
  %511 = vrot.lane.b32.xlu0 %v25, 126
  %v512 = vpop.permute.xlu0 %511
  %513 = vrot.lane.b32.xlu0 %v16, 126
  %v514 = vpop.permute.xlu0 %513
  %515 = vrot.lane.b32.xlu0 %v26, 126
  %v516 = vpop.permute.xlu0 %515
  %vm517 = vcmask 1031168
  %v518 = vsel %vm517, %v506, %v508
  %v519 = vsel %vm517, %v508, %v510
  %v520 = vsel %vm517, %v510, %v512
  %v521 = vsel %vm517, %v512, %v514
  %v522 = vsel %vm517, %v514, %v516
  %v524 = vsel %vm45, %v504, 0
  %v526 = vsel %vm49, %v518, 0
  %v528 = vsel %vm49, %v519, 0
  %v530 = vsel %vm49, %v520, 0
  %v532 = vsel %vm49, %v521, 0
  %v534 = vsel %vm49, %v522, 0
  %v536 = vsel %vm49, %v516, 0
  %538 = vmatprep.subr.mxu0 %v528
  %539 = vmatpush1.msra.mxu0 %v526
  %540 = vmatprep.subr.mxu0 0.0
  %541 = vmatpush1.msra.mxu0 0.0
  %542 = vmatprep.subr.mxu0 0.0
  %543 = vmatpush1.msra.mxu0 0.0
  %544 = vmatprep.subr.mxu0 0.0
  %545 = vmatpush1.msra.mxu0 0.0
  %546 = vmatprep.subr.mxu0 0.0
  %547 = vmatpush1.msra.mxu0 0.0
  %548 = vmatprep.subr.mxu0 0.0
  %549 = vmatpush1.msra.mxu0 0.0
  %550 = vmatprep.subr.mxu0 0.0
  %551 = vmatpush1.msra.mxu0 0.0
  %552 = vmatprep.subr.mxu0 0.0
  %553 = vmatpush1.msra.mxu0 0.0
  %554 = vmatprep.subr.mxu0 0.0
  %555 = vmatpush1.msra.mxu0 0.0
  %556 = vmatprep.subr.mxu0 0.0
  %557 = vmatpush1.msra.mxu0 0.0
  %558 = vmatprep.subr.mxu0 0.0
  %559 = vmatpush1.msra.mxu0 0.0
  %560 = vmatprep.subr.mxu0 0.0
  %561 = vmatpush1.msra.mxu0 0.0
  %562 = vmatprep.subr.mxu0 0.0
  %563 = vmatpush1.msra.mxu0 0.0
  %564 = vmatprep.subr.mxu0 0.0
  %565 = vmatpush1.msra.mxu0 0.0
  %566 = vmatprep.subr.mxu0 0.0
  %567 = vmatpush1.msra.mxu0 0.0
  %568 = vmatprep.subr.mxu0 0.0
  %569 = vmatpush1.msra.mxu0 0.0
  %570 = vmatprep.subr.mxu0 0.0
  %571 = vmatpush1.msra.mxu0 0.0
  %572 = vmatprep.subr.mxu0 0.0
  %573 = vmatpush1.msra.mxu0 0.0
  %574 = vmatprep.subr.mxu0 0.0
  %575 = vmatpush1.msra.mxu0 0.0
  %576 = vmatprep.subr.mxu0 0.0
  %577 = vmatpush1.msra.mxu0 0.0
  %578 = vmatprep.subr.mxu0 0.0
  %579 = vmatpush1.msra.mxu0 0.0
  %580 = vmatprep.subr.mxu0 0.0
  %581 = vmatpush1.msra.mxu0 0.0
  %582 = vmatprep.subr.mxu0 0.0
  %583 = vmatpush1.msra.mxu0 0.0
  %584 = vmatprep.subr.mxu0 0.0
  %585 = vmatpush1.msra.mxu0 0.0
  %586 = vmatprep.subr.mxu0 0.0
  %587 = vmatpush1.msra.mxu0 0.0
  %588 = vmatprep.subr.mxu0 0.0
  %589 = vmatpush1.msra.mxu0 0.0
  %590 = vmatprep.subr.mxu0 0.0
  %591 = vmatpush1.msra.mxu0 0.0
  %592 = vmatprep.subr.mxu0 0.0
  %593 = vmatpush1.msra.mxu0 0.0
  %594 = vmatprep.subr.mxu0 0.0
  %595 = vmatpush1.msra.mxu0 0.0
  %596 = vmatprep.subr.mxu0 0.0
  %597 = vmatpush1.msra.mxu0 0.0
  %598 = vmatprep.subr.mxu0 0.0
  %599 = vmatpush1.msra.mxu0 0.0
  %600 = vmatprep.subr.mxu0 0.0
  %601 = vmatpush1.msra.mxu0 0.0
  %602 = vmatprep.mubr.f32.mxu0 0.0
  %603 = vmatmul.mubr.f32.gmra.mrb[0].mxu0 %v524
  %v604 = vpop.f32.mrb[0].mxu0
  %v605 = vadd.f32 0.0, %v604
  %v606 = vpop.f32.mrb[0].mxu0
  %v607 = vadd.f32 0.0, %v606
  %608 = vdwg.mxu0
  %609 = vmatprep.subr.mxu0 %v532
  %610 = vmatpush1.msra.mxu0 %v530
  %611 = vmatprep.subr.mxu0 0.0
  %612 = vmatpush1.msra.mxu0 0.0
  %613 = vmatprep.subr.mxu0 0.0
  %614 = vmatpush1.msra.mxu0 0.0
  %615 = vmatprep.subr.mxu0 0.0
  %616 = vmatpush1.msra.mxu0 0.0
  %617 = vmatprep.subr.mxu0 0.0
  %618 = vmatpush1.msra.mxu0 0.0
  %619 = vmatprep.subr.mxu0 0.0
  %620 = vmatpush1.msra.mxu0 0.0
  %621 = vmatprep.subr.mxu0 0.0
  %622 = vmatpush1.msra.mxu0 0.0
  %623 = vmatprep.subr.mxu0 0.0
  %624 = vmatpush1.msra.mxu0 0.0
  %625 = vmatprep.subr.mxu0 0.0
  %626 = vmatpush1.msra.mxu0 0.0
  %627 = vmatprep.subr.mxu0 0.0
  %628 = vmatpush1.msra.mxu0 0.0
  %629 = vmatprep.subr.mxu0 0.0
  %630 = vmatpush1.msra.mxu0 0.0
  %631 = vmatprep.subr.mxu0 0.0
  %632 = vmatpush1.msra.mxu0 0.0
  %633 = vmatprep.subr.mxu0 0.0
  %634 = vmatpush1.msra.mxu0 0.0
  %635 = vmatprep.subr.mxu0 0.0
  %636 = vmatpush1.msra.mxu0 0.0
  %637 = vmatprep.subr.mxu0 0.0
  %638 = vmatpush1.msra.mxu0 0.0
  %639 = vmatprep.subr.mxu0 0.0
  %640 = vmatpush1.msra.mxu0 0.0
  %641 = vmatprep.subr.mxu0 0.0
  %642 = vmatpush1.msra.mxu0 0.0
  %643 = vmatprep.subr.mxu0 0.0
  %644 = vmatpush1.msra.mxu0 0.0
  %645 = vmatprep.subr.mxu0 0.0
  %646 = vmatpush1.msra.mxu0 0.0
  %647 = vmatprep.subr.mxu0 0.0
  %648 = vmatpush1.msra.mxu0 0.0
  %649 = vmatprep.subr.mxu0 0.0
  %650 = vmatpush1.msra.mxu0 0.0
  %651 = vmatprep.subr.mxu0 0.0
  %652 = vmatpush1.msra.mxu0 0.0
  %653 = vmatprep.subr.mxu0 0.0
  %654 = vmatpush1.msra.mxu0 0.0
  %655 = vmatprep.subr.mxu0 0.0
  %656 = vmatpush1.msra.mxu0 0.0
  %657 = vmatprep.subr.mxu0 0.0
  %658 = vmatpush1.msra.mxu0 0.0
  %659 = vmatprep.subr.mxu0 0.0
  %660 = vmatpush1.msra.mxu0 0.0
  %661 = vmatprep.subr.mxu0 0.0
  %662 = vmatpush1.msra.mxu0 0.0
  %663 = vmatprep.subr.mxu0 0.0
  %664 = vmatpush1.msra.mxu0 0.0
  %665 = vmatprep.subr.mxu0 0.0
  %666 = vmatpush1.msra.mxu0 0.0
  %667 = vmatprep.subr.mxu0 0.0
  %668 = vmatpush1.msra.mxu0 0.0
  %669 = vmatprep.subr.mxu0 0.0
  %670 = vmatpush1.msra.mxu0 0.0
  %671 = vmatprep.subr.mxu0 0.0
  %672 = vmatpush1.msra.mxu0 0.0
  %673 = vmatprep.mubr.f32.mxu0 0.0
  %674 = vmatmul.mubr.f32.gmra.mrb[0].mxu0 %v524
  %v675 = vpop.f32.mrb[0].mxu0
  %v676 = vadd.f32 0.0, %v675
  %v677 = vpop.f32.mrb[0].mxu0
  %v678 = vadd.f32 0.0, %v677
  %679 = vdwg.mxu0
  %680 = vmatprep.subr.mxu0 %v536
  %681 = vmatpush1.msra.mxu0 %v534
  %682 = vmatprep.subr.mxu0 0.0
  %683 = vmatpush1.msra.mxu0 0.0
  %684 = vmatprep.subr.mxu0 0.0
  %685 = vmatpush1.msra.mxu0 0.0
  %686 = vmatprep.subr.mxu0 0.0
  %687 = vmatpush1.msra.mxu0 0.0
  %688 = vmatprep.subr.mxu0 0.0
  %689 = vmatpush1.msra.mxu0 0.0
  %690 = vmatprep.subr.mxu0 0.0
  %691 = vmatpush1.msra.mxu0 0.0
  %692 = vmatprep.subr.mxu0 0.0
  %693 = vmatpush1.msra.mxu0 0.0
  %694 = vmatprep.subr.mxu0 0.0
  %695 = vmatpush1.msra.mxu0 0.0
  %696 = vmatprep.subr.mxu0 0.0
  %697 = vmatpush1.msra.mxu0 0.0
  %698 = vmatprep.subr.mxu0 0.0
  %699 = vmatpush1.msra.mxu0 0.0
  %700 = vmatprep.subr.mxu0 0.0
  %701 = vmatpush1.msra.mxu0 0.0
  %702 = vmatprep.subr.mxu0 0.0
  %703 = vmatpush1.msra.mxu0 0.0
  %704 = vmatprep.subr.mxu0 0.0
  %705 = vmatpush1.msra.mxu0 0.0
  %706 = vmatprep.subr.mxu0 0.0
  %707 = vmatpush1.msra.mxu0 0.0
  %708 = vmatprep.subr.mxu0 0.0
  %709 = vmatpush1.msra.mxu0 0.0
  %710 = vmatprep.subr.mxu0 0.0
  %711 = vmatpush1.msra.mxu0 0.0
  %712 = vmatprep.subr.mxu0 0.0
  %713 = vmatpush1.msra.mxu0 0.0
  %714 = vmatprep.subr.mxu0 0.0
  %715 = vmatpush1.msra.mxu0 0.0
  %716 = vmatprep.subr.mxu0 0.0
  %717 = vmatpush1.msra.mxu0 0.0
  %718 = vmatprep.subr.mxu0 0.0
  %719 = vmatpush1.msra.mxu0 0.0
  %720 = vmatprep.subr.mxu0 0.0
  %721 = vmatpush1.msra.mxu0 0.0
  %722 = vmatprep.subr.mxu0 0.0
  %723 = vmatpush1.msra.mxu0 0.0
  %724 = vmatprep.subr.mxu0 0.0
  %725 = vmatpush1.msra.mxu0 0.0
  %726 = vmatprep.subr.mxu0 0.0
  %727 = vmatpush1.msra.mxu0 0.0
  %728 = vmatprep.subr.mxu0 0.0
  %729 = vmatpush1.msra.mxu0 0.0
  %730 = vmatprep.subr.mxu0 0.0
  %731 = vmatpush1.msra.mxu0 0.0
  %732 = vmatprep.subr.mxu0 0.0
  %733 = vmatpush1.msra.mxu0 0.0
  %734 = vmatprep.subr.mxu0 0.0
  %735 = vmatpush1.msra.mxu0 0.0
  %736 = vmatprep.subr.mxu0 0.0
  %737 = vmatpush1.msra.mxu0 0.0
  %738 = vmatprep.subr.mxu0 0.0
  %739 = vmatpush1.msra.mxu0 0.0
  %740 = vmatprep.subr.mxu0 0.0
  %741 = vmatpush1.msra.mxu0 0.0
  %742 = vmatprep.subr.mxu0 0.0
  %743 = vmatpush1.msra.mxu0 0.0
  %744 = vmatprep.mubr.f32.mxu0 0.0
  %745 = vmatmul.mubr.f32.gmra.mrb[0].mxu0 %v524
  %v746 = vpop.f32.mrb[0].mxu0
  %v747 = vadd.f32 0.0, %v746
  %v748 = vpop.f32.mrb[0].mxu0
  %v749 = vadd.f32 0.0, %v748
  %750 = vdwg.mxu0
  %v751 = vadd.f32 %v357, %v605
  %v752 = vadd.f32 %v359, %v607
  %v753 = vadd.f32 %v428, %v676
  %v754 = vadd.f32 %v430, %v678
  %v755 = vadd.f32 %v499, %v747
  %v756 = vadd.f32 %v501, %v749
  %s757 = scalar_lea.vmem %s1, 24
  %v758 = vld [vmem:[%s757] sm:$0xff]
  %759 = vrot.lane.b32.xlu0 %v14, 112
  %v760 = vpop.permute.xlu0 %759
  %761 = vrot.lane.b32.xlu0 %v24, 112
  %v762 = vpop.permute.xlu0 %761
  %763 = vrot.lane.b32.xlu0 %v15, 112
  %v764 = vpop.permute.xlu0 %763
  %765 = vrot.lane.b32.xlu0 %v25, 112
  %v766 = vpop.permute.xlu0 %765
  %767 = vrot.lane.b32.xlu0 %v16, 112
  %v768 = vpop.permute.xlu0 %767
  %769 = vrot.lane.b32.xlu0 %v26, 112
  %v770 = vpop.permute.xlu0 %769
  %vm771 = vcmask 916480
  %v772 = vsel %vm771, %v760, %v762
  %v773 = vsel %vm771, %v762, %v764
  %v774 = vsel %vm771, %v764, %v766
  %v775 = vsel %vm771, %v766, %v768
  %v776 = vsel %vm771, %v768, %v770
  %v778 = vsel %vm45, %v758, 0
  %v780 = vsel %vm49, %v772, 0
  %v782 = vsel %vm49, %v773, 0
  %v784 = vsel %vm49, %v774, 0
  %v786 = vsel %vm49, %v775, 0
  %v788 = vsel %vm49, %v776, 0
  %v790 = vsel %vm49, %v770, 0
  %792 = vmatprep.subr.mxu0 %v782
  %793 = vmatpush1.msra.mxu0 %v780
  %794 = vmatprep.subr.mxu0 0.0
  %795 = vmatpush1.msra.mxu0 0.0
  %796 = vmatprep.subr.mxu0 0.0
  %797 = vmatpush1.msra.mxu0 0.0
  %798 = vmatprep.subr.mxu0 0.0
  %799 = vmatpush1.msra.mxu0 0.0
  %800 = vmatprep.subr.mxu0 0.0
  %801 = vmatpush1.msra.mxu0 0.0
  %802 = vmatprep.subr.mxu0 0.0
  %803 = vmatpush1.msra.mxu0 0.0
  %804 = vmatprep.subr.mxu0 0.0
  %805 = vmatpush1.msra.mxu0 0.0
  %806 = vmatprep.subr.mxu0 0.0
  %807 = vmatpush1.msra.mxu0 0.0
  %808 = vmatprep.subr.mxu0 0.0
  %809 = vmatpush1.msra.mxu0 0.0
  %810 = vmatprep.subr.mxu0 0.0
  %811 = vmatpush1.msra.mxu0 0.0
  %812 = vmatprep.subr.mxu0 0.0
  %813 = vmatpush1.msra.mxu0 0.0
  %814 = vmatprep.subr.mxu0 0.0
  %815 = vmatpush1.msra.mxu0 0.0
  %816 = vmatprep.subr.mxu0 0.0
  %817 = vmatpush1.msra.mxu0 0.0
  %818 = vmatprep.subr.mxu0 0.0
  %819 = vmatpush1.msra.mxu0 0.0
  %820 = vmatprep.subr.mxu0 0.0
  %821 = vmatpush1.msra.mxu0 0.0
  %822 = vmatprep.subr.mxu0 0.0
  %823 = vmatpush1.msra.mxu0 0.0
  %824 = vmatprep.subr.mxu0 0.0
  %825 = vmatpush1.msra.mxu0 0.0
  %826 = vmatprep.subr.mxu0 0.0
  %827 = vmatpush1.msra.mxu0 0.0
  %828 = vmatprep.subr.mxu0 0.0
  %829 = vmatpush1.msra.mxu0 0.0
  %830 = vmatprep.subr.mxu0 0.0
  %831 = vmatpush1.msra.mxu0 0.0
  %832 = vmatprep.subr.mxu0 0.0
  %833 = vmatpush1.msra.mxu0 0.0
  %834 = vmatprep.subr.mxu0 0.0
  %835 = vmatpush1.msra.mxu0 0.0
  %836 = vmatprep.subr.mxu0 0.0
  %837 = vmatpush1.msra.mxu0 0.0
  %838 = vmatprep.subr.mxu0 0.0
  %839 = vmatpush1.msra.mxu0 0.0
  %840 = vmatprep.subr.mxu0 0.0
  %841 = vmatpush1.msra.mxu0 0.0
  %842 = vmatprep.subr.mxu0 0.0
  %843 = vmatpush1.msra.mxu0 0.0
  %844 = vmatprep.subr.mxu0 0.0
  %845 = vmatpush1.msra.mxu0 0.0
  %846 = vmatprep.subr.mxu0 0.0
  %847 = vmatpush1.msra.mxu0 0.0
  %848 = vmatprep.subr.mxu0 0.0
  %849 = vmatpush1.msra.mxu0 0.0
  %850 = vmatprep.subr.mxu0 0.0
  %851 = vmatpush1.msra.mxu0 0.0
  %852 = vmatprep.subr.mxu0 0.0
  %853 = vmatpush1.msra.mxu0 0.0
  %854 = vmatprep.subr.mxu0 0.0
  %855 = vmatpush1.msra.mxu0 0.0
  %856 = vmatprep.mubr.f32.mxu0 0.0
  %857 = vmatmul.mubr.f32.gmra.mrb[0].mxu0 %v778
  %v858 = vpop.f32.mrb[0].mxu0
  %v859 = vadd.f32 0.0, %v858
  %v860 = vpop.f32.mrb[0].mxu0
  %v861 = vadd.f32 0.0, %v860
  %862 = vdwg.mxu0
  %863 = vmatprep.subr.mxu0 %v786
  %864 = vmatpush1.msra.mxu0 %v784
  %865 = vmatprep.subr.mxu0 0.0
  %866 = vmatpush1.msra.mxu0 0.0
  %867 = vmatprep.subr.mxu0 0.0
  %868 = vmatpush1.msra.mxu0 0.0
  %869 = vmatprep.subr.mxu0 0.0
  %870 = vmatpush1.msra.mxu0 0.0
  %871 = vmatprep.subr.mxu0 0.0
  %872 = vmatpush1.msra.mxu0 0.0
  %873 = vmatprep.subr.mxu0 0.0
  %874 = vmatpush1.msra.mxu0 0.0
  %875 = vmatprep.subr.mxu0 0.0
  %876 = vmatpush1.msra.mxu0 0.0
  %877 = vmatprep.subr.mxu0 0.0
  %878 = vmatpush1.msra.mxu0 0.0
  %879 = vmatprep.subr.mxu0 0.0
  %880 = vmatpush1.msra.mxu0 0.0
  %881 = vmatprep.subr.mxu0 0.0
  %882 = vmatpush1.msra.mxu0 0.0
  %883 = vmatprep.subr.mxu0 0.0
  %884 = vmatpush1.msra.mxu0 0.0
  %885 = vmatprep.subr.mxu0 0.0
  %886 = vmatpush1.msra.mxu0 0.0
  %887 = vmatprep.subr.mxu0 0.0
  %888 = vmatpush1.msra.mxu0 0.0
  %889 = vmatprep.subr.mxu0 0.0
  %890 = vmatpush1.msra.mxu0 0.0
  %891 = vmatprep.subr.mxu0 0.0
  %892 = vmatpush1.msra.mxu0 0.0
  %893 = vmatprep.subr.mxu0 0.0
  %894 = vmatpush1.msra.mxu0 0.0
  %895 = vmatprep.subr.mxu0 0.0
  %896 = vmatpush1.msra.mxu0 0.0
  %897 = vmatprep.subr.mxu0 0.0
  %898 = vmatpush1.msra.mxu0 0.0
  %899 = vmatprep.subr.mxu0 0.0
  %900 = vmatpush1.msra.mxu0 0.0
  %901 = vmatprep.subr.mxu0 0.0
  %902 = vmatpush1.msra.mxu0 0.0
  %903 = vmatprep.subr.mxu0 0.0
  %904 = vmatpush1.msra.mxu0 0.0
  %905 = vmatprep.subr.mxu0 0.0
  %906 = vmatpush1.msra.mxu0 0.0
  %907 = vmatprep.subr.mxu0 0.0
  %908 = vmatpush1.msra.mxu0 0.0
  %909 = vmatprep.subr.mxu0 0.0
  %910 = vmatpush1.msra.mxu0 0.0
  %911 = vmatprep.subr.mxu0 0.0
  %912 = vmatpush1.msra.mxu0 0.0
  %913 = vmatprep.subr.mxu0 0.0
  %914 = vmatpush1.msra.mxu0 0.0
  %915 = vmatprep.subr.mxu0 0.0
  %916 = vmatpush1.msra.mxu0 0.0
  %917 = vmatprep.subr.mxu0 0.0
  %918 = vmatpush1.msra.mxu0 0.0
  %919 = vmatprep.subr.mxu0 0.0
  %920 = vmatpush1.msra.mxu0 0.0
  %921 = vmatprep.subr.mxu0 0.0
  %922 = vmatpush1.msra.mxu0 0.0
  %923 = vmatprep.subr.mxu0 0.0
  %924 = vmatpush1.msra.mxu0 0.0
  %925 = vmatprep.subr.mxu0 0.0
  %926 = vmatpush1.msra.mxu0 0.0
  %927 = vmatprep.mubr.f32.mxu0 0.0
  %928 = vmatmul.mubr.f32.gmra.mrb[0].mxu0 %v778
  %v929 = vpop.f32.mrb[0].mxu0
  %v930 = vadd.f32 0.0, %v929
  %v931 = vpop.f32.mrb[0].mxu0
  %v932 = vadd.f32 0.0, %v931
  %933 = vdwg.mxu0
  %934 = vmatprep.subr.mxu0 %v790
  %935 = vmatpush1.msra.mxu0 %v788
  %936 = vmatprep.subr.mxu0 0.0
  %937 = vmatpush1.msra.mxu0 0.0
  %938 = vmatprep.subr.mxu0 0.0
  %939 = vmatpush1.msra.mxu0 0.0
  %940 = vmatprep.subr.mxu0 0.0
  %941 = vmatpush1.msra.mxu0 0.0
  %942 = vmatprep.subr.mxu0 0.0
  %943 = vmatpush1.msra.mxu0 0.0
  %944 = vmatprep.subr.mxu0 0.0
  %945 = vmatpush1.msra.mxu0 0.0
  %946 = vmatprep.subr.mxu0 0.0
  %947 = vmatpush1.msra.mxu0 0.0
  %948 = vmatprep.subr.mxu0 0.0
  %949 = vmatpush1.msra.mxu0 0.0
  %950 = vmatprep.subr.mxu0 0.0
  %951 = vmatpush1.msra.mxu0 0.0
  %952 = vmatprep.subr.mxu0 0.0
  %953 = vmatpush1.msra.mxu0 0.0
  %954 = vmatprep.subr.mxu0 0.0
  %955 = vmatpush1.msra.mxu0 0.0
  %956 = vmatprep.subr.mxu0 0.0
  %957 = vmatpush1.msra.mxu0 0.0
  %958 = vmatprep.subr.mxu0 0.0
  %959 = vmatpush1.msra.mxu0 0.0
  %960 = vmatprep.subr.mxu0 0.0
  %961 = vmatpush1.msra.mxu0 0.0
  %962 = vmatprep.subr.mxu0 0.0
  %963 = vmatpush1.msra.mxu0 0.0
  %964 = vmatprep.subr.mxu0 0.0
  %965 = vmatpush1.msra.mxu0 0.0
  %966 = vmatprep.subr.mxu0 0.0
  %967 = vmatpush1.msra.mxu0 0.0
  %968 = vmatprep.subr.mxu0 0.0
  %969 = vmatpush1.msra.mxu0 0.0
  %970 = vmatprep.subr.mxu0 0.0
  %971 = vmatpush1.msra.mxu0 0.0
  %972 = vmatprep.subr.mxu0 0.0
  %973 = vmatpush1.msra.mxu0 0.0
  %974 = vmatprep.subr.mxu0 0.0
  %975 = vmatpush1.msra.mxu0 0.0
  %976 = vmatprep.subr.mxu0 0.0
  %977 = vmatpush1.msra.mxu0 0.0
  %978 = vmatprep.subr.mxu0 0.0
  %979 = vmatpush1.msra.mxu0 0.0
  %980 = vmatprep.subr.mxu0 0.0
  %981 = vmatpush1.msra.mxu0 0.0
  %982 = vmatprep.subr.mxu0 0.0
  %983 = vmatpush1.msra.mxu0 0.0
  %984 = vmatprep.subr.mxu0 0.0
  %985 = vmatpush1.msra.mxu0 0.0
  %986 = vmatprep.subr.mxu0 0.0
  %987 = vmatpush1.msra.mxu0 0.0
  %988 = vmatprep.subr.mxu0 0.0
  %989 = vmatpush1.msra.mxu0 0.0
  %990 = vmatprep.subr.mxu0 0.0
  %991 = vmatpush1.msra.mxu0 0.0
  %992 = vmatprep.subr.mxu0 0.0
  %993 = vmatpush1.msra.mxu0 0.0
  %994 = vmatprep.subr.mxu0 0.0
  %995 = vmatpush1.msra.mxu0 0.0
  %996 = vmatprep.subr.mxu0 0.0
  %997 = vmatpush1.msra.mxu0 0.0
  %998 = vmatprep.mubr.f32.mxu0 0.0
  %999 = vmatmul.mubr.f32.gmra.mrb[0].mxu0 %v778
  %v1000 = vpop.f32.mrb[0].mxu0
  %v1001 = vadd.f32 0.0, %v1000
  %v1002 = vpop.f32.mrb[0].mxu0
  %v1003 = vadd.f32 0.0, %v1002
  %1004 = vdwg.mxu0
  %v1005 = vadd.f32 %v751, %v859
  %v1006 = vadd.f32 %v752, %v861
  %v1007 = vadd.f32 %v753, %v930
  %v1008 = vadd.f32 %v754, %v932
  %v1009 = vadd.f32 %v755, %v1001
  %v1010 = vadd.f32 %v756, %v1003
  %s1011 = scalar_lea.vmem %s1, 32
  %v1012 = vld [vmem:[%s1011] sm:$0xff]
  %1013 = vrot.lane.b32.xlu0 %v14, 111
  %v1014 = vpop.permute.xlu0 %1013
  %1015 = vrot.lane.b32.xlu0 %v24, 111
  %v1016 = vpop.permute.xlu0 %1015
  %1017 = vrot.lane.b32.xlu0 %v15, 111
  %v1018 = vpop.permute.xlu0 %1017
  %1019 = vrot.lane.b32.xlu0 %v25, 111
  %v1020 = vpop.permute.xlu0 %1019
  %1021 = vrot.lane.b32.xlu0 %v16, 111
  %v1022 = vpop.permute.xlu0 %1021
  %1023 = vrot.lane.b32.xlu0 %v26, 111
  %v1024 = vpop.permute.xlu0 %1023
  %vm1025 = vcmask 908288
  %v1026 = vsel %vm1025, %v1014, %v1016
  %v1027 = vsel %vm1025, %v1016, %v1018
  %v1028 = vsel %vm1025, %v1018, %v1020
  %v1029 = vsel %vm1025, %v1020, %v1022
  %v1030 = vsel %vm1025, %v1022, %v1024
  %v1032 = vsel %vm45, %v1012, 0
  %v1034 = vsel %vm49, %v1026, 0
  %v1036 = vsel %vm49, %v1027, 0
  %v1038 = vsel %vm49, %v1028, 0
  %v1040 = vsel %vm49, %v1029, 0
  %v1042 = vsel %vm49, %v1030, 0
  %v1044 = vsel %vm49, %v1024, 0
  %1046 = vmatprep.subr.mxu0 %v1036
  %1047 = vmatpush1.msra.mxu0 %v1034
  %1048 = vmatprep.subr.mxu0 0.0
  %1049 = vmatpush1.msra.mxu0 0.0
  %1050 = vmatprep.subr.mxu0 0.0
  %1051 = vmatpush1.msra.mxu0 0.0
  %1052 = vmatprep.subr.mxu0 0.0
  %1053 = vmatpush1.msra.mxu0 0.0
  %1054 = vmatprep.subr.mxu0 0.0
  %1055 = vmatpush1.msra.mxu0 0.0
  %1056 = vmatprep.subr.mxu0 0.0
  %1057 = vmatpush1.msra.mxu0 0.0
  %1058 = vmatprep.subr.mxu0 0.0
  %1059 = vmatpush1.msra.mxu0 0.0
  %1060 = vmatprep.subr.mxu0 0.0
  %1061 = vmatpush1.msra.mxu0 0.0
  %1062 = vmatprep.subr.mxu0 0.0
  %1063 = vmatpush1.msra.mxu0 0.0
  %1064 = vmatprep.subr.mxu0 0.0
  %1065 = vmatpush1.msra.mxu0 0.0
  %1066 = vmatprep.subr.mxu0 0.0
  %1067 = vmatpush1.msra.mxu0 0.0
  %1068 = vmatprep.subr.mxu0 0.0
  %1069 = vmatpush1.msra.mxu0 0.0
  %1070 = vmatprep.subr.mxu0 0.0
  %1071 = vmatpush1.msra.mxu0 0.0
  %1072 = vmatprep.subr.mxu0 0.0
  %1073 = vmatpush1.msra.mxu0 0.0
  %1074 = vmatprep.subr.mxu0 0.0
  %1075 = vmatpush1.msra.mxu0 0.0
  %1076 = vmatprep.subr.mxu0 0.0
  %1077 = vmatpush1.msra.mxu0 0.0
  %1078 = vmatprep.subr.mxu0 0.0
  %1079 = vmatpush1.msra.mxu0 0.0
  %1080 = vmatprep.subr.mxu0 0.0
  %1081 = vmatpush1.msra.mxu0 0.0
  %1082 = vmatprep.subr.mxu0 0.0
  %1083 = vmatpush1.msra.mxu0 0.0
  %1084 = vmatprep.subr.mxu0 0.0
  %1085 = vmatpush1.msra.mxu0 0.0
  %1086 = vmatprep.subr.mxu0 0.0
  %1087 = vmatpush1.msra.mxu0 0.0
  %1088 = vmatprep.subr.mxu0 0.0
  %1089 = vmatpush1.msra.mxu0 0.0
  %1090 = vmatprep.subr.mxu0 0.0
  %1091 = vmatpush1.msra.mxu0 0.0
  %1092 = vmatprep.subr.mxu0 0.0
  %1093 = vmatpush1.msra.mxu0 0.0
  %1094 = vmatprep.subr.mxu0 0.0
  %1095 = vmatpush1.msra.mxu0 0.0
  %1096 = vmatprep.subr.mxu0 0.0
  %1097 = vmatpush1.msra.mxu0 0.0
  %1098 = vmatprep.subr.mxu0 0.0
  %1099 = vmatpush1.msra.mxu0 0.0
  %1100 = vmatprep.subr.mxu0 0.0
  %1101 = vmatpush1.msra.mxu0 0.0
  %1102 = vmatprep.subr.mxu0 0.0
  %1103 = vmatpush1.msra.mxu0 0.0
  %1104 = vmatprep.subr.mxu0 0.0
  %1105 = vmatpush1.msra.mxu0 0.0
  %1106 = vmatprep.subr.mxu0 0.0
  %1107 = vmatpush1.msra.mxu0 0.0
  %1108 = vmatprep.subr.mxu0 0.0
  %1109 = vmatpush1.msra.mxu0 0.0
  %1110 = vmatprep.mubr.f32.mxu0 0.0
  %1111 = vmatmul.mubr.f32.gmra.mrb[0].mxu0 %v1032
  %v1112 = vpop.f32.mrb[0].mxu0
  %v1113 = vadd.f32 0.0, %v1112
  %v1114 = vpop.f32.mrb[0].mxu0
  %v1115 = vadd.f32 0.0, %v1114
  %1116 = vdwg.mxu0
  %1117 = vmatprep.subr.mxu0 %v1040
  %1118 = vmatpush1.msra.mxu0 %v1038
  %1119 = vmatprep.subr.mxu0 0.0
  %1120 = vmatpush1.msra.mxu0 0.0
  %1121 = vmatprep.subr.mxu0 0.0
  %1122 = vmatpush1.msra.mxu0 0.0
  %1123 = vmatprep.subr.mxu0 0.0
  %1124 = vmatpush1.msra.mxu0 0.0
  %1125 = vmatprep.subr.mxu0 0.0
  %1126 = vmatpush1.msra.mxu0 0.0
  %1127 = vmatprep.subr.mxu0 0.0
  %1128 = vmatpush1.msra.mxu0 0.0
  %1129 = vmatprep.subr.mxu0 0.0
  %1130 = vmatpush1.msra.mxu0 0.0
  %1131 = vmatprep.subr.mxu0 0.0
  %1132 = vmatpush1.msra.mxu0 0.0
  %1133 = vmatprep.subr.mxu0 0.0
  %1134 = vmatpush1.msra.mxu0 0.0
  %1135 = vmatprep.subr.mxu0 0.0
  %1136 = vmatpush1.msra.mxu0 0.0
  %1137 = vmatprep.subr.mxu0 0.0
  %1138 = vmatpush1.msra.mxu0 0.0
  %1139 = vmatprep.subr.mxu0 0.0
  %1140 = vmatpush1.msra.mxu0 0.0
  %1141 = vmatprep.subr.mxu0 0.0
  %1142 = vmatpush1.msra.mxu0 0.0
  %1143 = vmatprep.subr.mxu0 0.0
  %1144 = vmatpush1.msra.mxu0 0.0
  %1145 = vmatprep.subr.mxu0 0.0
  %1146 = vmatpush1.msra.mxu0 0.0
  %1147 = vmatprep.subr.mxu0 0.0
  %1148 = vmatpush1.msra.mxu0 0.0
  %1149 = vmatprep.subr.mxu0 0.0
  %1150 = vmatpush1.msra.mxu0 0.0
  %1151 = vmatprep.subr.mxu0 0.0
  %1152 = vmatpush1.msra.mxu0 0.0
  %1153 = vmatprep.subr.mxu0 0.0
  %1154 = vmatpush1.msra.mxu0 0.0
  %1155 = vmatprep.subr.mxu0 0.0
  %1156 = vmatpush1.msra.mxu0 0.0
  %1157 = vmatprep.subr.mxu0 0.0
  %1158 = vmatpush1.msra.mxu0 0.0
  %1159 = vmatprep.subr.mxu0 0.0
  %1160 = vmatpush1.msra.mxu0 0.0
  %1161 = vmatprep.subr.mxu0 0.0
  %1162 = vmatpush1.msra.mxu0 0.0
  %1163 = vmatprep.subr.mxu0 0.0
  %1164 = vmatpush1.msra.mxu0 0.0
  %1165 = vmatprep.subr.mxu0 0.0
  %1166 = vmatpush1.msra.mxu0 0.0
  %1167 = vmatprep.subr.mxu0 0.0
  %1168 = vmatpush1.msra.mxu0 0.0
  %1169 = vmatprep.subr.mxu0 0.0
  %1170 = vmatpush1.msra.mxu0 0.0
  %1171 = vmatprep.subr.mxu0 0.0
  %1172 = vmatpush1.msra.mxu0 0.0
  %1173 = vmatprep.subr.mxu0 0.0
  %1174 = vmatpush1.msra.mxu0 0.0
  %1175 = vmatprep.subr.mxu0 0.0
  %1176 = vmatpush1.msra.mxu0 0.0
  %1177 = vmatprep.subr.mxu0 0.0
  %1178 = vmatpush1.msra.mxu0 0.0
  %1179 = vmatprep.subr.mxu0 0.0
  %1180 = vmatpush1.msra.mxu0 0.0
  %1181 = vmatprep.mubr.f32.mxu0 0.0
  %1182 = vmatmul.mubr.f32.gmra.mrb[0].mxu0 %v1032
  %v1183 = vpop.f32.mrb[0].mxu0
  %v1184 = vadd.f32 0.0, %v1183
  %v1185 = vpop.f32.mrb[0].mxu0
  %v1186 = vadd.f32 0.0, %v1185
  %1187 = vdwg.mxu0
  %1188 = vmatprep.subr.mxu0 %v1044
  %1189 = vmatpush1.msra.mxu0 %v1042
  %1190 = vmatprep.subr.mxu0 0.0
  %1191 = vmatpush1.msra.mxu0 0.0
  %1192 = vmatprep.subr.mxu0 0.0
  %1193 = vmatpush1.msra.mxu0 0.0
  %1194 = vmatprep.subr.mxu0 0.0
  %1195 = vmatpush1.msra.mxu0 0.0
  %1196 = vmatprep.subr.mxu0 0.0
  %1197 = vmatpush1.msra.mxu0 0.0
  %1198 = vmatprep.subr.mxu0 0.0
  %1199 = vmatpush1.msra.mxu0 0.0
  %1200 = vmatprep.subr.mxu0 0.0
  %1201 = vmatpush1.msra.mxu0 0.0
  %1202 = vmatprep.subr.mxu0 0.0
  %1203 = vmatpush1.msra.mxu0 0.0
  %1204 = vmatprep.subr.mxu0 0.0
  %1205 = vmatpush1.msra.mxu0 0.0
  %1206 = vmatprep.subr.mxu0 0.0
  %1207 = vmatpush1.msra.mxu0 0.0
  %1208 = vmatprep.subr.mxu0 0.0
  %1209 = vmatpush1.msra.mxu0 0.0
  %1210 = vmatprep.subr.mxu0 0.0
  %1211 = vmatpush1.msra.mxu0 0.0
  %1212 = vmatprep.subr.mxu0 0.0
  %1213 = vmatpush1.msra.mxu0 0.0
  %1214 = vmatprep.subr.mxu0 0.0
  %1215 = vmatpush1.msra.mxu0 0.0
  %1216 = vmatprep.subr.mxu0 0.0
  %1217 = vmatpush1.msra.mxu0 0.0
  %1218 = vmatprep.subr.mxu0 0.0
  %1219 = vmatpush1.msra.mxu0 0.0
  %1220 = vmatprep.subr.mxu0 0.0
  %1221 = vmatpush1.msra.mxu0 0.0
  %1222 = vmatprep.subr.mxu0 0.0
  %1223 = vmatpush1.msra.mxu0 0.0
  %1224 = vmatprep.subr.mxu0 0.0
  %1225 = vmatpush1.msra.mxu0 0.0
  %1226 = vmatprep.subr.mxu0 0.0
  %1227 = vmatpush1.msra.mxu0 0.0
  %1228 = vmatprep.subr.mxu0 0.0
  %1229 = vmatpush1.msra.mxu0 0.0
  %1230 = vmatprep.subr.mxu0 0.0
  %1231 = vmatpush1.msra.mxu0 0.0
  %1232 = vmatprep.subr.mxu0 0.0
  %1233 = vmatpush1.msra.mxu0 0.0
  %1234 = vmatprep.subr.mxu0 0.0
  %1235 = vmatpush1.msra.mxu0 0.0
  %1236 = vmatprep.subr.mxu0 0.0
  %1237 = vmatpush1.msra.mxu0 0.0
  %1238 = vmatprep.subr.mxu0 0.0
  %1239 = vmatpush1.msra.mxu0 0.0
  %1240 = vmatprep.subr.mxu0 0.0
  %1241 = vmatpush1.msra.mxu0 0.0
  %1242 = vmatprep.subr.mxu0 0.0
  %1243 = vmatpush1.msra.mxu0 0.0
  %1244 = vmatprep.subr.mxu0 0.0
  %1245 = vmatpush1.msra.mxu0 0.0
  %1246 = vmatprep.subr.mxu0 0.0
  %1247 = vmatpush1.msra.mxu0 0.0
  %1248 = vmatprep.subr.mxu0 0.0
  %1249 = vmatpush1.msra.mxu0 0.0
  %1250 = vmatprep.subr.mxu0 0.0
  %1251 = vmatpush1.msra.mxu0 0.0
  %1252 = vmatprep.mubr.f32.mxu0 0.0
  %1253 = vmatmul.mubr.f32.gmra.mrb[0].mxu0 %v1032
  %v1254 = vpop.f32.mrb[0].mxu0
  %v1255 = vadd.f32 0.0, %v1254
  %v1256 = vpop.f32.mrb[0].mxu0
  %v1257 = vadd.f32 0.0, %v1256
  %1258 = vdwg.mxu0
  %v1259 = vadd.f32 %v1005, %v1113
  %v1260 = vadd.f32 %v1006, %v1115
  %v1261 = vadd.f32 %v1007, %v1184
  %v1262 = vadd.f32 %v1008, %v1186
  %v1263 = vadd.f32 %v1009, %v1255
  %v1264 = vadd.f32 %v1010, %v1257
  %s1265 = scalar_lea.vmem %s1, 40
  %v1266 = vld [vmem:[%s1265] sm:$0xff]
  %1267 = vrot.lane.b32.xlu0 %v14, 110
  %v1268 = vpop.permute.xlu0 %1267
  %1269 = vrot.lane.b32.xlu0 %v24, 110
  %v1270 = vpop.permute.xlu0 %1269
  %1271 = vrot.lane.b32.xlu0 %v15, 110
  %v1272 = vpop.permute.xlu0 %1271
  %1273 = vrot.lane.b32.xlu0 %v25, 110
  %v1274 = vpop.permute.xlu0 %1273
  %1275 = vrot.lane.b32.xlu0 %v16, 110
  %v1276 = vpop.permute.xlu0 %1275
  %1277 = vrot.lane.b32.xlu0 %v26, 110
  %v1278 = vpop.permute.xlu0 %1277
  %vm1279 = vcmask 900096
  %v1280 = vsel %vm1279, %v1268, %v1270
  %v1281 = vsel %vm1279, %v1270, %v1272
  %v1282 = vsel %vm1279, %v1272, %v1274
  %v1283 = vsel %vm1279, %v1274, %v1276
  %v1284 = vsel %vm1279, %v1276, %v1278
  %v1286 = vsel %vm45, %v1266, 0
  %v1288 = vsel %vm49, %v1280, 0
  %v1290 = vsel %vm49, %v1281, 0
  %v1292 = vsel %vm49, %v1282, 0
  %v1294 = vsel %vm49, %v1283, 0
  %v1296 = vsel %vm49, %v1284, 0
  %v1298 = vsel %vm49, %v1278, 0
  %1300 = vmatprep.subr.mxu0 %v1290
  %1301 = vmatpush1.msra.mxu0 %v1288
  %1302 = vmatprep.subr.mxu0 0.0
  %1303 = vmatpush1.msra.mxu0 0.0
  %1304 = vmatprep.subr.mxu0 0.0
  %1305 = vmatpush1.msra.mxu0 0.0
  %1306 = vmatprep.subr.mxu0 0.0
  %1307 = vmatpush1.msra.mxu0 0.0
  %1308 = vmatprep.subr.mxu0 0.0
  %1309 = vmatpush1.msra.mxu0 0.0
  %1310 = vmatprep.subr.mxu0 0.0
  %1311 = vmatpush1.msra.mxu0 0.0
  %1312 = vmatprep.subr.mxu0 0.0
  %1313 = vmatpush1.msra.mxu0 0.0
  %1314 = vmatprep.subr.mxu0 0.0
  %1315 = vmatpush1.msra.mxu0 0.0
  %1316 = vmatprep.subr.mxu0 0.0
  %1317 = vmatpush1.msra.mxu0 0.0
  %1318 = vmatprep.subr.mxu0 0.0
  %1319 = vmatpush1.msra.mxu0 0.0
  %1320 = vmatprep.subr.mxu0 0.0
  %1321 = vmatpush1.msra.mxu0 0.0
  %1322 = vmatprep.subr.mxu0 0.0
  %1323 = vmatpush1.msra.mxu0 0.0
  %1324 = vmatprep.subr.mxu0 0.0
  %1325 = vmatpush1.msra.mxu0 0.0
  %1326 = vmatprep.subr.mxu0 0.0
  %1327 = vmatpush1.msra.mxu0 0.0
  %1328 = vmatprep.subr.mxu0 0.0
  %1329 = vmatpush1.msra.mxu0 0.0
  %1330 = vmatprep.subr.mxu0 0.0
  %1331 = vmatpush1.msra.mxu0 0.0
  %1332 = vmatprep.subr.mxu0 0.0
  %1333 = vmatpush1.msra.mxu0 0.0
  %1334 = vmatprep.subr.mxu0 0.0
  %1335 = vmatpush1.msra.mxu0 0.0
  %1336 = vmatprep.subr.mxu0 0.0
  %1337 = vmatpush1.msra.mxu0 0.0
  %1338 = vmatprep.subr.mxu0 0.0
  %1339 = vmatpush1.msra.mxu0 0.0
  %1340 = vmatprep.subr.mxu0 0.0
  %1341 = vmatpush1.msra.mxu0 0.0
  %1342 = vmatprep.subr.mxu0 0.0
  %1343 = vmatpush1.msra.mxu0 0.0
  %1344 = vmatprep.subr.mxu0 0.0
  %1345 = vmatpush1.msra.mxu0 0.0
  %1346 = vmatprep.subr.mxu0 0.0
  %1347 = vmatpush1.msra.mxu0 0.0
  %1348 = vmatprep.subr.mxu0 0.0
  %1349 = vmatpush1.msra.mxu0 0.0
  %1350 = vmatprep.subr.mxu0 0.0
  %1351 = vmatpush1.msra.mxu0 0.0
  %1352 = vmatprep.subr.mxu0 0.0
  %1353 = vmatpush1.msra.mxu0 0.0
  %1354 = vmatprep.subr.mxu0 0.0
  %1355 = vmatpush1.msra.mxu0 0.0
  %1356 = vmatprep.subr.mxu0 0.0
  %1357 = vmatpush1.msra.mxu0 0.0
  %1358 = vmatprep.subr.mxu0 0.0
  %1359 = vmatpush1.msra.mxu0 0.0
  %1360 = vmatprep.subr.mxu0 0.0
  %1361 = vmatpush1.msra.mxu0 0.0
  %1362 = vmatprep.subr.mxu0 0.0
  %1363 = vmatpush1.msra.mxu0 0.0
  %1364 = vmatprep.mubr.f32.mxu0 0.0
  %1365 = vmatmul.mubr.f32.gmra.mrb[0].mxu0 %v1286
  %v1366 = vpop.f32.mrb[0].mxu0
  %v1367 = vadd.f32 0.0, %v1366
  %v1368 = vpop.f32.mrb[0].mxu0
  %v1369 = vadd.f32 0.0, %v1368
  %1370 = vdwg.mxu0
  %1371 = vmatprep.subr.mxu0 %v1294
  %1372 = vmatpush1.msra.mxu0 %v1292
  %1373 = vmatprep.subr.mxu0 0.0
  %1374 = vmatpush1.msra.mxu0 0.0
  %1375 = vmatprep.subr.mxu0 0.0
  %1376 = vmatpush1.msra.mxu0 0.0
  %1377 = vmatprep.subr.mxu0 0.0
  %1378 = vmatpush1.msra.mxu0 0.0
  %1379 = vmatprep.subr.mxu0 0.0
  %1380 = vmatpush1.msra.mxu0 0.0
  %1381 = vmatprep.subr.mxu0 0.0
  %1382 = vmatpush1.msra.mxu0 0.0
  %1383 = vmatprep.subr.mxu0 0.0
  %1384 = vmatpush1.msra.mxu0 0.0
  %1385 = vmatprep.subr.mxu0 0.0
  %1386 = vmatpush1.msra.mxu0 0.0
  %1387 = vmatprep.subr.mxu0 0.0
  %1388 = vmatpush1.msra.mxu0 0.0
  %1389 = vmatprep.subr.mxu0 0.0
  %1390 = vmatpush1.msra.mxu0 0.0
  %1391 = vmatprep.subr.mxu0 0.0
  %1392 = vmatpush1.msra.mxu0 0.0
  %1393 = vmatprep.subr.mxu0 0.0
  %1394 = vmatpush1.msra.mxu0 0.0
  %1395 = vmatprep.subr.mxu0 0.0
  %1396 = vmatpush1.msra.mxu0 0.0
  %1397 = vmatprep.subr.mxu0 0.0
  %1398 = vmatpush1.msra.mxu0 0.0
  %1399 = vmatprep.subr.mxu0 0.0
  %1400 = vmatpush1.msra.mxu0 0.0
  %1401 = vmatprep.subr.mxu0 0.0
  %1402 = vmatpush1.msra.mxu0 0.0
  %1403 = vmatprep.subr.mxu0 0.0
  %1404 = vmatpush1.msra.mxu0 0.0
  %1405 = vmatprep.subr.mxu0 0.0
  %1406 = vmatpush1.msra.mxu0 0.0
  %1407 = vmatprep.subr.mxu0 0.0
  %1408 = vmatpush1.msra.mxu0 0.0
  %1409 = vmatprep.subr.mxu0 0.0
  %1410 = vmatpush1.msra.mxu0 0.0
  %1411 = vmatprep.subr.mxu0 0.0
  %1412 = vmatpush1.msra.mxu0 0.0
  %1413 = vmatprep.subr.mxu0 0.0
  %1414 = vmatpush1.msra.mxu0 0.0
  %1415 = vmatprep.subr.mxu0 0.0
  %1416 = vmatpush1.msra.mxu0 0.0
  %1417 = vmatprep.subr.mxu0 0.0
  %1418 = vmatpush1.msra.mxu0 0.0
  %1419 = vmatprep.subr.mxu0 0.0
  %1420 = vmatpush1.msra.mxu0 0.0
  %1421 = vmatprep.subr.mxu0 0.0
  %1422 = vmatpush1.msra.mxu0 0.0
  %1423 = vmatprep.subr.mxu0 0.0
  %1424 = vmatpush1.msra.mxu0 0.0
  %1425 = vmatprep.subr.mxu0 0.0
  %1426 = vmatpush1.msra.mxu0 0.0
  %1427 = vmatprep.subr.mxu0 0.0
  %1428 = vmatpush1.msra.mxu0 0.0
  %1429 = vmatprep.subr.mxu0 0.0
  %1430 = vmatpush1.msra.mxu0 0.0
  %1431 = vmatprep.subr.mxu0 0.0
  %1432 = vmatpush1.msra.mxu0 0.0
  %1433 = vmatprep.subr.mxu0 0.0
  %1434 = vmatpush1.msra.mxu0 0.0
  %1435 = vmatprep.mubr.f32.mxu0 0.0
  %1436 = vmatmul.mubr.f32.gmra.mrb[0].mxu0 %v1286
  %v1437 = vpop.f32.mrb[0].mxu0
  %v1438 = vadd.f32 0.0, %v1437
  %v1439 = vpop.f32.mrb[0].mxu0
  %v1440 = vadd.f32 0.0, %v1439
  %1441 = vdwg.mxu0
  %1442 = vmatprep.subr.mxu0 %v1298
  %1443 = vmatpush1.msra.mxu0 %v1296
  %1444 = vmatprep.subr.mxu0 0.0
  %1445 = vmatpush1.msra.mxu0 0.0
  %1446 = vmatprep.subr.mxu0 0.0
  %1447 = vmatpush1.msra.mxu0 0.0
  %1448 = vmatprep.subr.mxu0 0.0
  %1449 = vmatpush1.msra.mxu0 0.0
  %1450 = vmatprep.subr.mxu0 0.0
  %1451 = vmatpush1.msra.mxu0 0.0
  %1452 = vmatprep.subr.mxu0 0.0
  %1453 = vmatpush1.msra.mxu0 0.0
  %1454 = vmatprep.subr.mxu0 0.0
  %1455 = vmatpush1.msra.mxu0 0.0
  %1456 = vmatprep.subr.mxu0 0.0
  %1457 = vmatpush1.msra.mxu0 0.0
  %1458 = vmatprep.subr.mxu0 0.0
  %1459 = vmatpush1.msra.mxu0 0.0
  %1460 = vmatprep.subr.mxu0 0.0
  %1461 = vmatpush1.msra.mxu0 0.0
  %1462 = vmatprep.subr.mxu0 0.0
  %1463 = vmatpush1.msra.mxu0 0.0
  %1464 = vmatprep.subr.mxu0 0.0
  %1465 = vmatpush1.msra.mxu0 0.0
  %1466 = vmatprep.subr.mxu0 0.0
  %1467 = vmatpush1.msra.mxu0 0.0
  %1468 = vmatprep.subr.mxu0 0.0
  %1469 = vmatpush1.msra.mxu0 0.0
  %1470 = vmatprep.subr.mxu0 0.0
  %1471 = vmatpush1.msra.mxu0 0.0
  %1472 = vmatprep.subr.mxu0 0.0
  %1473 = vmatpush1.msra.mxu0 0.0
  %1474 = vmatprep.subr.mxu0 0.0
  %1475 = vmatpush1.msra.mxu0 0.0
  %1476 = vmatprep.subr.mxu0 0.0
  %1477 = vmatpush1.msra.mxu0 0.0
  %1478 = vmatprep.subr.mxu0 0.0
  %1479 = vmatpush1.msra.mxu0 0.0
  %1480 = vmatprep.subr.mxu0 0.0
  %1481 = vmatpush1.msra.mxu0 0.0
  %1482 = vmatprep.subr.mxu0 0.0
  %1483 = vmatpush1.msra.mxu0 0.0
  %1484 = vmatprep.subr.mxu0 0.0
  %1485 = vmatpush1.msra.mxu0 0.0
  %1486 = vmatprep.subr.mxu0 0.0
  %1487 = vmatpush1.msra.mxu0 0.0
  %1488 = vmatprep.subr.mxu0 0.0
  %1489 = vmatpush1.msra.mxu0 0.0
  %1490 = vmatprep.subr.mxu0 0.0
  %1491 = vmatpush1.msra.mxu0 0.0
  %1492 = vmatprep.subr.mxu0 0.0
  %1493 = vmatpush1.msra.mxu0 0.0
  %1494 = vmatprep.subr.mxu0 0.0
  %1495 = vmatpush1.msra.mxu0 0.0
  %1496 = vmatprep.subr.mxu0 0.0
  %1497 = vmatpush1.msra.mxu0 0.0
  %1498 = vmatprep.subr.mxu0 0.0
  %1499 = vmatpush1.msra.mxu0 0.0
  %1500 = vmatprep.subr.mxu0 0.0
  %1501 = vmatpush1.msra.mxu0 0.0
  %1502 = vmatprep.subr.mxu0 0.0
  %1503 = vmatpush1.msra.mxu0 0.0
  %1504 = vmatprep.subr.mxu0 0.0
  %1505 = vmatpush1.msra.mxu0 0.0
  %1506 = vmatprep.mubr.f32.mxu0 0.0
  %1507 = vmatmul.mubr.f32.gmra.mrb[0].mxu0 %v1286
  %v1508 = vpop.f32.mrb[0].mxu0
  %v1509 = vadd.f32 0.0, %v1508
  %v1510 = vpop.f32.mrb[0].mxu0
  %v1511 = vadd.f32 0.0, %v1510
  %1512 = vdwg.mxu0
  %v1513 = vadd.f32 %v1259, %v1367
  %v1514 = vadd.f32 %v1260, %v1369
  %v1515 = vadd.f32 %v1261, %v1438
  %v1516 = vadd.f32 %v1262, %v1440
  %v1517 = vadd.f32 %v1263, %v1509
  %v1518 = vadd.f32 %v1264, %v1511
  %s1519 = scalar_lea.vmem %s1, 48
  %v1520 = vld [vmem:[%s1519] sm:$0xff]
  %1522 = vrot.lane.b32.xlu0 %v14, 96
  %v1523 = vpop.permute.xlu0 %1522
  %1524 = vrot.lane.b32.xlu0 %v24, 96
  %v1525 = vpop.permute.xlu0 %1524
  %1526 = vrot.lane.b32.xlu0 %v15, 96
  %v1527 = vpop.permute.xlu0 %1526
  %1528 = vrot.lane.b32.xlu0 %v25, 96
  %v1529 = vpop.permute.xlu0 %1528
  %1530 = vrot.lane.b32.xlu0 %v16, 96
  %v1531 = vpop.permute.xlu0 %1530
  %1532 = vrot.lane.b32.xlu0 %v26, 96
  %v1533 = vpop.permute.xlu0 %1532
  %1534 = vrot.lane.b32.xlu0 %v17, 96
  %v1535 = vpop.permute.xlu0 %1534
  %vm1536 = vcmask 785408
  %v1537 = vsel %vm1536, %v1523, %v1525
  %v1538 = vsel %vm1536, %v1525, %v1527
  %v1539 = vsel %vm1536, %v1527, %v1529
  %v1540 = vsel %vm1536, %v1529, %v1531
  %v1541 = vsel %vm1536, %v1531, %v1533
  %v1542 = vsel %vm1536, %v1533, %v1535
  %v1544 = vsel %vm45, %v1520, 0
  %v1546 = vsel %vm49, %v1537, 0
  %v1548 = vsel %vm49, %v1538, 0
  %v1550 = vsel %vm49, %v1539, 0
  %v1552 = vsel %vm49, %v1540, 0
  %v1554 = vsel %vm49, %v1541, 0
  %v1556 = vsel %vm49, %v1542, 0
  %1558 = vmatprep.subr.mxu0 %v1548
  %1559 = vmatpush1.msra.mxu0 %v1546
  %1560 = vmatprep.subr.mxu0 0.0
  %1561 = vmatpush1.msra.mxu0 0.0
  %1562 = vmatprep.subr.mxu0 0.0
  %1563 = vmatpush1.msra.mxu0 0.0
  %1564 = vmatprep.subr.mxu0 0.0
  %1565 = vmatpush1.msra.mxu0 0.0
  %1566 = vmatprep.subr.mxu0 0.0
  %1567 = vmatpush1.msra.mxu0 0.0
  %1568 = vmatprep.subr.mxu0 0.0
  %1569 = vmatpush1.msra.mxu0 0.0
  %1570 = vmatprep.subr.mxu0 0.0
  %1571 = vmatpush1.msra.mxu0 0.0
  %1572 = vmatprep.subr.mxu0 0.0
  %1573 = vmatpush1.msra.mxu0 0.0
  %1574 = vmatprep.subr.mxu0 0.0
  %1575 = vmatpush1.msra.mxu0 0.0
  %1576 = vmatprep.subr.mxu0 0.0
  %1577 = vmatpush1.msra.mxu0 0.0
  %1578 = vmatprep.subr.mxu0 0.0
  %1579 = vmatpush1.msra.mxu0 0.0
  %1580 = vmatprep.subr.mxu0 0.0
  %1581 = vmatpush1.msra.mxu0 0.0
  %1582 = vmatprep.subr.mxu0 0.0
  %1583 = vmatpush1.msra.mxu0 0.0
  %1584 = vmatprep.subr.mxu0 0.0
  %1585 = vmatpush1.msra.mxu0 0.0
  %1586 = vmatprep.subr.mxu0 0.0
  %1587 = vmatpush1.msra.mxu0 0.0
  %1588 = vmatprep.subr.mxu0 0.0
  %1589 = vmatpush1.msra.mxu0 0.0
  %1590 = vmatprep.subr.mxu0 0.0
  %1591 = vmatpush1.msra.mxu0 0.0
  %1592 = vmatprep.subr.mxu0 0.0
  %1593 = vmatpush1.msra.mxu0 0.0
  %1594 = vmatprep.subr.mxu0 0.0
  %1595 = vmatpush1.msra.mxu0 0.0
  %1596 = vmatprep.subr.mxu0 0.0
  %1597 = vmatpush1.msra.mxu0 0.0
  %1598 = vmatprep.subr.mxu0 0.0
  %1599 = vmatpush1.msra.mxu0 0.0
  %1600 = vmatprep.subr.mxu0 0.0
  %1601 = vmatpush1.msra.mxu0 0.0
  %1602 = vmatprep.subr.mxu0 0.0
  %1603 = vmatpush1.msra.mxu0 0.0
  %1604 = vmatprep.subr.mxu0 0.0
  %1605 = vmatpush1.msra.mxu0 0.0
  %1606 = vmatprep.subr.mxu0 0.0
  %1607 = vmatpush1.msra.mxu0 0.0
  %1608 = vmatprep.subr.mxu0 0.0
  %1609 = vmatpush1.msra.mxu0 0.0
  %1610 = vmatprep.subr.mxu0 0.0
  %1611 = vmatpush1.msra.mxu0 0.0
  %1612 = vmatprep.subr.mxu0 0.0
  %1613 = vmatpush1.msra.mxu0 0.0
  %1614 = vmatprep.subr.mxu0 0.0
  %1615 = vmatpush1.msra.mxu0 0.0
  %1616 = vmatprep.subr.mxu0 0.0
  %1617 = vmatpush1.msra.mxu0 0.0
  %1618 = vmatprep.subr.mxu0 0.0
  %1619 = vmatpush1.msra.mxu0 0.0
  %1620 = vmatprep.subr.mxu0 0.0
  %1621 = vmatpush1.msra.mxu0 0.0
  %1622 = vmatprep.mubr.f32.mxu0 0.0
  %1623 = vmatmul.mubr.f32.gmra.mrb[0].mxu0 %v1544
  %v1624 = vpop.f32.mrb[0].mxu0
  %v1625 = vadd.f32 0.0, %v1624
  %v1626 = vpop.f32.mrb[0].mxu0
  %v1627 = vadd.f32 0.0, %v1626
  %1628 = vdwg.mxu0
  %1629 = vmatprep.subr.mxu0 %v1552
  %1630 = vmatpush1.msra.mxu0 %v1550
  %1631 = vmatprep.subr.mxu0 0.0
  %1632 = vmatpush1.msra.mxu0 0.0
  %1633 = vmatprep.subr.mxu0 0.0
  %1634 = vmatpush1.msra.mxu0 0.0
  %1635 = vmatprep.subr.mxu0 0.0
  %1636 = vmatpush1.msra.mxu0 0.0
  %1637 = vmatprep.subr.mxu0 0.0
  %1638 = vmatpush1.msra.mxu0 0.0
  %1639 = vmatprep.subr.mxu0 0.0
  %1640 = vmatpush1.msra.mxu0 0.0
  %1641 = vmatprep.subr.mxu0 0.0
  %1642 = vmatpush1.msra.mxu0 0.0
  %1643 = vmatprep.subr.mxu0 0.0
  %1644 = vmatpush1.msra.mxu0 0.0
  %1645 = vmatprep.subr.mxu0 0.0
  %1646 = vmatpush1.msra.mxu0 0.0
  %1647 = vmatprep.subr.mxu0 0.0
  %1648 = vmatpush1.msra.mxu0 0.0
  %1649 = vmatprep.subr.mxu0 0.0
  %1650 = vmatpush1.msra.mxu0 0.0
  %1651 = vmatprep.subr.mxu0 0.0
  %1652 = vmatpush1.msra.mxu0 0.0
  %1653 = vmatprep.subr.mxu0 0.0
  %1654 = vmatpush1.msra.mxu0 0.0
  %1655 = vmatprep.subr.mxu0 0.0
  %1656 = vmatpush1.msra.mxu0 0.0
  %1657 = vmatprep.subr.mxu0 0.0
  %1658 = vmatpush1.msra.mxu0 0.0
  %1659 = vmatprep.subr.mxu0 0.0
  %1660 = vmatpush1.msra.mxu0 0.0
  %1661 = vmatprep.subr.mxu0 0.0
  %1662 = vmatpush1.msra.mxu0 0.0
  %1663 = vmatprep.subr.mxu0 0.0
  %1664 = vmatpush1.msra.mxu0 0.0
  %1665 = vmatprep.subr.mxu0 0.0
  %1666 = vmatpush1.msra.mxu0 0.0
  %1667 = vmatprep.subr.mxu0 0.0
  %1668 = vmatpush1.msra.mxu0 0.0
  %1669 = vmatprep.subr.mxu0 0.0
  %1670 = vmatpush1.msra.mxu0 0.0
  %1671 = vmatprep.subr.mxu0 0.0
  %1672 = vmatpush1.msra.mxu0 0.0
  %1673 = vmatprep.subr.mxu0 0.0
  %1674 = vmatpush1.msra.mxu0 0.0
  %1675 = vmatprep.subr.mxu0 0.0
  %1676 = vmatpush1.msra.mxu0 0.0
  %1677 = vmatprep.subr.mxu0 0.0
  %1678 = vmatpush1.msra.mxu0 0.0
  %1679 = vmatprep.subr.mxu0 0.0
  %1680 = vmatpush1.msra.mxu0 0.0
  %1681 = vmatprep.subr.mxu0 0.0
  %1682 = vmatpush1.msra.mxu0 0.0
  %1683 = vmatprep.subr.mxu0 0.0
  %1684 = vmatpush1.msra.mxu0 0.0
  %1685 = vmatprep.subr.mxu0 0.0
  %1686 = vmatpush1.msra.mxu0 0.0
  %1687 = vmatprep.subr.mxu0 0.0
  %1688 = vmatpush1.msra.mxu0 0.0
  %1689 = vmatprep.subr.mxu0 0.0
  %1690 = vmatpush1.msra.mxu0 0.0
  %1691 = vmatprep.subr.mxu0 0.0
  %1692 = vmatpush1.msra.mxu0 0.0
  %1693 = vmatprep.mubr.f32.mxu0 0.0
  %1694 = vmatmul.mubr.f32.gmra.mrb[0].mxu0 %v1544
  %v1695 = vpop.f32.mrb[0].mxu0
  %v1696 = vadd.f32 0.0, %v1695
  %v1697 = vpop.f32.mrb[0].mxu0
  %v1698 = vadd.f32 0.0, %v1697
  %1699 = vdwg.mxu0
  %1700 = vmatprep.subr.mxu0 %v1556
  %1701 = vmatpush1.msra.mxu0 %v1554
  %1702 = vmatprep.subr.mxu0 0.0
  %1703 = vmatpush1.msra.mxu0 0.0
  %1704 = vmatprep.subr.mxu0 0.0
  %1705 = vmatpush1.msra.mxu0 0.0
  %1706 = vmatprep.subr.mxu0 0.0
  %1707 = vmatpush1.msra.mxu0 0.0
  %1708 = vmatprep.subr.mxu0 0.0
  %1709 = vmatpush1.msra.mxu0 0.0
  %1710 = vmatprep.subr.mxu0 0.0
  %1711 = vmatpush1.msra.mxu0 0.0
  %1712 = vmatprep.subr.mxu0 0.0
  %1713 = vmatpush1.msra.mxu0 0.0
  %1714 = vmatprep.subr.mxu0 0.0
  %1715 = vmatpush1.msra.mxu0 0.0
  %1716 = vmatprep.subr.mxu0 0.0
  %1717 = vmatpush1.msra.mxu0 0.0
  %1718 = vmatprep.subr.mxu0 0.0
  %1719 = vmatpush1.msra.mxu0 0.0
  %1720 = vmatprep.subr.mxu0 0.0
  %1721 = vmatpush1.msra.mxu0 0.0
  %1722 = vmatprep.subr.mxu0 0.0
  %1723 = vmatpush1.msra.mxu0 0.0
  %1724 = vmatprep.subr.mxu0 0.0
  %1725 = vmatpush1.msra.mxu0 0.0
  %1726 = vmatprep.subr.mxu0 0.0
  %1727 = vmatpush1.msra.mxu0 0.0
  %1728 = vmatprep.subr.mxu0 0.0
  %1729 = vmatpush1.msra.mxu0 0.0
  %1730 = vmatprep.subr.mxu0 0.0
  %1731 = vmatpush1.msra.mxu0 0.0
  %1732 = vmatprep.subr.mxu0 0.0
  %1733 = vmatpush1.msra.mxu0 0.0
  %1734 = vmatprep.subr.mxu0 0.0
  %1735 = vmatpush1.msra.mxu0 0.0
  %1736 = vmatprep.subr.mxu0 0.0
  %1737 = vmatpush1.msra.mxu0 0.0
  %1738 = vmatprep.subr.mxu0 0.0
  %1739 = vmatpush1.msra.mxu0 0.0
  %1740 = vmatprep.subr.mxu0 0.0
  %1741 = vmatpush1.msra.mxu0 0.0
  %1742 = vmatprep.subr.mxu0 0.0
  %1743 = vmatpush1.msra.mxu0 0.0
  %1744 = vmatprep.subr.mxu0 0.0
  %1745 = vmatpush1.msra.mxu0 0.0
  %1746 = vmatprep.subr.mxu0 0.0
  %1747 = vmatpush1.msra.mxu0 0.0
  %1748 = vmatprep.subr.mxu0 0.0
  %1749 = vmatpush1.msra.mxu0 0.0
  %1750 = vmatprep.subr.mxu0 0.0
  %1751 = vmatpush1.msra.mxu0 0.0
  %1752 = vmatprep.subr.mxu0 0.0
  %1753 = vmatpush1.msra.mxu0 0.0
  %1754 = vmatprep.subr.mxu0 0.0
  %1755 = vmatpush1.msra.mxu0 0.0
  %1756 = vmatprep.subr.mxu0 0.0
  %1757 = vmatpush1.msra.mxu0 0.0
  %1758 = vmatprep.subr.mxu0 0.0
  %1759 = vmatpush1.msra.mxu0 0.0
  %1760 = vmatprep.subr.mxu0 0.0
  %1761 = vmatpush1.msra.mxu0 0.0
  %1762 = vmatprep.subr.mxu0 0.0
  %1763 = vmatpush1.msra.mxu0 0.0
  %1764 = vmatprep.mubr.f32.mxu0 0.0
  %1765 = vmatmul.mubr.f32.gmra.mrb[0].mxu0 %v1544
  %v1766 = vpop.f32.mrb[0].mxu0
  %v1767 = vadd.f32 0.0, %v1766
  %v1768 = vpop.f32.mrb[0].mxu0
  %v1769 = vadd.f32 0.0, %v1768
  %1770 = vdwg.mxu0
  %v1771 = vadd.f32 %v1513, %v1625
  %v1772 = vadd.f32 %v1514, %v1627
  %v1773 = vadd.f32 %v1515, %v1696
  %v1774 = vadd.f32 %v1516, %v1698
  %v1775 = vadd.f32 %v1517, %v1767
  %v1776 = vadd.f32 %v1518, %v1769
  %s1777 = scalar_lea.vmem %s1, 56
  %v1778 = vld [vmem:[%s1777] sm:$0xff]
  %1779 = vrot.lane.b32.xlu0 %v14, 95
  %v1780 = vpop.permute.xlu0 %1779
  %1781 = vrot.lane.b32.xlu0 %v24, 95
  %v1782 = vpop.permute.xlu0 %1781
  %1783 = vrot.lane.b32.xlu0 %v15, 95
  %v1784 = vpop.permute.xlu0 %1783
  %1785 = vrot.lane.b32.xlu0 %v25, 95
  %v1786 = vpop.permute.xlu0 %1785
  %1787 = vrot.lane.b32.xlu0 %v16, 95
  %v1788 = vpop.permute.xlu0 %1787
  %1789 = vrot.lane.b32.xlu0 %v26, 95
  %v1790 = vpop.permute.xlu0 %1789
  %1791 = vrot.lane.b32.xlu0 %v17, 95
  %v1792 = vpop.permute.xlu0 %1791
  %vm1793 = vcmask 777216
  %v1794 = vsel %vm1793, %v1780, %v1782
  %v1795 = vsel %vm1793, %v1782, %v1784
  %v1796 = vsel %vm1793, %v1784, %v1786
  %v1797 = vsel %vm1793, %v1786, %v1788
  %v1798 = vsel %vm1793, %v1788, %v1790
  %v1799 = vsel %vm1793, %v1790, %v1792
  %v1801 = vsel %vm45, %v1778, 0
  %v1803 = vsel %vm49, %v1794, 0
  %v1805 = vsel %vm49, %v1795, 0
  %v1807 = vsel %vm49, %v1796, 0
  %v1809 = vsel %vm49, %v1797, 0
  %v1811 = vsel %vm49, %v1798, 0
  %v1813 = vsel %vm49, %v1799, 0
  %1815 = vmatprep.subr.mxu0 %v1805
  %1816 = vmatpush1.msra.mxu0 %v1803
  %1817 = vmatprep.subr.mxu0 0.0
  %1818 = vmatpush1.msra.mxu0 0.0
  %1819 = vmatprep.subr.mxu0 0.0
  %1820 = vmatpush1.msra.mxu0 0.0
  %1821 = vmatprep.subr.mxu0 0.0
  %1822 = vmatpush1.msra.mxu0 0.0
  %1823 = vmatprep.subr.mxu0 0.0
  %1824 = vmatpush1.msra.mxu0 0.0
  %1825 = vmatprep.subr.mxu0 0.0
  %1826 = vmatpush1.msra.mxu0 0.0
  %1827 = vmatprep.subr.mxu0 0.0
  %1828 = vmatpush1.msra.mxu0 0.0
  %1829 = vmatprep.subr.mxu0 0.0
  %1830 = vmatpush1.msra.mxu0 0.0
  %1831 = vmatprep.subr.mxu0 0.0
  %1832 = vmatpush1.msra.mxu0 0.0
  %1833 = vmatprep.subr.mxu0 0.0
  %1834 = vmatpush1.msra.mxu0 0.0
  %1835 = vmatprep.subr.mxu0 0.0
  %1836 = vmatpush1.msra.mxu0 0.0
  %1837 = vmatprep.subr.mxu0 0.0
  %1838 = vmatpush1.msra.mxu0 0.0
  %1839 = vmatprep.subr.mxu0 0.0
  %1840 = vmatpush1.msra.mxu0 0.0
  %1841 = vmatprep.subr.mxu0 0.0
  %1842 = vmatpush1.msra.mxu0 0.0
  %1843 = vmatprep.subr.mxu0 0.0
  %1844 = vmatpush1.msra.mxu0 0.0
  %1845 = vmatprep.subr.mxu0 0.0
  %1846 = vmatpush1.msra.mxu0 0.0
  %1847 = vmatprep.subr.mxu0 0.0
  %1848 = vmatpush1.msra.mxu0 0.0
  %1849 = vmatprep.subr.mxu0 0.0
  %1850 = vmatpush1.msra.mxu0 0.0
  %1851 = vmatprep.subr.mxu0 0.0
  %1852 = vmatpush1.msra.mxu0 0.0
  %1853 = vmatprep.subr.mxu0 0.0
  %1854 = vmatpush1.msra.mxu0 0.0
  %1855 = vmatprep.subr.mxu0 0.0
  %1856 = vmatpush1.msra.mxu0 0.0
  %1857 = vmatprep.subr.mxu0 0.0
  %1858 = vmatpush1.msra.mxu0 0.0
  %1859 = vmatprep.subr.mxu0 0.0
  %1860 = vmatpush1.msra.mxu0 0.0
  %1861 = vmatprep.subr.mxu0 0.0
  %1862 = vmatpush1.msra.mxu0 0.0
  %1863 = vmatprep.subr.mxu0 0.0
  %1864 = vmatpush1.msra.mxu0 0.0
  %1865 = vmatprep.subr.mxu0 0.0
  %1866 = vmatpush1.msra.mxu0 0.0
  %1867 = vmatprep.subr.mxu0 0.0
  %1868 = vmatpush1.msra.mxu0 0.0
  %1869 = vmatprep.subr.mxu0 0.0
  %1870 = vmatpush1.msra.mxu0 0.0
  %1871 = vmatprep.subr.mxu0 0.0
  %1872 = vmatpush1.msra.mxu0 0.0
  %1873 = vmatprep.subr.mxu0 0.0
  %1874 = vmatpush1.msra.mxu0 0.0
  %1875 = vmatprep.subr.mxu0 0.0
  %1876 = vmatpush1.msra.mxu0 0.0
  %1877 = vmatprep.subr.mxu0 0.0
  %1878 = vmatpush1.msra.mxu0 0.0
  %1879 = vmatprep.mubr.f32.mxu0 0.0
  %1880 = vmatmul.mubr.f32.gmra.mrb[0].mxu0 %v1801
  %v1881 = vpop.f32.mrb[0].mxu0
  %v1882 = vadd.f32 0.0, %v1881
  %v1883 = vpop.f32.mrb[0].mxu0
  %v1884 = vadd.f32 0.0, %v1883
  %1885 = vdwg.mxu0
  %1886 = vmatprep.subr.mxu0 %v1809
  %1887 = vmatpush1.msra.mxu0 %v1807
  %1888 = vmatprep.subr.mxu0 0.0
  %1889 = vmatpush1.msra.mxu0 0.0
  %1890 = vmatprep.subr.mxu0 0.0
  %1891 = vmatpush1.msra.mxu0 0.0
  %1892 = vmatprep.subr.mxu0 0.0
  %1893 = vmatpush1.msra.mxu0 0.0
  %1894 = vmatprep.subr.mxu0 0.0
  %1895 = vmatpush1.msra.mxu0 0.0
  %1896 = vmatprep.subr.mxu0 0.0
  %1897 = vmatpush1.msra.mxu0 0.0
  %1898 = vmatprep.subr.mxu0 0.0
  %1899 = vmatpush1.msra.mxu0 0.0
  %1900 = vmatprep.subr.mxu0 0.0
  %1901 = vmatpush1.msra.mxu0 0.0
  %1902 = vmatprep.subr.mxu0 0.0
  %1903 = vmatpush1.msra.mxu0 0.0
  %1904 = vmatprep.subr.mxu0 0.0
  %1905 = vmatpush1.msra.mxu0 0.0
  %1906 = vmatprep.subr.mxu0 0.0
  %1907 = vmatpush1.msra.mxu0 0.0
  %1908 = vmatprep.subr.mxu0 0.0
  %1909 = vmatpush1.msra.mxu0 0.0
  %1910 = vmatprep.subr.mxu0 0.0
  %1911 = vmatpush1.msra.mxu0 0.0
  %1912 = vmatprep.subr.mxu0 0.0
  %1913 = vmatpush1.msra.mxu0 0.0
  %1914 = vmatprep.subr.mxu0 0.0
  %1915 = vmatpush1.msra.mxu0 0.0
  %1916 = vmatprep.subr.mxu0 0.0
  %1917 = vmatpush1.msra.mxu0 0.0
  %1918 = vmatprep.subr.mxu0 0.0
  %1919 = vmatpush1.msra.mxu0 0.0
  %1920 = vmatprep.subr.mxu0 0.0
  %1921 = vmatpush1.msra.mxu0 0.0
  %1922 = vmatprep.subr.mxu0 0.0
  %1923 = vmatpush1.msra.mxu0 0.0
  %1924 = vmatprep.subr.mxu0 0.0
  %1925 = vmatpush1.msra.mxu0 0.0
  %1926 = vmatprep.subr.mxu0 0.0
  %1927 = vmatpush1.msra.mxu0 0.0
  %1928 = vmatprep.subr.mxu0 0.0
  %1929 = vmatpush1.msra.mxu0 0.0
  %1930 = vmatprep.subr.mxu0 0.0
  %1931 = vmatpush1.msra.mxu0 0.0
  %1932 = vmatprep.subr.mxu0 0.0
  %1933 = vmatpush1.msra.mxu0 0.0
  %1934 = vmatprep.subr.mxu0 0.0
  %1935 = vmatpush1.msra.mxu0 0.0
  %1936 = vmatprep.subr.mxu0 0.0
  %1937 = vmatpush1.msra.mxu0 0.0
  %1938 = vmatprep.subr.mxu0 0.0
  %1939 = vmatpush1.msra.mxu0 0.0
  %1940 = vmatprep.subr.mxu0 0.0
  %1941 = vmatpush1.msra.mxu0 0.0
  %1942 = vmatprep.subr.mxu0 0.0
  %1943 = vmatpush1.msra.mxu0 0.0
  %1944 = vmatprep.subr.mxu0 0.0
  %1945 = vmatpush1.msra.mxu0 0.0
  %1946 = vmatprep.subr.mxu0 0.0
  %1947 = vmatpush1.msra.mxu0 0.0
  %1948 = vmatprep.subr.mxu0 0.0
  %1949 = vmatpush1.msra.mxu0 0.0
  %1950 = vmatprep.mubr.f32.mxu0 0.0
  %1951 = vmatmul.mubr.f32.gmra.mrb[0].mxu0 %v1801
  %v1952 = vpop.f32.mrb[0].mxu0
  %v1953 = vadd.f32 0.0, %v1952
  %v1954 = vpop.f32.mrb[0].mxu0
  %v1955 = vadd.f32 0.0, %v1954
  %1956 = vdwg.mxu0
  %1957 = vmatprep.subr.mxu0 %v1813
  %1958 = vmatpush1.msra.mxu0 %v1811
  %1959 = vmatprep.subr.mxu0 0.0
  %1960 = vmatpush1.msra.mxu0 0.0
  %1961 = vmatprep.subr.mxu0 0.0
  %1962 = vmatpush1.msra.mxu0 0.0
  %1963 = vmatprep.subr.mxu0 0.0
  %1964 = vmatpush1.msra.mxu0 0.0
  %1965 = vmatprep.subr.mxu0 0.0
  %1966 = vmatpush1.msra.mxu0 0.0
  %1967 = vmatprep.subr.mxu0 0.0
  %1968 = vmatpush1.msra.mxu0 0.0
  %1969 = vmatprep.subr.mxu0 0.0
  %1970 = vmatpush1.msra.mxu0 0.0
  %1971 = vmatprep.subr.mxu0 0.0
  %1972 = vmatpush1.msra.mxu0 0.0
  %1973 = vmatprep.subr.mxu0 0.0
  %1974 = vmatpush1.msra.mxu0 0.0
  %1975 = vmatprep.subr.mxu0 0.0
  %1976 = vmatpush1.msra.mxu0 0.0
  %1977 = vmatprep.subr.mxu0 0.0
  %1978 = vmatpush1.msra.mxu0 0.0
  %1979 = vmatprep.subr.mxu0 0.0
  %1980 = vmatpush1.msra.mxu0 0.0
  %1981 = vmatprep.subr.mxu0 0.0
  %1982 = vmatpush1.msra.mxu0 0.0
  %1983 = vmatprep.subr.mxu0 0.0
  %1984 = vmatpush1.msra.mxu0 0.0
  %1985 = vmatprep.subr.mxu0 0.0
  %1986 = vmatpush1.msra.mxu0 0.0
  %1987 = vmatprep.subr.mxu0 0.0
  %1988 = vmatpush1.msra.mxu0 0.0
  %1989 = vmatprep.subr.mxu0 0.0
  %1990 = vmatpush1.msra.mxu0 0.0
  %1991 = vmatprep.subr.mxu0 0.0
  %1992 = vmatpush1.msra.mxu0 0.0
  %1993 = vmatprep.subr.mxu0 0.0
  %1994 = vmatpush1.msra.mxu0 0.0
  %1995 = vmatprep.subr.mxu0 0.0
  %1996 = vmatpush1.msra.mxu0 0.0
  %1997 = vmatprep.subr.mxu0 0.0
  %1998 = vmatpush1.msra.mxu0 0.0
  %1999 = vmatprep.subr.mxu0 0.0
  %2000 = vmatpush1.msra.mxu0 0.0
  %2001 = vmatprep.subr.mxu0 0.0
  %2002 = vmatpush1.msra.mxu0 0.0
  %2003 = vmatprep.subr.mxu0 0.0
  %2004 = vmatpush1.msra.mxu0 0.0
  %2005 = vmatprep.subr.mxu0 0.0
  %2006 = vmatpush1.msra.mxu0 0.0
  %2007 = vmatprep.subr.mxu0 0.0
  %2008 = vmatpush1.msra.mxu0 0.0
  %2009 = vmatprep.subr.mxu0 0.0
  %2010 = vmatpush1.msra.mxu0 0.0
  %2011 = vmatprep.subr.mxu0 0.0
  %2012 = vmatpush1.msra.mxu0 0.0
  %2013 = vmatprep.subr.mxu0 0.0
  %2014 = vmatpush1.msra.mxu0 0.0
  %2015 = vmatprep.subr.mxu0 0.0
  %2016 = vmatpush1.msra.mxu0 0.0
  %2017 = vmatprep.subr.mxu0 0.0
  %2018 = vmatpush1.msra.mxu0 0.0
  %2019 = vmatprep.subr.mxu0 0.0
  %2020 = vmatpush1.msra.mxu0 0.0
  %2021 = vmatprep.mubr.f32.mxu0 0.0
  %2022 = vmatmul.mubr.f32.gmra.mrb[0].mxu0 %v1801
  %v2023 = vpop.f32.mrb[0].mxu0
  %v2024 = vadd.f32 0.0, %v2023
  %v2025 = vpop.f32.mrb[0].mxu0
  %v2026 = vadd.f32 0.0, %v2025
  %2027 = vdwg.mxu0
  %v2028 = vadd.f32 %v1771, %v1882
  %v2029 = vadd.f32 %v1772, %v1884
  %v2030 = vadd.f32 %v1773, %v1953
  %v2031 = vadd.f32 %v1774, %v1955
  %v2032 = vadd.f32 %v1775, %v2024
  %v2033 = vadd.f32 %v1776, %v2026
  %s2034 = scalar_lea.vmem %s1, 64
  %v2035 = vld [vmem:[%s2034] sm:$0xff]
  %2036 = vrot.lane.b32.xlu0 %v14, 94
  %v2037 = vpop.permute.xlu0 %2036
  %2038 = vrot.lane.b32.xlu0 %v24, 94
  %v2039 = vpop.permute.xlu0 %2038
  %2040 = vrot.lane.b32.xlu0 %v15, 94
  %v2041 = vpop.permute.xlu0 %2040
  %2042 = vrot.lane.b32.xlu0 %v25, 94
  %v2043 = vpop.permute.xlu0 %2042
  %2044 = vrot.lane.b32.xlu0 %v16, 94
  %v2045 = vpop.permute.xlu0 %2044
  %2046 = vrot.lane.b32.xlu0 %v26, 94
  %v2047 = vpop.permute.xlu0 %2046
  %2048 = vrot.lane.b32.xlu0 %v17, 94
  %v2049 = vpop.permute.xlu0 %2048
  %vm2050 = vcmask 769024
  %v2051 = vsel %vm2050, %v2037, %v2039
  %v2052 = vsel %vm2050, %v2039, %v2041
  %v2053 = vsel %vm2050, %v2041, %v2043
  %v2054 = vsel %vm2050, %v2043, %v2045
  %v2055 = vsel %vm2050, %v2045, %v2047
  %v2056 = vsel %vm2050, %v2047, %v2049
  %v2058 = vsel %vm45, %v2035, 0
  %v2060 = vsel %vm49, %v2051, 0
  %v2062 = vsel %vm49, %v2052, 0
  %v2064 = vsel %vm49, %v2053, 0
  %v2066 = vsel %vm49, %v2054, 0
  %v2068 = vsel %vm49, %v2055, 0
  %v2070 = vsel %vm49, %v2056, 0
  %2072 = vmatprep.subr.mxu0 %v2062
  %2073 = vmatpush1.msra.mxu0 %v2060
  %2074 = vmatprep.subr.mxu0 0.0
  %2075 = vmatpush1.msra.mxu0 0.0
  %2076 = vmatprep.subr.mxu0 0.0
  %2077 = vmatpush1.msra.mxu0 0.0
  %2078 = vmatprep.subr.mxu0 0.0
  %2079 = vmatpush1.msra.mxu0 0.0
  %2080 = vmatprep.subr.mxu0 0.0
  %2081 = vmatpush1.msra.mxu0 0.0
  %2082 = vmatprep.subr.mxu0 0.0
  %2083 = vmatpush1.msra.mxu0 0.0
  %2084 = vmatprep.subr.mxu0 0.0
  %2085 = vmatpush1.msra.mxu0 0.0
  %2086 = vmatprep.subr.mxu0 0.0
  %2087 = vmatpush1.msra.mxu0 0.0
  %2088 = vmatprep.subr.mxu0 0.0
  %2089 = vmatpush1.msra.mxu0 0.0
  %2090 = vmatprep.subr.mxu0 0.0
  %2091 = vmatpush1.msra.mxu0 0.0
  %2092 = vmatprep.subr.mxu0 0.0
  %2093 = vmatpush1.msra.mxu0 0.0
  %2094 = vmatprep.subr.mxu0 0.0
  %2095 = vmatpush1.msra.mxu0 0.0
  %2096 = vmatprep.subr.mxu0 0.0
  %2097 = vmatpush1.msra.mxu0 0.0
  %2098 = vmatprep.subr.mxu0 0.0
  %2099 = vmatpush1.msra.mxu0 0.0
  %2100 = vmatprep.subr.mxu0 0.0
  %2101 = vmatpush1.msra.mxu0 0.0
  %2102 = vmatprep.subr.mxu0 0.0
  %2103 = vmatpush1.msra.mxu0 0.0
  %2104 = vmatprep.subr.mxu0 0.0
  %2105 = vmatpush1.msra.mxu0 0.0
  %2106 = vmatprep.subr.mxu0 0.0
  %2107 = vmatpush1.msra.mxu0 0.0
  %2108 = vmatprep.subr.mxu0 0.0
  %2109 = vmatpush1.msra.mxu0 0.0
  %2110 = vmatprep.subr.mxu0 0.0
  %2111 = vmatpush1.msra.mxu0 0.0
  %2112 = vmatprep.subr.mxu0 0.0
  %2113 = vmatpush1.msra.mxu0 0.0
  %2114 = vmatprep.subr.mxu0 0.0
  %2115 = vmatpush1.msra.mxu0 0.0
  %2116 = vmatprep.subr.mxu0 0.0
  %2117 = vmatpush1.msra.mxu0 0.0
  %2118 = vmatprep.subr.mxu0 0.0
  %2119 = vmatpush1.msra.mxu0 0.0
  %2120 = vmatprep.subr.mxu0 0.0
  %2121 = vmatpush1.msra.mxu0 0.0
  %2122 = vmatprep.subr.mxu0 0.0
  %2123 = vmatpush1.msra.mxu0 0.0
  %2124 = vmatprep.subr.mxu0 0.0
  %2125 = vmatpush1.msra.mxu0 0.0
  %2126 = vmatprep.subr.mxu0 0.0
  %2127 = vmatpush1.msra.mxu0 0.0
  %2128 = vmatprep.subr.mxu0 0.0
  %2129 = vmatpush1.msra.mxu0 0.0
  %2130 = vmatprep.subr.mxu0 0.0
  %2131 = vmatpush1.msra.mxu0 0.0
  %2132 = vmatprep.subr.mxu0 0.0
  %2133 = vmatpush1.msra.mxu0 0.0
  %2134 = vmatprep.subr.mxu0 0.0
  %2135 = vmatpush1.msra.mxu0 0.0
  %2136 = vmatprep.mubr.f32.mxu0 0.0
  %2137 = vmatmul.mubr.f32.gmra.mrb[0].mxu0 %v2058
  %v2138 = vpop.f32.mrb[0].mxu0
  %v2139 = vadd.f32 0.0, %v2138
  %v2140 = vpop.f32.mrb[0].mxu0
  %v2141 = vadd.f32 0.0, %v2140
  %2142 = vdwg.mxu0
  %2143 = vmatprep.subr.mxu0 %v2066
  %2144 = vmatpush1.msra.mxu0 %v2064
  %2145 = vmatprep.subr.mxu0 0.0
  %2146 = vmatpush1.msra.mxu0 0.0
  %2147 = vmatprep.subr.mxu0 0.0
  %2148 = vmatpush1.msra.mxu0 0.0
  %2149 = vmatprep.subr.mxu0 0.0
  %2150 = vmatpush1.msra.mxu0 0.0
  %2151 = vmatprep.subr.mxu0 0.0
  %2152 = vmatpush1.msra.mxu0 0.0
  %2153 = vmatprep.subr.mxu0 0.0
  %2154 = vmatpush1.msra.mxu0 0.0
  %2155 = vmatprep.subr.mxu0 0.0
  %2156 = vmatpush1.msra.mxu0 0.0
  %2157 = vmatprep.subr.mxu0 0.0
  %2158 = vmatpush1.msra.mxu0 0.0
  %2159 = vmatprep.subr.mxu0 0.0
  %2160 = vmatpush1.msra.mxu0 0.0
  %2161 = vmatprep.subr.mxu0 0.0
  %2162 = vmatpush1.msra.mxu0 0.0
  %2163 = vmatprep.subr.mxu0 0.0
  %2164 = vmatpush1.msra.mxu0 0.0
  %2165 = vmatprep.subr.mxu0 0.0
  %2166 = vmatpush1.msra.mxu0 0.0
  %2167 = vmatprep.subr.mxu0 0.0
  %2168 = vmatpush1.msra.mxu0 0.0
  %2169 = vmatprep.subr.mxu0 0.0
  %2170 = vmatpush1.msra.mxu0 0.0
  %2171 = vmatprep.subr.mxu0 0.0
  %2172 = vmatpush1.msra.mxu0 0.0
  %2173 = vmatprep.subr.mxu0 0.0
  %2174 = vmatpush1.msra.mxu0 0.0
  %2175 = vmatprep.subr.mxu0 0.0
  %2176 = vmatpush1.msra.mxu0 0.0
  %2177 = vmatprep.subr.mxu0 0.0
  %2178 = vmatpush1.msra.mxu0 0.0
  %2179 = vmatprep.subr.mxu0 0.0
  %2180 = vmatpush1.msra.mxu0 0.0
  %2181 = vmatprep.subr.mxu0 0.0
  %2182 = vmatpush1.msra.mxu0 0.0
  %2183 = vmatprep.subr.mxu0 0.0
  %2184 = vmatpush1.msra.mxu0 0.0
  %2185 = vmatprep.subr.mxu0 0.0
  %2186 = vmatpush1.msra.mxu0 0.0
  %2187 = vmatprep.subr.mxu0 0.0
  %2188 = vmatpush1.msra.mxu0 0.0
  %2189 = vmatprep.subr.mxu0 0.0
  %2190 = vmatpush1.msra.mxu0 0.0
  %2191 = vmatprep.subr.mxu0 0.0
  %2192 = vmatpush1.msra.mxu0 0.0
  %2193 = vmatprep.subr.mxu0 0.0
  %2194 = vmatpush1.msra.mxu0 0.0
  %2195 = vmatprep.subr.mxu0 0.0
  %2196 = vmatpush1.msra.mxu0 0.0
  %2197 = vmatprep.subr.mxu0 0.0
  %2198 = vmatpush1.msra.mxu0 0.0
  %2199 = vmatprep.subr.mxu0 0.0
  %2200 = vmatpush1.msra.mxu0 0.0
  %2201 = vmatprep.subr.mxu0 0.0
  %2202 = vmatpush1.msra.mxu0 0.0
  %2203 = vmatprep.subr.mxu0 0.0
  %2204 = vmatpush1.msra.mxu0 0.0
  %2205 = vmatprep.subr.mxu0 0.0
  %2206 = vmatpush1.msra.mxu0 0.0
  %2207 = vmatprep.mubr.f32.mxu0 0.0
  %2208 = vmatmul.mubr.f32.gmra.mrb[0].mxu0 %v2058
  %v2209 = vpop.f32.mrb[0].mxu0
  %v2210 = vadd.f32 0.0, %v2209
  %v2211 = vpop.f32.mrb[0].mxu0
  %v2212 = vadd.f32 0.0, %v2211
  %2213 = vdwg.mxu0
  %2214 = vmatprep.subr.mxu0 %v2070
  %2215 = vmatpush1.msra.mxu0 %v2068
  %2216 = vmatprep.subr.mxu0 0.0
  %2217 = vmatpush1.msra.mxu0 0.0
  %2218 = vmatprep.subr.mxu0 0.0
  %2219 = vmatpush1.msra.mxu0 0.0
  %2220 = vmatprep.subr.mxu0 0.0
  %2221 = vmatpush1.msra.mxu0 0.0
  %2222 = vmatprep.subr.mxu0 0.0
  %2223 = vmatpush1.msra.mxu0 0.0
  %2224 = vmatprep.subr.mxu0 0.0
  %2225 = vmatpush1.msra.mxu0 0.0
  %2226 = vmatprep.subr.mxu0 0.0
  %2227 = vmatpush1.msra.mxu0 0.0
  %2228 = vmatprep.subr.mxu0 0.0
  %2229 = vmatpush1.msra.mxu0 0.0
  %2230 = vmatprep.subr.mxu0 0.0
  %2231 = vmatpush1.msra.mxu0 0.0
  %2232 = vmatprep.subr.mxu0 0.0
  %2233 = vmatpush1.msra.mxu0 0.0
  %2234 = vmatprep.subr.mxu0 0.0
  %2235 = vmatpush1.msra.mxu0 0.0
  %2236 = vmatprep.subr.mxu0 0.0
  %2237 = vmatpush1.msra.mxu0 0.0
  %2238 = vmatprep.subr.mxu0 0.0
  %2239 = vmatpush1.msra.mxu0 0.0
  %2240 = vmatprep.subr.mxu0 0.0
  %2241 = vmatpush1.msra.mxu0 0.0
  %2242 = vmatprep.subr.mxu0 0.0
  %2243 = vmatpush1.msra.mxu0 0.0
  %2244 = vmatprep.subr.mxu0 0.0
  %2245 = vmatpush1.msra.mxu0 0.0
  %2246 = vmatprep.subr.mxu0 0.0
  %2247 = vmatpush1.msra.mxu0 0.0
  %2248 = vmatprep.subr.mxu0 0.0
  %2249 = vmatpush1.msra.mxu0 0.0
  %2250 = vmatprep.subr.mxu0 0.0
  %2251 = vmatpush1.msra.mxu0 0.0
  %2252 = vmatprep.subr.mxu0 0.0
  %2253 = vmatpush1.msra.mxu0 0.0
  %2254 = vmatprep.subr.mxu0 0.0
  %2255 = vmatpush1.msra.mxu0 0.0
  %2256 = vmatprep.subr.mxu0 0.0
  %2257 = vmatpush1.msra.mxu0 0.0
  %2258 = vmatprep.subr.mxu0 0.0
  %2259 = vmatpush1.msra.mxu0 0.0
  %2260 = vmatprep.subr.mxu0 0.0
  %2261 = vmatpush1.msra.mxu0 0.0
  %2262 = vmatprep.subr.mxu0 0.0
  %2263 = vmatpush1.msra.mxu0 0.0
  %2264 = vmatprep.subr.mxu0 0.0
  %2265 = vmatpush1.msra.mxu0 0.0
  %2266 = vmatprep.subr.mxu0 0.0
  %2267 = vmatpush1.msra.mxu0 0.0
  %2268 = vmatprep.subr.mxu0 0.0
  %2269 = vmatpush1.msra.mxu0 0.0
  %2270 = vmatprep.subr.mxu0 0.0
  %2271 = vmatpush1.msra.mxu0 0.0
  %2272 = vmatprep.subr.mxu0 0.0
  %2273 = vmatpush1.msra.mxu0 0.0
  %2274 = vmatprep.subr.mxu0 0.0
  %2275 = vmatpush1.msra.mxu0 0.0
  %2276 = vmatprep.subr.mxu0 0.0
  %2277 = vmatpush1.msra.mxu0 0.0
  %2278 = vmatprep.mubr.f32.mxu0 0.0
  %2279 = vmatmul.mubr.f32.gmra.mrb[0].mxu0 %v2058
  %v2280 = vpop.f32.mrb[0].mxu0
  %v2281 = vadd.f32 0.0, %v2280
  %v2282 = vpop.f32.mrb[0].mxu0
  %v2283 = vadd.f32 0.0, %v2282
  %2284 = vdwg.mxu0
  %v2285 = vadd.f32 %v2028, %v2139
  %v2286 = vadd.f32 %v2029, %v2141
  %v2287 = vadd.f32 %v2030, %v2210
  %v2288 = vadd.f32 %v2031, %v2212
  %v2289 = vadd.f32 %v2032, %v2281
  %v2290 = vadd.f32 %v2033, %v2283
  %v2291 = vld [vmem:[%s2] sm:$0xff]
  %2293 = vset.pattern.permute.xlu0 0
  %2294 = vperm.xlu0 %2293, %v2291
  %v2295 = vpop.permute.xlu0 %2294
  %v2297 = vadd.f32 %v2285, %v2295
  %v2298 = vadd.f32 %v2286, %v2295
  %v2299 = vadd.f32 %v2287, %v2295
  %v2300 = vadd.f32 %v2288, %v2295
  %v2301 = vadd.f32 %v2289, %v2295
  %v2302 = vadd.f32 %v2290, %v2295
  %v2303 = vmax.f32 %v2297, 0.0
  %v2304 = vmax.f32 %v2298, 0.0
  %v2305 = vmax.f32 %v2299, 0.0
  %v2306 = vmax.f32 %v2300, 0.0
  %v2307 = vmax.f32 %v2301, 0.0
  %v2308 = vmax.f32 %v2302, 0.0
  %2309 = vxpose.xlu0.b32.start [1/16] %v2303, 128
  %2310 = vxpose.xlu0.b32.cont [2/16] 0.0, 128
  %2311 = vxpose.xlu0.b32.cont [3/16] 0.0, 128
  %2312 = vxpose.xlu0.b32.cont [4/16] 0.0, 128
  %2313 = vxpose.xlu0.b32.cont [5/16] 0.0, 128
  %2314 = vxpose.xlu0.b32.cont [6/16] 0.0, 128
  %2315 = vxpose.xlu0.b32.cont [7/16] 0.0, 128
  %2316 = vxpose.xlu0.b32.cont [8/16] 0.0, 128
  %2317 = vxpose.xlu0.b32.cont [9/16] 0.0, 128
  %2318 = vxpose.xlu0.b32.cont [10/16] 0.0, 128
  %2319 = vxpose.xlu0.b32.cont [11/16] 0.0, 128
  %2320 = vxpose.xlu0.b32.cont [12/16] 0.0, 128
  %2321 = vxpose.xlu0.b32.cont [13/16] 0.0, 128
  %2322 = vxpose.xlu0.b32.cont [14/16] 0.0, 128
  %2323 = vxpose.xlu0.b32.cont [15/16] 0.0, 128
  %2324 = vxpose.xlu0.b32.end [16/16] 0.0, 128
  %v2325 = vpop.trf.xlu0
  %v2326 = vpop.trf.xlu0
  %v2327 = vpop.trf.xlu0
  %v2328 = vpop.trf.xlu0
  %v2329 = vpop.trf.xlu0
  %v2330 = vpop.trf.xlu0
  %v2331 = vpop.trf.xlu0
  %v2332 = vpop.trf.xlu0
  %v2333 = vpop.trf.xlu0
  %v2334 = vpop.trf.xlu0
  %v2335 = vpop.trf.xlu0
  %v2336 = vpop.trf.xlu0
  %v2337 = vpop.trf.xlu0
  %v2338 = vpop.trf.xlu0
  %v2339 = vpop.trf.xlu0
  %v2340 = vpop.trf.xlu0
  %vm2341 = vcmask 64512
  %v2343 = vsel %vm2341, %v2325, 0
  %v2346 = vsel %vm2341, %v2326, 0
  %v2349 = vsel %vm2341, %v2327, 0
  %v2352 = vsel %vm2341, %v2328, 0
  %v2355 = vsel %vm2341, %v2329, 0
  %v2358 = vsel %vm2341, %v2330, 0
  %v2361 = vsel %vm2341, %v2331, 0
  %v2364 = vsel %vm2341, %v2332, 0
  %v2367 = vsel %vm2341, %v2333, 0
  %v2370 = vsel %vm2341, %v2334, 0
  %v2373 = vsel %vm2341, %v2335, 0
  %2375 = vmatprep.subr.mxu0 %v2306
  %2376 = vmatpush1.msra.mxu0 %v2305
  %2377 = vmatprep.subr.mxu0 0.0
  %2378 = vmatpush1.msra.mxu0 0.0
  %2379 = vmatprep.subr.mxu0 0.0
  %2380 = vmatpush1.msra.mxu0 0.0
  %2381 = vmatprep.subr.mxu0 0.0
  %2382 = vmatpush1.msra.mxu0 0.0
  %2383 = vmatprep.subr.mxu0 0.0
  %2384 = vmatpush1.msra.mxu0 0.0
  %2385 = vmatprep.subr.mxu0 0.0
  %2386 = vmatpush1.msra.mxu0 0.0
  %2387 = vmatprep.subr.mxu0 0.0
  %2388 = vmatpush1.msra.mxu0 0.0
  %2389 = vmatprep.subr.mxu0 0.0
  %2390 = vmatpush1.msra.mxu0 0.0
  %2391 = vmatprep.subr.mxu0 0.0
  %2392 = vmatpush1.msra.mxu0 0.0
  %2393 = vmatprep.subr.mxu0 0.0
  %2394 = vmatpush1.msra.mxu0 0.0
  %2395 = vmatprep.subr.mxu0 0.0
  %2396 = vmatpush1.msra.mxu0 0.0
  %2397 = vmatprep.subr.mxu0 0.0
  %2398 = vmatpush1.msra.mxu0 0.0
  %2399 = vmatprep.subr.mxu0 0.0
  %2400 = vmatpush1.msra.mxu0 0.0
  %2401 = vmatprep.subr.mxu0 0.0
  %2402 = vmatpush1.msra.mxu0 0.0
  %2403 = vmatprep.subr.mxu0 0.0
  %2404 = vmatpush1.msra.mxu0 0.0
  %2405 = vmatprep.subr.mxu0 0.0
  %2406 = vmatpush1.msra.mxu0 0.0
  %2407 = vmatprep.subr.mxu0 0.0
  %2408 = vmatpush1.msra.mxu0 0.0
  %2409 = vmatprep.subr.mxu0 0.0
  %2410 = vmatpush1.msra.mxu0 0.0
  %2411 = vmatprep.subr.mxu0 0.0
  %2412 = vmatpush1.msra.mxu0 0.0
  %2413 = vmatprep.subr.mxu0 0.0
  %2414 = vmatpush1.msra.mxu0 0.0
  %2415 = vmatprep.subr.mxu0 0.0
  %2416 = vmatpush1.msra.mxu0 0.0
  %2417 = vmatprep.subr.mxu0 0.0
  %2418 = vmatpush1.msra.mxu0 0.0
  %2419 = vmatprep.subr.mxu0 0.0
  %2420 = vmatpush1.msra.mxu0 0.0
  %2421 = vmatprep.subr.mxu0 0.0
  %2422 = vmatpush1.msra.mxu0 0.0
  %2423 = vmatprep.subr.mxu0 0.0
  %2424 = vmatpush1.msra.mxu0 0.0
  %2425 = vmatprep.subr.mxu0 0.0
  %2426 = vmatpush1.msra.mxu0 0.0
  %2427 = vmatprep.subr.mxu0 0.0
  %2428 = vmatpush1.msra.mxu0 0.0
  %2429 = vmatprep.subr.mxu0 0.0
  %2430 = vmatpush1.msra.mxu0 0.0
  %2431 = vmatprep.subr.mxu0 0.0
  %2432 = vmatpush1.msra.mxu0 0.0
  %2433 = vmatprep.subr.mxu0 0.0
  %2434 = vmatpush1.msra.mxu0 0.0
  %2435 = vmatprep.subr.mxu0 0.0
  %2436 = vmatpush1.msra.mxu0 0.0
  %2437 = vmatprep.subr.mxu0 0.0
  %2438 = vmatpush1.msra.mxu0 0.0
  %2439 = vmatprep.mubr.f32.mxu0 0.0
  %2440 = vmatmul.mubr.f32.gmra.mrb[0].mxu0 %v2343
  %v2441 = vpop.f32.mrb[0].mxu0
  %v2442 = vadd.f32 0.0, %v2441
  %v2443 = vpop.f32.mrb[0].mxu0
  %v2444 = vadd.f32 0.0, %v2443
  %2445 = vmatprep.mubr.f32.mxu0 0.0
  %2446 = vmatmul.mubr.f32.gmra.mrb[0].mxu0 %v2346
  %v2447 = vpop.f32.mrb[0].mxu0
  %v2448 = vpop.f32.mrb[0].mxu0
  %2449 = vmatprep.mubr.f32.mxu0 0.0
  %2450 = vmatmul.mubr.f32.gmra.mrb[0].mxu0 %v2349
  %v2451 = vpop.f32.mrb[0].mxu0
  %v2452 = vadd.f32 0.0, %v2451
  %v2453 = vpop.f32.mrb[0].mxu0
  %v2454 = vadd.f32 0.0, %v2453
  %2455 = vmatprep.mubr.f32.mxu0 0.0
  %2456 = vmatmul.mubr.f32.gmra.mrb[0].mxu0 %v2352
  %v2457 = vpop.f32.mrb[0].mxu0
  %v2458 = vpop.f32.mrb[0].mxu0
  %2459 = vmatprep.mubr.f32.mxu0 0.0
  %2460 = vmatmul.mubr.f32.gmra.mrb[0].mxu0 %v2355
  %v2461 = vpop.f32.mrb[0].mxu0
  %v2462 = vadd.f32 0.0, %v2461
  %v2463 = vpop.f32.mrb[0].mxu0
  %v2464 = vadd.f32 0.0, %v2463
  %2465 = vmatprep.mubr.f32.mxu0 0.0
  %2466 = vmatmul.mubr.f32.gmra.mrb[0].mxu0 %v2358
  %v2467 = vpop.f32.mrb[0].mxu0
  %v2468 = vpop.f32.mrb[0].mxu0
  %2469 = vmatprep.mubr.f32.mxu0 0.0
  %2470 = vmatmul.mubr.f32.gmra.mrb[0].mxu0 %v2361
  %v2471 = vpop.f32.mrb[0].mxu0
  %v2472 = vadd.f32 0.0, %v2471
  %v2473 = vpop.f32.mrb[0].mxu0
  %v2474 = vadd.f32 0.0, %v2473
  %2475 = vmatprep.mubr.f32.mxu0 0.0
  %2476 = vmatmul.mubr.f32.gmra.mrb[0].mxu0 %v2364
  %v2477 = vpop.f32.mrb[0].mxu0
  %v2478 = vpop.f32.mrb[0].mxu0
  %2479 = vmatprep.mubr.f32.mxu0 0.0
  %2480 = vmatmul.mubr.f32.gmra.mrb[0].mxu0 %v2367
  %v2481 = vpop.f32.mrb[0].mxu0
  %v2482 = vadd.f32 0.0, %v2481
  %v2483 = vpop.f32.mrb[0].mxu0
  %v2484 = vadd.f32 0.0, %v2483
  %2485 = vmatprep.mubr.f32.mxu0 0.0
  %2486 = vmatmul.mubr.f32.gmra.mrb[0].mxu0 %v2370
  %v2487 = vpop.f32.mrb[0].mxu0
  %v2488 = vpop.f32.mrb[0].mxu0
  %2489 = vmatprep.mubr.f32.mxu0 0.0
  %2490 = vmatmul.mubr.f32.gmra.mrb[0].mxu0 %v2373
  %v2491 = vpop.f32.mrb[0].mxu0
  %v2492 = vadd.f32 0.0, %v2491
  %v2493 = vpop.f32.mrb[0].mxu0
  %v2494 = vadd.f32 0.0, %v2493
  %2495 = vdwg.mxu0
  %v2496 = vadd.f32 %v2442, 0.0
  %v2497 = vadd.f32 %v2444, 0.0
  %v2500 = vrot.slane %v2442, 1
  %v2501 = vrot.slane %v2444, 1
  %2502 = vrot.lane.b32.xlu0 %v2500, 127
  %v2503 = vpop.permute.xlu0 %2502
  %2504 = vrot.lane.b32.xlu0 %v2501, 127
  %v2505 = vpop.permute.xlu0 %2504
  %v2506 = vsel %vm39, %v2503, %v2505
  %v2509 = vadd.f32 %v2496, %v2506
  %v2510 = vadd.f32 %v2497, %v2505
  %v2511 = vrot.slane %v2442, 2
  %v2512 = vrot.slane %v2444, 2
  %2513 = vrot.lane.b32.xlu0 %v2511, 126
  %v2514 = vpop.permute.xlu0 %2513
  %2515 = vrot.lane.b32.xlu0 %v2512, 126
  %v2516 = vpop.permute.xlu0 %2515
  %v2517 = vsel %vm517, %v2514, %v2516
  %v2520 = vadd.f32 %v2509, %v2517
  %v2521 = vadd.f32 %v2510, %v2516
  %v2522 = vrot.slane %v2442, 3
  %v2523 = vrot.slane %v2444, 3
  %2524 = vrot.lane.b32.xlu0 %v2522, 125
  %v2525 = vpop.permute.xlu0 %2524
  %2526 = vrot.lane.b32.xlu0 %v2523, 125
  %v2527 = vpop.permute.xlu0 %2526
  %vm2528 = vcmask 1022976
  %v2529 = vsel %vm2528, %v2525, %v2527
  %v2532 = vadd.f32 %v2520, %v2529
  %v2533 = vadd.f32 %v2521, %v2527
  %v2534 = vrot.slane %v2442, 4
  %v2535 = vrot.slane %v2444, 4
  %2536 = vrot.lane.b32.xlu0 %v2534, 124
  %v2537 = vpop.permute.xlu0 %2536
  %2538 = vrot.lane.b32.xlu0 %v2535, 124
  %v2539 = vpop.permute.xlu0 %2538
  %vm2540 = vcmask 1014784
  %v2541 = vsel %vm2540, %v2537, %v2539
  %v2544 = vadd.f32 %v2532, %v2541
  %v2545 = vadd.f32 %v2533, %v2539
  %v2546 = vrot.slane %v2442, 5
  %v2547 = vrot.slane %v2444, 5
  %2548 = vrot.lane.b32.xlu0 %v2546, 123
  %v2549 = vpop.permute.xlu0 %2548
  %2550 = vrot.lane.b32.xlu0 %v2547, 123
  %v2551 = vpop.permute.xlu0 %2550
  %vm2552 = vcmask 1006592
  %v2553 = vsel %vm2552, %v2549, %v2551
  %v2556 = vadd.f32 %v2544, %v2553
  %v2557 = vadd.f32 %v2545, %v2551
  %2560 = vrot.lane.b32.xlu0 %v2452, 112
  %v2561 = vpop.permute.xlu0 %2560
  %2562 = vrot.lane.b32.xlu0 %v2454, 112
  %v2563 = vpop.permute.xlu0 %2562
  %v2564 = vsel %vm771, %v2561, %v2563
  %v2567 = vadd.f32 %v2556, %v2564
  %v2568 = vadd.f32 %v2557, %v2563
  %v2569 = vrot.slane %v2452, 1
  %v2570 = vrot.slane %v2454, 1
  %2571 = vrot.lane.b32.xlu0 %v2569, 111
  %v2572 = vpop.permute.xlu0 %2571
  %2573 = vrot.lane.b32.xlu0 %v2570, 111
  %v2574 = vpop.permute.xlu0 %2573
  %v2575 = vsel %vm1025, %v2572, %v2574
  %v2578 = vadd.f32 %v2567, %v2575
  %v2579 = vadd.f32 %v2568, %v2574
  %v2580 = vrot.slane %v2452, 2
  %v2581 = vrot.slane %v2454, 2
  %2582 = vrot.lane.b32.xlu0 %v2580, 110
  %v2583 = vpop.permute.xlu0 %2582
  %2584 = vrot.lane.b32.xlu0 %v2581, 110
  %v2585 = vpop.permute.xlu0 %2584
  %v2586 = vsel %vm1279, %v2583, %v2585
  %v2589 = vadd.f32 %v2578, %v2586
  %v2590 = vadd.f32 %v2579, %v2585
  %v2591 = vrot.slane %v2452, 3
  %v2592 = vrot.slane %v2454, 3
  %2593 = vrot.lane.b32.xlu0 %v2591, 109
  %v2594 = vpop.permute.xlu0 %2593
  %2595 = vrot.lane.b32.xlu0 %v2592, 109
  %v2596 = vpop.permute.xlu0 %2595
  %vm2597 = vcmask 891904
  %v2598 = vsel %vm2597, %v2594, %v2596
  %v2601 = vadd.f32 %v2589, %v2598
  %v2602 = vadd.f32 %v2590, %v2596
  %v2603 = vrot.slane %v2452, 4
  %v2604 = vrot.slane %v2454, 4
  %2605 = vrot.lane.b32.xlu0 %v2603, 108
  %v2606 = vpop.permute.xlu0 %2605
  %2607 = vrot.lane.b32.xlu0 %v2604, 108
  %v2608 = vpop.permute.xlu0 %2607
  %vm2609 = vcmask 883712
  %v2610 = vsel %vm2609, %v2606, %v2608
  %v2613 = vadd.f32 %v2601, %v2610
  %v2614 = vadd.f32 %v2602, %v2608
  %v2615 = vrot.slane %v2452, 5
  %v2616 = vrot.slane %v2454, 5
  %2617 = vrot.lane.b32.xlu0 %v2615, 107
  %v2618 = vpop.permute.xlu0 %2617
  %2619 = vrot.lane.b32.xlu0 %v2616, 107
  %v2620 = vpop.permute.xlu0 %2619
  %vm2621 = vcmask 875520
  %v2622 = vsel %vm2621, %v2618, %v2620
  %v2625 = vadd.f32 %v2613, %v2622
  %v2626 = vadd.f32 %v2614, %v2620
  %2629 = vrot.lane.b32.xlu0 %v2462, 96
  %v2630 = vpop.permute.xlu0 %2629
  %2631 = vrot.lane.b32.xlu0 %v2464, 96
  %v2632 = vpop.permute.xlu0 %2631
  %v2633 = vsel %vm1536, %v2630, %v2632
  %v2636 = vadd.f32 %v2625, %v2633
  %v2637 = vadd.f32 %v2626, %v2632
  %v2638 = vrot.slane %v2462, 1
  %v2639 = vrot.slane %v2464, 1
  %2640 = vrot.lane.b32.xlu0 %v2638, 95
  %v2641 = vpop.permute.xlu0 %2640
  %2642 = vrot.lane.b32.xlu0 %v2639, 95
  %v2643 = vpop.permute.xlu0 %2642
  %v2644 = vsel %vm1793, %v2641, %v2643
  %v2647 = vadd.f32 %v2636, %v2644
  %v2648 = vadd.f32 %v2637, %v2643
  %v2649 = vrot.slane %v2462, 2
  %v2650 = vrot.slane %v2464, 2
  %2651 = vrot.lane.b32.xlu0 %v2649, 94
  %v2652 = vpop.permute.xlu0 %2651
  %2653 = vrot.lane.b32.xlu0 %v2650, 94
  %v2654 = vpop.permute.xlu0 %2653
  %v2655 = vsel %vm2050, %v2652, %v2654
  %v2658 = vadd.f32 %v2647, %v2655
  %v2659 = vadd.f32 %v2648, %v2654
  %v2660 = vrot.slane %v2462, 3
  %v2661 = vrot.slane %v2464, 3
  %2662 = vrot.lane.b32.xlu0 %v2660, 93
  %v2663 = vpop.permute.xlu0 %2662
  %2664 = vrot.lane.b32.xlu0 %v2661, 93
  %v2665 = vpop.permute.xlu0 %2664
  %vm2666 = vcmask 760832
  %v2667 = vsel %vm2666, %v2663, %v2665
  %v2670 = vadd.f32 %v2658, %v2667
  %v2671 = vadd.f32 %v2659, %v2665
  %v2672 = vrot.slane %v2462, 4
  %v2673 = vrot.slane %v2464, 4
  %2674 = vrot.lane.b32.xlu0 %v2672, 92
  %v2675 = vpop.permute.xlu0 %2674
  %2676 = vrot.lane.b32.xlu0 %v2673, 92
  %v2677 = vpop.permute.xlu0 %2676
  %vm2678 = vcmask 752640
  %v2679 = vsel %vm2678, %v2675, %v2677
  %v2682 = vadd.f32 %v2670, %v2679
  %v2683 = vadd.f32 %v2671, %v2677
  %v2684 = vrot.slane %v2462, 5
  %v2685 = vrot.slane %v2464, 5
  %2686 = vrot.lane.b32.xlu0 %v2684, 91
  %v2687 = vpop.permute.xlu0 %2686
  %2688 = vrot.lane.b32.xlu0 %v2685, 91
  %v2689 = vpop.permute.xlu0 %2688
  %vm2690 = vcmask 744448
  %v2691 = vsel %vm2690, %v2687, %v2689
  %v2694 = vadd.f32 %v2682, %v2691
  %v2695 = vadd.f32 %v2683, %v2689
  %2698 = vrot.lane.b32.xlu0 %v2472, 80
  %v2699 = vpop.permute.xlu0 %2698
  %2700 = vrot.lane.b32.xlu0 %v2474, 80
  %v2701 = vpop.permute.xlu0 %2700
  %vm2702 = vcmask 654336
  %v2703 = vsel %vm2702, %v2699, %v2701
  %v2706 = vadd.f32 %v2694, %v2703
  %v2707 = vadd.f32 %v2695, %v2701
  %v2708 = vrot.slane %v2472, 1
  %v2709 = vrot.slane %v2474, 1
  %2710 = vrot.lane.b32.xlu0 %v2708, 79
  %v2711 = vpop.permute.xlu0 %2710
  %2712 = vrot.lane.b32.xlu0 %v2709, 79
  %v2713 = vpop.permute.xlu0 %2712
  %vm2714 = vcmask 646144
  %v2715 = vsel %vm2714, %v2711, %v2713
  %v2718 = vadd.f32 %v2706, %v2715
  %v2719 = vadd.f32 %v2707, %v2713
  %v2720 = vrot.slane %v2472, 2
  %v2721 = vrot.slane %v2474, 2
  %2722 = vrot.lane.b32.xlu0 %v2720, 78
  %v2723 = vpop.permute.xlu0 %2722
  %2724 = vrot.lane.b32.xlu0 %v2721, 78
  %v2725 = vpop.permute.xlu0 %2724
  %vm2726 = vcmask 637952
  %v2727 = vsel %vm2726, %v2723, %v2725
  %v2730 = vadd.f32 %v2718, %v2727
  %v2731 = vadd.f32 %v2719, %v2725
  %v2732 = vrot.slane %v2472, 3
  %v2733 = vrot.slane %v2474, 3
  %2734 = vrot.lane.b32.xlu0 %v2732, 77
  %v2735 = vpop.permute.xlu0 %2734
  %2736 = vrot.lane.b32.xlu0 %v2733, 77
  %v2737 = vpop.permute.xlu0 %2736
  %vm2738 = vcmask 629760
  %v2739 = vsel %vm2738, %v2735, %v2737
  %v2742 = vadd.f32 %v2730, %v2739
  %v2743 = vadd.f32 %v2731, %v2737
  %v2744 = vrot.slane %v2472, 4
  %v2745 = vrot.slane %v2474, 4
  %2746 = vrot.lane.b32.xlu0 %v2744, 76
  %v2747 = vpop.permute.xlu0 %2746
  %2748 = vrot.lane.b32.xlu0 %v2745, 76
  %v2749 = vpop.permute.xlu0 %2748
  %vm2750 = vcmask 621568
  %v2751 = vsel %vm2750, %v2747, %v2749
  %v2754 = vadd.f32 %v2742, %v2751
  %v2755 = vadd.f32 %v2743, %v2749
  %v2756 = vrot.slane %v2472, 5
  %v2757 = vrot.slane %v2474, 5
  %2758 = vrot.lane.b32.xlu0 %v2756, 75
  %v2759 = vpop.permute.xlu0 %2758
  %2760 = vrot.lane.b32.xlu0 %v2757, 75
  %v2761 = vpop.permute.xlu0 %2760
  %vm2762 = vcmask 613376
  %v2763 = vsel %vm2762, %v2759, %v2761
  %v2766 = vadd.f32 %v2754, %v2763
  %v2767 = vadd.f32 %v2755, %v2761
  %2770 = vrot.lane.b32.xlu0 %v2482, 64
  %v2771 = vpop.permute.xlu0 %2770
  %2772 = vrot.lane.b32.xlu0 %v2484, 64
  %v2773 = vpop.permute.xlu0 %2772
  %vm2774 = vcmask 523264
  %v2775 = vsel %vm2774, %v2771, %v2773
  %v2778 = vadd.f32 %v2766, %v2775
  %v2779 = vadd.f32 %v2767, %v2773
  %v2780 = vrot.slane %v2482, 1
  %v2781 = vrot.slane %v2484, 1
  %2782 = vrot.lane.b32.xlu0 %v2780, 63
  %v2783 = vpop.permute.xlu0 %2782
  %2784 = vrot.lane.b32.xlu0 %v2781, 63
  %v2785 = vpop.permute.xlu0 %2784
  %vm2786 = vcmask 515072
  %v2787 = vsel %vm2786, %v2783, %v2785
  %v2790 = vadd.f32 %v2778, %v2787
  %v2791 = vadd.f32 %v2779, %v2785
  %v2792 = vrot.slane %v2482, 2
  %v2793 = vrot.slane %v2484, 2
  %2794 = vrot.lane.b32.xlu0 %v2792, 62
  %v2795 = vpop.permute.xlu0 %2794
  %2796 = vrot.lane.b32.xlu0 %v2793, 62
  %v2797 = vpop.permute.xlu0 %2796
  %vm2798 = vcmask 506880
  %v2799 = vsel %vm2798, %v2795, %v2797
  %v2802 = vadd.f32 %v2790, %v2799
  %v2803 = vadd.f32 %v2791, %v2797
  %v2804 = vrot.slane %v2482, 3
  %v2805 = vrot.slane %v2484, 3
  %2806 = vrot.lane.b32.xlu0 %v2804, 61
  %v2807 = vpop.permute.xlu0 %2806
  %2808 = vrot.lane.b32.xlu0 %v2805, 61
  %v2809 = vpop.permute.xlu0 %2808
  %vm2810 = vcmask 498688
  %v2811 = vsel %vm2810, %v2807, %v2809
  %v2814 = vadd.f32 %v2802, %v2811
  %v2815 = vadd.f32 %v2803, %v2809
  %v2816 = vrot.slane %v2482, 4
  %v2817 = vrot.slane %v2484, 4
  %2818 = vrot.lane.b32.xlu0 %v2816, 60
  %v2819 = vpop.permute.xlu0 %2818
  %2820 = vrot.lane.b32.xlu0 %v2817, 60
  %v2821 = vpop.permute.xlu0 %2820
  %vm2822 = vcmask 490496
  %v2823 = vsel %vm2822, %v2819, %v2821
  %v2826 = vadd.f32 %v2814, %v2823
  %v2827 = vadd.f32 %v2815, %v2821
  %v2828 = vrot.slane %v2482, 5
  %v2829 = vrot.slane %v2484, 5
  %2830 = vrot.lane.b32.xlu0 %v2828, 59
  %v2831 = vpop.permute.xlu0 %2830
  %2832 = vrot.lane.b32.xlu0 %v2829, 59
  %v2833 = vpop.permute.xlu0 %2832
  %vm2834 = vcmask 482304
  %v2835 = vsel %vm2834, %v2831, %v2833
  %v2838 = vadd.f32 %v2826, %v2835
  %v2839 = vadd.f32 %v2827, %v2833
  %2842 = vrot.lane.b32.xlu0 %v2492, 48
  %v2843 = vpop.permute.xlu0 %2842
  %2844 = vrot.lane.b32.xlu0 %v2494, 48
  %v2845 = vpop.permute.xlu0 %2844
  %vm2846 = vcmask 392192
  %v2847 = vsel %vm2846, %v2843, %v2845
  %v2850 = vadd.f32 %v2838, %v2847
  %v2851 = vadd.f32 %v2839, %v2845
  %v2852 = vrot.slane %v2492, 1
  %v2853 = vrot.slane %v2494, 1
  %2854 = vrot.lane.b32.xlu0 %v2852, 47
  %v2855 = vpop.permute.xlu0 %2854
  %2856 = vrot.lane.b32.xlu0 %v2853, 47
  %v2857 = vpop.permute.xlu0 %2856
  %vm2858 = vcmask 384000
  %v2859 = vsel %vm2858, %v2855, %v2857
  %v2862 = vadd.f32 %v2850, %v2859
  %v2863 = vadd.f32 %v2851, %v2857
  %v2864 = vrot.slane %v2492, 2
  %v2865 = vrot.slane %v2494, 2
  %2866 = vrot.lane.b32.xlu0 %v2864, 46
  %v2867 = vpop.permute.xlu0 %2866
  %2868 = vrot.lane.b32.xlu0 %v2865, 46
  %v2869 = vpop.permute.xlu0 %2868
  %vm2870 = vcmask 375808
  %v2871 = vsel %vm2870, %v2867, %v2869
  %v2874 = vadd.f32 %v2862, %v2871
  %v2875 = vadd.f32 %v2863, %v2869
  %v2876 = vrot.slane %v2492, 3
  %v2877 = vrot.slane %v2494, 3
  %2878 = vrot.lane.b32.xlu0 %v2876, 45
  %v2879 = vpop.permute.xlu0 %2878
  %2880 = vrot.lane.b32.xlu0 %v2877, 45
  %v2881 = vpop.permute.xlu0 %2880
  %vm2882 = vcmask 367616
  %v2883 = vsel %vm2882, %v2879, %v2881
  %v2886 = vadd.f32 %v2874, %v2883
  %v2887 = vadd.f32 %v2875, %v2881
  %v2888 = vrot.slane %v2492, 4
  %v2889 = vrot.slane %v2494, 4
  %2890 = vrot.lane.b32.xlu0 %v2888, 44
  %v2891 = vpop.permute.xlu0 %2890
  %2892 = vrot.lane.b32.xlu0 %v2889, 44
  %v2893 = vpop.permute.xlu0 %2892
  %vm2894 = vcmask 359424
  %v2895 = vsel %vm2894, %v2891, %v2893
  %v2898 = vadd.f32 %v2886, %v2895
  %v2899 = vadd.f32 %v2887, %v2893
  %v2900 = vrot.slane %v2492, 5
  %v2901 = vrot.slane %v2494, 5
  %2902 = vrot.lane.b32.xlu0 %v2900, 43
  %v2903 = vpop.permute.xlu0 %2902
  %2904 = vrot.lane.b32.xlu0 %v2901, 43
  %v2905 = vpop.permute.xlu0 %2904
  %vm2906 = vcmask 351232
  %v2907 = vsel %vm2906, %v2903, %v2905
  %v2910 = vadd.f32 %v2898, %v2907
  %v2911 = vadd.f32 %v2899, %v2905
  %2912 = vxpose.xlu0.b32.start [1/16] %v2304, 128
  %2913 = vxpose.xlu0.b32.cont [2/16] 0.0, 128
  %2914 = vxpose.xlu0.b32.cont [3/16] 0.0, 128
  %2915 = vxpose.xlu0.b32.cont [4/16] 0.0, 128
  %2916 = vxpose.xlu0.b32.cont [5/16] 0.0, 128
  %2917 = vxpose.xlu0.b32.cont [6/16] 0.0, 128
  %2918 = vxpose.xlu0.b32.cont [7/16] 0.0, 128
  %2919 = vxpose.xlu0.b32.cont [8/16] 0.0, 128
  %2920 = vxpose.xlu0.b32.cont [9/16] 0.0, 128
  %2921 = vxpose.xlu0.b32.cont [10/16] 0.0, 128
  %2922 = vxpose.xlu0.b32.cont [11/16] 0.0, 128
  %2923 = vxpose.xlu0.b32.cont [12/16] 0.0, 128
  %2924 = vxpose.xlu0.b32.cont [13/16] 0.0, 128
  %2925 = vxpose.xlu0.b32.cont [14/16] 0.0, 128
  %2926 = vxpose.xlu0.b32.cont [15/16] 0.0, 128
  %2927 = vxpose.xlu0.b32.end [16/16] 0.0, 128
  %v2928 = vpop.trf.xlu0
  %v2929 = vpop.trf.xlu0
  %v2930 = vpop.trf.xlu0
  %v2931 = vpop.trf.xlu0
  %v2932 = vpop.trf.xlu0
  %v2933 = vpop.trf.xlu0
  %v2934 = vpop.trf.xlu0
  %v2935 = vpop.trf.xlu0
  %v2936 = vpop.trf.xlu0
  %v2937 = vpop.trf.xlu0
  %v2938 = vpop.trf.xlu0
  %v2939 = vpop.trf.xlu0
  %v2940 = vpop.trf.xlu0
  %v2941 = vpop.trf.xlu0
  %v2942 = vpop.trf.xlu0
  %v2943 = vpop.trf.xlu0
  %v2945 = vsel %vm2341, %v2928, 0
  %v2948 = vsel %vm2341, %v2929, 0
  %v2951 = vsel %vm2341, %v2930, 0
  %v2954 = vsel %vm2341, %v2931, 0
  %v2957 = vsel %vm2341, %v2932, 0
  %v2960 = vsel %vm2341, %v2933, 0
  %v2963 = vsel %vm2341, %v2934, 0
  %v2966 = vsel %vm2341, %v2935, 0
  %v2969 = vsel %vm2341, %v2936, 0
  %v2972 = vsel %vm2341, %v2937, 0
  %v2975 = vsel %vm2341, %v2938, 0
  %2977 = vmatprep.subr.mxu0 %v2308
  %2978 = vmatpush1.msra.mxu0 %v2307
  %2979 = vmatprep.subr.mxu0 0.0
  %2980 = vmatpush1.msra.mxu0 0.0
  %2981 = vmatprep.subr.mxu0 0.0
  %2982 = vmatpush1.msra.mxu0 0.0
  %2983 = vmatprep.subr.mxu0 0.0
  %2984 = vmatpush1.msra.mxu0 0.0
  %2985 = vmatprep.subr.mxu0 0.0
  %2986 = vmatpush1.msra.mxu0 0.0
  %2987 = vmatprep.subr.mxu0 0.0
  %2988 = vmatpush1.msra.mxu0 0.0
  %2989 = vmatprep.subr.mxu0 0.0
  %2990 = vmatpush1.msra.mxu0 0.0
  %2991 = vmatprep.subr.mxu0 0.0
  %2992 = vmatpush1.msra.mxu0 0.0
  %2993 = vmatprep.subr.mxu0 0.0
  %2994 = vmatpush1.msra.mxu0 0.0
  %2995 = vmatprep.subr.mxu0 0.0
  %2996 = vmatpush1.msra.mxu0 0.0
  %2997 = vmatprep.subr.mxu0 0.0
  %2998 = vmatpush1.msra.mxu0 0.0
  %2999 = vmatprep.subr.mxu0 0.0
  %3000 = vmatpush1.msra.mxu0 0.0
  %3001 = vmatprep.subr.mxu0 0.0
  %3002 = vmatpush1.msra.mxu0 0.0
  %3003 = vmatprep.subr.mxu0 0.0
  %3004 = vmatpush1.msra.mxu0 0.0
  %3005 = vmatprep.subr.mxu0 0.0
  %3006 = vmatpush1.msra.mxu0 0.0
  %3007 = vmatprep.subr.mxu0 0.0
  %3008 = vmatpush1.msra.mxu0 0.0
  %3009 = vmatprep.subr.mxu0 0.0
  %3010 = vmatpush1.msra.mxu0 0.0
  %3011 = vmatprep.subr.mxu0 0.0
  %3012 = vmatpush1.msra.mxu0 0.0
  %3013 = vmatprep.subr.mxu0 0.0
  %3014 = vmatpush1.msra.mxu0 0.0
  %3015 = vmatprep.subr.mxu0 0.0
  %3016 = vmatpush1.msra.mxu0 0.0
  %3017 = vmatprep.subr.mxu0 0.0
  %3018 = vmatpush1.msra.mxu0 0.0
  %3019 = vmatprep.subr.mxu0 0.0
  %3020 = vmatpush1.msra.mxu0 0.0
  %3021 = vmatprep.subr.mxu0 0.0
  %3022 = vmatpush1.msra.mxu0 0.0
  %3023 = vmatprep.subr.mxu0 0.0
  %3024 = vmatpush1.msra.mxu0 0.0
  %3025 = vmatprep.subr.mxu0 0.0
  %3026 = vmatpush1.msra.mxu0 0.0
  %3027 = vmatprep.subr.mxu0 0.0
  %3028 = vmatpush1.msra.mxu0 0.0
  %3029 = vmatprep.subr.mxu0 0.0
  %3030 = vmatpush1.msra.mxu0 0.0
  %3031 = vmatprep.subr.mxu0 0.0
  %3032 = vmatpush1.msra.mxu0 0.0
  %3033 = vmatprep.subr.mxu0 0.0
  %3034 = vmatpush1.msra.mxu0 0.0
  %3035 = vmatprep.subr.mxu0 0.0
  %3036 = vmatpush1.msra.mxu0 0.0
  %3037 = vmatprep.subr.mxu0 0.0
  %3038 = vmatpush1.msra.mxu0 0.0
  %3039 = vmatprep.subr.mxu0 0.0
  %3040 = vmatpush1.msra.mxu0 0.0
  %3041 = vmatprep.mubr.f32.mxu0 0.0
  %3042 = vmatmul.mubr.f32.gmra.mrb[0].mxu0 %v2945
  %v3043 = vpop.f32.mrb[0].mxu0
  %v3044 = vadd.f32 0.0, %v3043
  %v3045 = vpop.f32.mrb[0].mxu0
  %v3046 = vadd.f32 0.0, %v3045
  %3047 = vmatprep.mubr.f32.mxu0 0.0
  %3048 = vmatmul.mubr.f32.gmra.mrb[0].mxu0 %v2948
  %v3049 = vpop.f32.mrb[0].mxu0
  %v3050 = vpop.f32.mrb[0].mxu0
  %3051 = vmatprep.mubr.f32.mxu0 0.0
  %3052 = vmatmul.mubr.f32.gmra.mrb[0].mxu0 %v2951
  %v3053 = vpop.f32.mrb[0].mxu0
  %v3054 = vadd.f32 0.0, %v3053
  %v3055 = vpop.f32.mrb[0].mxu0
  %v3056 = vadd.f32 0.0, %v3055
  %3057 = vmatprep.mubr.f32.mxu0 0.0
  %3058 = vmatmul.mubr.f32.gmra.mrb[0].mxu0 %v2954
  %v3059 = vpop.f32.mrb[0].mxu0
  %v3060 = vpop.f32.mrb[0].mxu0
  %3061 = vmatprep.mubr.f32.mxu0 0.0
  %3062 = vmatmul.mubr.f32.gmra.mrb[0].mxu0 %v2957
  %v3063 = vpop.f32.mrb[0].mxu0
  %v3064 = vadd.f32 0.0, %v3063
  %v3065 = vpop.f32.mrb[0].mxu0
  %v3066 = vadd.f32 0.0, %v3065
  %3067 = vmatprep.mubr.f32.mxu0 0.0
  %3068 = vmatmul.mubr.f32.gmra.mrb[0].mxu0 %v2960
  %v3069 = vpop.f32.mrb[0].mxu0
  %v3070 = vpop.f32.mrb[0].mxu0
  %3071 = vmatprep.mubr.f32.mxu0 0.0
  %3072 = vmatmul.mubr.f32.gmra.mrb[0].mxu0 %v2963
  %v3073 = vpop.f32.mrb[0].mxu0
  %v3074 = vadd.f32 0.0, %v3073
  %v3075 = vpop.f32.mrb[0].mxu0
  %v3076 = vadd.f32 0.0, %v3075
  %3077 = vmatprep.mubr.f32.mxu0 0.0
  %3078 = vmatmul.mubr.f32.gmra.mrb[0].mxu0 %v2966
  %v3079 = vpop.f32.mrb[0].mxu0
  %v3080 = vpop.f32.mrb[0].mxu0
  %3081 = vmatprep.mubr.f32.mxu0 0.0
  %3082 = vmatmul.mubr.f32.gmra.mrb[0].mxu0 %v2969
  %v3083 = vpop.f32.mrb[0].mxu0
  %v3084 = vadd.f32 0.0, %v3083
  %v3085 = vpop.f32.mrb[0].mxu0
  %v3086 = vadd.f32 0.0, %v3085
  %3087 = vmatprep.mubr.f32.mxu0 0.0
  %3088 = vmatmul.mubr.f32.gmra.mrb[0].mxu0 %v2972
  %v3089 = vpop.f32.mrb[0].mxu0
  %v3090 = vpop.f32.mrb[0].mxu0
  %3091 = vmatprep.mubr.f32.mxu0 0.0
  %3092 = vmatmul.mubr.f32.gmra.mrb[0].mxu0 %v2975
  %v3093 = vpop.f32.mrb[0].mxu0
  %v3094 = vadd.f32 0.0, %v3093
  %v3095 = vpop.f32.mrb[0].mxu0
  %v3096 = vadd.f32 0.0, %v3095
  %3097 = vdwg.mxu0
  %v3098 = vadd.f32 %v3044, 0.0
  %v3099 = vadd.f32 %v3046, 0.0
  %v3102 = vrot.slane %v3044, 1
  %v3103 = vrot.slane %v3046, 1
  %3104 = vrot.lane.b32.xlu0 %v3102, 127
  %v3105 = vpop.permute.xlu0 %3104
  %3106 = vrot.lane.b32.xlu0 %v3103, 127
  %v3107 = vpop.permute.xlu0 %3106
  %v3108 = vsel %vm39, %v3105, %v3107
  %v3111 = vadd.f32 %v3098, %v3108
  %v3112 = vadd.f32 %v3099, %v3107
  %v3113 = vrot.slane %v3044, 2
  %v3114 = vrot.slane %v3046, 2
  %3115 = vrot.lane.b32.xlu0 %v3113, 126
  %v3116 = vpop.permute.xlu0 %3115
  %3117 = vrot.lane.b32.xlu0 %v3114, 126
  %v3118 = vpop.permute.xlu0 %3117
  %v3119 = vsel %vm517, %v3116, %v3118
  %v3122 = vadd.f32 %v3111, %v3119
  %v3123 = vadd.f32 %v3112, %v3118
  %v3124 = vrot.slane %v3044, 3
  %v3125 = vrot.slane %v3046, 3
  %3126 = vrot.lane.b32.xlu0 %v3124, 125
  %v3127 = vpop.permute.xlu0 %3126
  %3128 = vrot.lane.b32.xlu0 %v3125, 125
  %v3129 = vpop.permute.xlu0 %3128
  %v3130 = vsel %vm2528, %v3127, %v3129
  %v3133 = vadd.f32 %v3122, %v3130
  %v3134 = vadd.f32 %v3123, %v3129
  %v3135 = vrot.slane %v3044, 4
  %v3136 = vrot.slane %v3046, 4
  %3137 = vrot.lane.b32.xlu0 %v3135, 124
  %v3138 = vpop.permute.xlu0 %3137
  %3139 = vrot.lane.b32.xlu0 %v3136, 124
  %v3140 = vpop.permute.xlu0 %3139
  %v3141 = vsel %vm2540, %v3138, %v3140
  %v3144 = vadd.f32 %v3133, %v3141
  %v3145 = vadd.f32 %v3134, %v3140
  %v3146 = vrot.slane %v3044, 5
  %v3147 = vrot.slane %v3046, 5
  %3148 = vrot.lane.b32.xlu0 %v3146, 123
  %v3149 = vpop.permute.xlu0 %3148
  %3150 = vrot.lane.b32.xlu0 %v3147, 123
  %v3151 = vpop.permute.xlu0 %3150
  %v3152 = vsel %vm2552, %v3149, %v3151
  %v3155 = vadd.f32 %v3144, %v3152
  %v3156 = vadd.f32 %v3145, %v3151
  %3159 = vrot.lane.b32.xlu0 %v3054, 112
  %v3160 = vpop.permute.xlu0 %3159
  %3161 = vrot.lane.b32.xlu0 %v3056, 112
  %v3162 = vpop.permute.xlu0 %3161
  %v3163 = vsel %vm771, %v3160, %v3162
  %v3166 = vadd.f32 %v3155, %v3163
  %v3167 = vadd.f32 %v3156, %v3162
  %v3168 = vrot.slane %v3054, 1
  %v3169 = vrot.slane %v3056, 1
  %3170 = vrot.lane.b32.xlu0 %v3168, 111
  %v3171 = vpop.permute.xlu0 %3170
  %3172 = vrot.lane.b32.xlu0 %v3169, 111
  %v3173 = vpop.permute.xlu0 %3172
  %v3174 = vsel %vm1025, %v3171, %v3173
  %v3177 = vadd.f32 %v3166, %v3174
  %v3178 = vadd.f32 %v3167, %v3173
  %v3179 = vrot.slane %v3054, 2
  %v3180 = vrot.slane %v3056, 2
  %3181 = vrot.lane.b32.xlu0 %v3179, 110
  %v3182 = vpop.permute.xlu0 %3181
  %3183 = vrot.lane.b32.xlu0 %v3180, 110
  %v3184 = vpop.permute.xlu0 %3183
  %v3185 = vsel %vm1279, %v3182, %v3184
  %v3188 = vadd.f32 %v3177, %v3185
  %v3189 = vadd.f32 %v3178, %v3184
  %v3190 = vrot.slane %v3054, 3
  %v3191 = vrot.slane %v3056, 3
  %3192 = vrot.lane.b32.xlu0 %v3190, 109
  %v3193 = vpop.permute.xlu0 %3192
  %3194 = vrot.lane.b32.xlu0 %v3191, 109
  %v3195 = vpop.permute.xlu0 %3194
  %v3196 = vsel %vm2597, %v3193, %v3195
  %v3199 = vadd.f32 %v3188, %v3196
  %v3200 = vadd.f32 %v3189, %v3195
  %v3201 = vrot.slane %v3054, 4
  %v3202 = vrot.slane %v3056, 4
  %3203 = vrot.lane.b32.xlu0 %v3201, 108
  %v3204 = vpop.permute.xlu0 %3203
  %3205 = vrot.lane.b32.xlu0 %v3202, 108
  %v3206 = vpop.permute.xlu0 %3205
  %v3207 = vsel %vm2609, %v3204, %v3206
  %v3210 = vadd.f32 %v3199, %v3207
  %v3211 = vadd.f32 %v3200, %v3206
  %v3212 = vrot.slane %v3054, 5
  %v3213 = vrot.slane %v3056, 5
  %3214 = vrot.lane.b32.xlu0 %v3212, 107
  %v3215 = vpop.permute.xlu0 %3214
  %3216 = vrot.lane.b32.xlu0 %v3213, 107
  %v3217 = vpop.permute.xlu0 %3216
  %v3218 = vsel %vm2621, %v3215, %v3217
  %v3221 = vadd.f32 %v3210, %v3218
  %v3222 = vadd.f32 %v3211, %v3217
  %3225 = vrot.lane.b32.xlu0 %v3064, 96
  %v3226 = vpop.permute.xlu0 %3225
  %3227 = vrot.lane.b32.xlu0 %v3066, 96
  %v3228 = vpop.permute.xlu0 %3227
  %v3229 = vsel %vm1536, %v3226, %v3228
  %v3232 = vadd.f32 %v3221, %v3229
  %v3233 = vadd.f32 %v3222, %v3228
  %v3234 = vrot.slane %v3064, 1
  %v3235 = vrot.slane %v3066, 1
  %3236 = vrot.lane.b32.xlu0 %v3234, 95
  %v3237 = vpop.permute.xlu0 %3236
  %3238 = vrot.lane.b32.xlu0 %v3235, 95
  %v3239 = vpop.permute.xlu0 %3238
  %v3240 = vsel %vm1793, %v3237, %v3239
  %v3243 = vadd.f32 %v3232, %v3240
  %v3244 = vadd.f32 %v3233, %v3239
  %v3245 = vrot.slane %v3064, 2
  %v3246 = vrot.slane %v3066, 2
  %3247 = vrot.lane.b32.xlu0 %v3245, 94
  %v3248 = vpop.permute.xlu0 %3247
  %3249 = vrot.lane.b32.xlu0 %v3246, 94
  %v3250 = vpop.permute.xlu0 %3249
  %v3251 = vsel %vm2050, %v3248, %v3250
  %v3254 = vadd.f32 %v3243, %v3251
  %v3255 = vadd.f32 %v3244, %v3250
  %v3256 = vrot.slane %v3064, 3
  %v3257 = vrot.slane %v3066, 3
  %3258 = vrot.lane.b32.xlu0 %v3256, 93
  %v3259 = vpop.permute.xlu0 %3258
  %3260 = vrot.lane.b32.xlu0 %v3257, 93
  %v3261 = vpop.permute.xlu0 %3260
  %v3262 = vsel %vm2666, %v3259, %v3261
  %v3265 = vadd.f32 %v3254, %v3262
  %v3266 = vadd.f32 %v3255, %v3261
  %v3267 = vrot.slane %v3064, 4
  %v3268 = vrot.slane %v3066, 4
  %3269 = vrot.lane.b32.xlu0 %v3267, 92
  %v3270 = vpop.permute.xlu0 %3269
  %3271 = vrot.lane.b32.xlu0 %v3268, 92
  %v3272 = vpop.permute.xlu0 %3271
  %v3273 = vsel %vm2678, %v3270, %v3272
  %v3276 = vadd.f32 %v3265, %v3273
  %v3277 = vadd.f32 %v3266, %v3272
  %v3278 = vrot.slane %v3064, 5
  %v3279 = vrot.slane %v3066, 5
  %3280 = vrot.lane.b32.xlu0 %v3278, 91
  %v3281 = vpop.permute.xlu0 %3280
  %3282 = vrot.lane.b32.xlu0 %v3279, 91
  %v3283 = vpop.permute.xlu0 %3282
  %v3284 = vsel %vm2690, %v3281, %v3283
  %v3287 = vadd.f32 %v3276, %v3284
  %v3288 = vadd.f32 %v3277, %v3283
  %3291 = vrot.lane.b32.xlu0 %v3074, 80
  %v3292 = vpop.permute.xlu0 %3291
  %3293 = vrot.lane.b32.xlu0 %v3076, 80
  %v3294 = vpop.permute.xlu0 %3293
  %v3295 = vsel %vm2702, %v3292, %v3294
  %v3298 = vadd.f32 %v3287, %v3295
  %v3299 = vadd.f32 %v3288, %v3294
  %v3300 = vrot.slane %v3074, 1
  %v3301 = vrot.slane %v3076, 1
  %3302 = vrot.lane.b32.xlu0 %v3300, 79
  %v3303 = vpop.permute.xlu0 %3302
  %3304 = vrot.lane.b32.xlu0 %v3301, 79
  %v3305 = vpop.permute.xlu0 %3304
  %v3306 = vsel %vm2714, %v3303, %v3305
  %v3309 = vadd.f32 %v3298, %v3306
  %v3310 = vadd.f32 %v3299, %v3305
  %v3311 = vrot.slane %v3074, 2
  %v3312 = vrot.slane %v3076, 2
  %3313 = vrot.lane.b32.xlu0 %v3311, 78
  %v3314 = vpop.permute.xlu0 %3313
  %3315 = vrot.lane.b32.xlu0 %v3312, 78
  %v3316 = vpop.permute.xlu0 %3315
  %v3317 = vsel %vm2726, %v3314, %v3316
  %v3320 = vadd.f32 %v3309, %v3317
  %v3321 = vadd.f32 %v3310, %v3316
  %v3322 = vrot.slane %v3074, 3
  %v3323 = vrot.slane %v3076, 3
  %3324 = vrot.lane.b32.xlu0 %v3322, 77
  %v3325 = vpop.permute.xlu0 %3324
  %3326 = vrot.lane.b32.xlu0 %v3323, 77
  %v3327 = vpop.permute.xlu0 %3326
  %v3328 = vsel %vm2738, %v3325, %v3327
  %v3331 = vadd.f32 %v3320, %v3328
  %v3332 = vadd.f32 %v3321, %v3327
  %v3333 = vrot.slane %v3074, 4
  %v3334 = vrot.slane %v3076, 4
  %3335 = vrot.lane.b32.xlu0 %v3333, 76
  %v3336 = vpop.permute.xlu0 %3335
  %3337 = vrot.lane.b32.xlu0 %v3334, 76
  %v3338 = vpop.permute.xlu0 %3337
  %v3339 = vsel %vm2750, %v3336, %v3338
  %v3342 = vadd.f32 %v3331, %v3339
  %v3343 = vadd.f32 %v3332, %v3338
  %v3344 = vrot.slane %v3074, 5
  %v3345 = vrot.slane %v3076, 5
  %3346 = vrot.lane.b32.xlu0 %v3344, 75
  %v3347 = vpop.permute.xlu0 %3346
  %3348 = vrot.lane.b32.xlu0 %v3345, 75
  %v3349 = vpop.permute.xlu0 %3348
  %v3350 = vsel %vm2762, %v3347, %v3349
  %v3353 = vadd.f32 %v3342, %v3350
  %v3354 = vadd.f32 %v3343, %v3349
  %3357 = vrot.lane.b32.xlu0 %v3084, 64
  %v3358 = vpop.permute.xlu0 %3357
  %3359 = vrot.lane.b32.xlu0 %v3086, 64
  %v3360 = vpop.permute.xlu0 %3359
  %v3361 = vsel %vm2774, %v3358, %v3360
  %v3364 = vadd.f32 %v3353, %v3361
  %v3365 = vadd.f32 %v3354, %v3360
  %v3366 = vrot.slane %v3084, 1
  %v3367 = vrot.slane %v3086, 1
  %3368 = vrot.lane.b32.xlu0 %v3366, 63
  %v3369 = vpop.permute.xlu0 %3368
  %3370 = vrot.lane.b32.xlu0 %v3367, 63
  %v3371 = vpop.permute.xlu0 %3370
  %v3372 = vsel %vm2786, %v3369, %v3371
  %v3375 = vadd.f32 %v3364, %v3372
  %v3376 = vadd.f32 %v3365, %v3371
  %v3377 = vrot.slane %v3084, 2
  %v3378 = vrot.slane %v3086, 2
  %3379 = vrot.lane.b32.xlu0 %v3377, 62
  %v3380 = vpop.permute.xlu0 %3379
  %3381 = vrot.lane.b32.xlu0 %v3378, 62
  %v3382 = vpop.permute.xlu0 %3381
  %v3383 = vsel %vm2798, %v3380, %v3382
  %v3386 = vadd.f32 %v3375, %v3383
  %v3387 = vadd.f32 %v3376, %v3382
  %v3388 = vrot.slane %v3084, 3
  %v3389 = vrot.slane %v3086, 3
  %3390 = vrot.lane.b32.xlu0 %v3388, 61
  %v3391 = vpop.permute.xlu0 %3390
  %3392 = vrot.lane.b32.xlu0 %v3389, 61
  %v3393 = vpop.permute.xlu0 %3392
  %v3394 = vsel %vm2810, %v3391, %v3393
  %v3397 = vadd.f32 %v3386, %v3394
  %v3398 = vadd.f32 %v3387, %v3393
  %v3399 = vrot.slane %v3084, 4
  %v3400 = vrot.slane %v3086, 4
  %3401 = vrot.lane.b32.xlu0 %v3399, 60
  %v3402 = vpop.permute.xlu0 %3401
  %3403 = vrot.lane.b32.xlu0 %v3400, 60
  %v3404 = vpop.permute.xlu0 %3403
  %v3405 = vsel %vm2822, %v3402, %v3404
  %v3408 = vadd.f32 %v3397, %v3405
  %v3409 = vadd.f32 %v3398, %v3404
  %v3410 = vrot.slane %v3084, 5
  %v3411 = vrot.slane %v3086, 5
  %3412 = vrot.lane.b32.xlu0 %v3410, 59
  %v3413 = vpop.permute.xlu0 %3412
  %3414 = vrot.lane.b32.xlu0 %v3411, 59
  %v3415 = vpop.permute.xlu0 %3414
  %v3416 = vsel %vm2834, %v3413, %v3415
  %v3419 = vadd.f32 %v3408, %v3416
  %v3420 = vadd.f32 %v3409, %v3415
  %3423 = vrot.lane.b32.xlu0 %v3094, 48
  %v3424 = vpop.permute.xlu0 %3423
  %3425 = vrot.lane.b32.xlu0 %v3096, 48
  %v3426 = vpop.permute.xlu0 %3425
  %v3427 = vsel %vm2846, %v3424, %v3426
  %v3430 = vadd.f32 %v3419, %v3427
  %v3431 = vadd.f32 %v3420, %v3426
  %v3432 = vrot.slane %v3094, 1
  %v3433 = vrot.slane %v3096, 1
  %3434 = vrot.lane.b32.xlu0 %v3432, 47
  %v3435 = vpop.permute.xlu0 %3434
  %3436 = vrot.lane.b32.xlu0 %v3433, 47
  %v3437 = vpop.permute.xlu0 %3436
  %v3438 = vsel %vm2858, %v3435, %v3437
  %v3441 = vadd.f32 %v3430, %v3438
  %v3442 = vadd.f32 %v3431, %v3437
  %v3443 = vrot.slane %v3094, 2
  %v3444 = vrot.slane %v3096, 2
  %3445 = vrot.lane.b32.xlu0 %v3443, 46
  %v3446 = vpop.permute.xlu0 %3445
  %3447 = vrot.lane.b32.xlu0 %v3444, 46
  %v3448 = vpop.permute.xlu0 %3447
  %v3449 = vsel %vm2870, %v3446, %v3448
  %v3452 = vadd.f32 %v3441, %v3449
  %v3453 = vadd.f32 %v3442, %v3448
  %v3454 = vrot.slane %v3094, 3
  %v3455 = vrot.slane %v3096, 3
  %3456 = vrot.lane.b32.xlu0 %v3454, 45
  %v3457 = vpop.permute.xlu0 %3456
  %3458 = vrot.lane.b32.xlu0 %v3455, 45
  %v3459 = vpop.permute.xlu0 %3458
  %v3460 = vsel %vm2882, %v3457, %v3459
  %v3463 = vadd.f32 %v3452, %v3460
  %v3464 = vadd.f32 %v3453, %v3459
  %v3465 = vrot.slane %v3094, 4
  %v3466 = vrot.slane %v3096, 4
  %3467 = vrot.lane.b32.xlu0 %v3465, 44
  %v3468 = vpop.permute.xlu0 %3467
  %3469 = vrot.lane.b32.xlu0 %v3466, 44
  %v3470 = vpop.permute.xlu0 %3469
  %v3471 = vsel %vm2894, %v3468, %v3470
  %v3474 = vadd.f32 %v3463, %v3471
  %v3475 = vadd.f32 %v3464, %v3470
  %v3476 = vrot.slane %v3094, 5
  %v3477 = vrot.slane %v3096, 5
  %3478 = vrot.lane.b32.xlu0 %v3476, 43
  %v3479 = vpop.permute.xlu0 %3478
  %3480 = vrot.lane.b32.xlu0 %v3477, 43
  %v3481 = vpop.permute.xlu0 %3480
  %v3482 = vsel %vm2906, %v3479, %v3481
  %v3485 = vadd.f32 %v3474, %v3482
  %v3486 = vadd.f32 %v3475, %v3481
  %v3489 = vrot.slane %v3485, 7
  %v3490 = vrot.slane %v3486, 7
  %vm3493 = vcmask 1040384
  %v3494 = vsel %vm3493, %v2910, %v3489
  %v3495 = vsel %vm3493, %v2911, %v3490
  %v3498 = vcombine.low %v3494, %v3495
  %v3500 = vunpack.c.l.s4 1983009808
  %v3501 = vunpack.c.0.s8 %v3500
  %v3502 = vlaneseq
  %v3503 = vshrl.u32 %v3502, 7
  %v3504 = vsub.s32 %v3501, %v3503
  %v3505 = vrot.slane %v3498, %v3504
  %vm3507 = vcmask 1041408
  %vm3508 = vcmask 125954
  %vm3509 = vmor %vm3508, %vm3507
  %3510 = vst.msk [vmem:[%s3] sm:$0xf] %vm3509, %v3505
  // Predicated region
  $region14: #{net_forward.1} parent=0 // pred_check
    _
  $region15: #{net_forward.1} parent=0 // pred_check_branch
    %3512 = sbr.rel (0) target = $region17
  $region16: #{net_forward.1} parent=0 // pred_region
    _
  $region17: #{net_forward.1} parent=0 // pred_fallthru
    _
  // Predicated region
  $region18: #{net_forward.1} parent=0 // pred_check
    _
  $region19: #{net_forward.1} parent=0 // pred_check_branch
    %3514 = sbr.rel (0) target = $region21
  $region20: #{net_forward.1} parent=0 // pred_region
    _
  $region21: #{net_forward.1} parent=0 // pred_fallthru
    _

</llo_original>
